<compile_context>
chip_gen: v7x
topology: tpu7x:2x2x1
jax: 0.10.0
libtpu: 0.0.40
codegen_flags: <defaults>
</compile_context>

<pallas_src>
import functools

import jax
import jax.numpy as jnp
from jax import lax
from jax.experimental import pallas as pl
from jax.experimental.pallas import tpu as pltpu

EPS = 1e-5                      # BatchNorm2d eps
_SQRT1_2 = 0.7071067811865476   # 1/sqrt(2), hoisted GELU constant
_TAPS = tuple((dh, dw) for dh in (-1, 0, 1) for dw in (-1, 0, 1))


# ----------------------------- in-kernel helpers -----------------------------

def _erf(x):
    # Abramowitz & Stegun 7.1.26, |err| < 1.5e-7: fp32-accurate stand-in for the
    # exact erf used by nn.GELU().
    # TODO(synk): Mosaic has no erf primitive; exact-GELU erf is approximated here.
    sign = jnp.where(x >= 0.0, 1.0, -1.0)
    z = jnp.abs(x)
    t = 1.0 / (1.0 + 0.3275911 * z)
    poly = t * (0.254829592 + t * (-0.284496736 + t * (1.421413741
             + t * (-1.453152027 + t * 1.061405429))))
    return sign * (1.0 - poly * jnp.exp(-z * z))          # exp runs on the EUP


def _gelu(x):
    return 0.5 * x * (1.0 + _erf(x * _SQRT1_2))


def _shift_read(v, off):
    """result[:, m] = v[:, (m + off) mod M]  (circular; callers mask invalid lanes)."""
    m = v.shape[-1]
    s = (-off) % m
    if s == 0:
        return v
    return pltpu.roll(v, s, axis=1)                       # lane rotation -> XLU


def _bn_train(v, gamma, beta, count, mask=None):
    """Training-mode BatchNorm2d over (N,H,W) == lane axis of (C, M).

    Single reduction pass (sum + sum of squares), applied as one fused FMA.
    """
    vm = v if mask is None else jnp.where(mask, v, 0.0)
    s1 = jnp.sum(vm, axis=1, keepdims=True)
    s2 = jnp.sum(vm * vm, axis=1, keepdims=True)
    inv_n = 1.0 / count
    mean = s1 * inv_n
    var = s2 * inv_n - mean * mean                        # biased variance
    scale = gamma * lax.rsqrt(var + EPS)
    shift = beta - mean * scale
    return v * scale + shift


def _conv3x3_same(x, w2d, tap_masks, W):
    """'same' 3x3 conv on the (C, M) layout.

    Per tap: shift lanes, zero the rows/columns that fall off the image, then
    per-input-channel broadcasted VPU FMAs (channel counts here are far too
    small to fill the MXU).  w2d: (Cout, Cin*9), column = ci*9 + kh*3 + kw.
    """
    cin, m = x.shape
    cout = w2d.shape[0]
    acc = jnp.zeros((cout, m), jnp.float32)
    for t, (dh, dw) in enumerate(_TAPS):
        s = _shift_read(x, dh * W + dw)
        if tap_masks[t] is not None:
            s = jnp.where(tap_masks[t], s, 0.0)
        for ci in range(cin):
            col = ci * 9 + t
            acc = acc + s[ci:ci + 1, :] * w2d[:, col:col + 1]
    return acc


def _maxpool2x2_tl(v, W):
    """2x2 stride-2 max pool; result valid at the (h even, w even) lanes only."""
    a = jnp.maximum(v, _shift_read(v, 1))                 # max over (w, w+1)
    return jnp.maximum(a, _shift_read(a, W))              # ... and rows (h, h+1)


# --------------------------------- the kernel --------------------------------

def _kernel(x_ref, coord_ref, w1_ref, w2_ref,
            g1_ref, b1_ref, g2_ref, b2_ref, g3_ref, b3_ref, g4_ref, b4_ref,
            out_ref, *, H, W):
    x = x_ref[...]                                        # (C, M) f32
    M = x.shape[1]
    h_idx = coord_ref[0:1, :]                             # (1, M) int32
    w_idx = coord_ref[1:2, :]                             # (1, M) int32

    # Boundary masks for the 3x3 stencil, hoisted once, shared by both convs.
    hv = {dh: None if dh == 0 else (h_idx + dh >= 0) & (h_idx + dh < H)
          for dh in (-1, 0, 1)}
    wv = {dw: None if dw == 0 else (w_idx + dw >= 0) & (w_idx + dw < W)
          for dw in (-1, 0, 1)}
    tap_masks = []
    for dh, dw in _TAPS:
        if hv[dh] is None:
            tap_masks.append(wv[dw])
        elif wv[dw] is None:
            tap_masks.append(hv[dh])
        else:
            tap_masks.append(hv[dh] & wv[dw])

    # ---- ResidualBlock4 (in_channels == out_channels -> residual = x) ----
    h1 = _conv3x3_same(x, w1_ref[...], tap_masks, W)
    y1 = _gelu(_bn_train(h1, g1_ref[...], b1_ref[...], M))
    h2 = _conv3x3_same(y1, w2_ref[...], tap_masks, W)
    y2 = _gelu(_bn_train(h2, g2_ref[...], b2_ref[...], M))
    rb = _bn_train(y2 + x, g3_ref[...], b3_ref[...], M)

    # ---- ResidualDownsample: pool both branches, add, final BatchNorm ----
    pooled = _maxpool2x2_tl(x, W) + _maxpool2x2_tl(rb, W)
    tl_mask = ((h_idx & 1) == 0) & ((w_idx & 1) == 0)     # pooled-value lanes
    out_ref[...] = _bn_train(pooled, g4_ref[...], b4_ref[...], M // 4,
                             mask=tl_mask)


# ------------------------------- glue (host side) ----------------------------

def init_params(key, c):
    """Parameters of a freshly constructed ResidualDownsample(c)."""
    k1, k2 = jax.random.split(key)
    params = {
        "w1": 0.2 * jax.random.normal(k1, (c, c, 3, 3), jnp.float32),  # c1 conv
        "w2": 0.2 * jax.random.normal(k2, (c, c, 3, 3), jnp.float32),  # c2 conv
    }
    # BatchNorm2d default init: gamma = 1, beta = 0
    for i in (1, 2, 3, 4):       # c1.bn, c2.bn, block outNorm, downsample outNorm
        params[f"g{i}"] = jnp.ones((c, 1), jnp.float32)
        params[f"b{i}"] = jnp.zeros((c, 1), jnp.float32)
    return params


def residual_downsample(x_nchw, params):
    """Forward pass of ResidualDownsample (training-mode BatchNorm)."""
    N, C, H, W = x_nchw.shape
    assert H % 2 == 0 and W % 2 == 0, "MaxPool2d(2, 2) path assumes even H and W"
    M = N * H * W
    # NOTE: M = N*H*W is a multiple of 128 for the shapes used here, keeping the
    # (C, M) blocks lane-dense (unmasked vector loads/stores).

    x_cm = jnp.transpose(x_nchw, (1, 0, 2, 3)).reshape(C, M).astype(jnp.float32)

    # per-lane (h, w) coordinates of the flattened m = (n*H + h)*W + w layout
    m = jnp.arange(M, dtype=jnp.int32)
    coords = jnp.stack([(m // W) % H, m % W], axis=0)      # (2, M) int32

    # conv weights (C, C, 3, 3) -> (C, C*9), column = ci*9 + kh*3 + kw
    w1 = params["w1"].reshape(C, C * 9).astype(jnp.float32)
    w2 = params["w2"].reshape(C, C * 9).astype(jnp.float32)

    inputs = (x_cm, coords, w1, w2,
              params["g1"], params["b1"], params["g2"], params["b2"],
              params["g3"], params["b3"], params["g4"], params["b4"])

    out_cm = pl.pallas_call(
        functools.partial(_kernel, H=H, W=W),
        out_shape=jax.ShapeDtypeStruct((C, M), jnp.float32),
        in_specs=[pl.BlockSpec(memory_space=pltpu.MemorySpace.VMEM)] * len(inputs),
        out_specs=pl.BlockSpec(memory_space=pltpu.MemorySpace.VMEM),
    )(*inputs)

    # Pooled values live at the (h even, w even) lanes; subsample + back to NCHW.
    out_full = out_cm.reshape(C, N, H, W)
    return jnp.transpose(out_full[:, :, ::2, ::2], (1, 0, 2, 3))


# ------------------------------ plain-JAX reference --------------------------

def _reference_forward(x, params):
    """Pure-JAX reference of the PyTorch forward (training-mode BatchNorm)."""
    C = x.shape[1]

    def bn(v, g, b):
        mean = jnp.mean(v, axis=(0, 2, 3), keepdims=True)
        var = jnp.mean((v - mean) ** 2, axis=(0, 2, 3), keepdims=True)
        return ((v - mean) * lax.rsqrt(var + EPS) * g.reshape(1, C, 1, 1)
                + b.reshape(1, C, 1, 1))

    def conv(v, w):
        return lax.conv_general_dilated(
            v, w, window_strides=(1, 1), padding="SAME",
            dimension_numbers=("NCHW", "OIHW", "NCHW"))

    def pool(v):
        return lax.reduce_window(v, -jnp.inf, lax.max,
                                 (1, 1, 2, 2), (1, 1, 2, 2), "VALID")

    gelu = lambda v: jax.nn.gelu(v, approximate=False)

    y1 = gelu(bn(conv(x, params["w1"]), params["g1"], params["b1"]))
    y2 = gelu(bn(conv(y1, params["w2"]), params["g2"], params["b2"]))
    rb = bn(y2 + x, params["g3"], params["b3"])
    return bn(pool(x) + pool(rb), params["g4"], params["b4"])


if __name__ == "__main__":
    key = jax.random.PRNGKey(0)
    kx, kp = jax.random.split(key)
    N, C, H, W = 2, 4, 16, 16
    x = jax.random.normal(kx, (N, C, H, W), jnp.float32)
    params = init_params(kp, C)

    y = residual_downsample(x, params)
    jax.block_until_ready(y)
    assert y.shape == (N, C, H // 2, W // 2), y.shape
    assert bool(jnp.all(jnp.isfinite(y)))

    # correctness check against a plain-JAX implementation of the module
    y_ref = _reference_forward(x, params)
    max_err = float(jnp.max(jnp.abs(y - y_ref)))
    assert max_err < 1e-3, f"max abs err vs reference: {max_err}"
    print("KERNEL_OK")
</pallas_src>

<mosaic_0001>
module attributes {stable_mosaic.version = 11 : i64} {
  func.func @_kernel(%arg0: memref<4x512xf32, #tpu.memory_space<vmem>>, %arg1: memref<2x512xi32, #tpu.memory_space<vmem>>, %arg2: memref<4x36xf32, #tpu.memory_space<vmem>>, %arg3: memref<4x36xf32, #tpu.memory_space<vmem>>, %arg4: memref<4x1xf32, #tpu.memory_space<vmem>>, %arg5: memref<4x1xf32, #tpu.memory_space<vmem>>, %arg6: memref<4x1xf32, #tpu.memory_space<vmem>>, %arg7: memref<4x1xf32, #tpu.memory_space<vmem>>, %arg8: memref<4x1xf32, #tpu.memory_space<vmem>>, %arg9: memref<4x1xf32, #tpu.memory_space<vmem>>, %arg10: memref<4x1xf32, #tpu.memory_space<vmem>>, %arg11: memref<4x1xf32, #tpu.memory_space<vmem>>, %arg12: memref<4x512xf32, #tpu.memory_space<vmem>>) attributes {dimension_semantics = [], scalar_prefetch = 0 : i64, scratch_operands = 0 : i64, tpu.core_type = #tpu.core_type<tc>} {
    %c0 = arith.constant 0 : index
    %c0_0 = arith.constant 0 : index
    %0 = vector.load %arg0[%c0, %c0_0] : memref<4x512xf32, #tpu.memory_space<vmem>>, vector<4x512xf32>
    %c0_1 = arith.constant 0 : index
    %c0_2 = arith.constant 0 : index
    %1 = vector.load %arg1[%c0_1, %c0_2] : memref<2x512xi32, #tpu.memory_space<vmem>>, vector<1x512xi32>
    %c1 = arith.constant 1 : index
    %c0_3 = arith.constant 0 : index
    %2 = vector.load %arg1[%c1, %c0_3] : memref<2x512xi32, #tpu.memory_space<vmem>>, vector<1x512xi32>
    %c-1_i32 = arith.constant -1 : i32
    %3 = vector.broadcast %c-1_i32 : i32 to vector<1x512xi32>
    %4 = arith.addi %1, %3 : vector<1x512xi32>
    %c0_i32 = arith.constant 0 : i32
    %5 = vector.broadcast %c0_i32 : i32 to vector<1x512xi32>
    %6 = arith.cmpi sge, %4, %5 : vector<1x512xi32>
    %c-1_i32_4 = arith.constant -1 : i32
    %7 = vector.broadcast %c-1_i32_4 : i32 to vector<1x512xi32>
    %8 = arith.addi %1, %7 : vector<1x512xi32>
    %c16_i32 = arith.constant 16 : i32
    %9 = vector.broadcast %c16_i32 : i32 to vector<1x512xi32>
    %10 = arith.cmpi slt, %8, %9 : vector<1x512xi32>
    %11 = arith.andi %6, %10 : vector<1x512xi1>
    %c1_i32 = arith.constant 1 : i32
    %12 = vector.broadcast %c1_i32 : i32 to vector<1x512xi32>
    %13 = arith.addi %1, %12 : vector<1x512xi32>
    %c0_i32_5 = arith.constant 0 : i32
    %14 = vector.broadcast %c0_i32_5 : i32 to vector<1x512xi32>
    %15 = arith.cmpi sge, %13, %14 : vector<1x512xi32>
    %c1_i32_6 = arith.constant 1 : i32
    %16 = vector.broadcast %c1_i32_6 : i32 to vector<1x512xi32>
    %17 = arith.addi %1, %16 : vector<1x512xi32>
    %c16_i32_7 = arith.constant 16 : i32
    %18 = vector.broadcast %c16_i32_7 : i32 to vector<1x512xi32>
    %19 = arith.cmpi slt, %17, %18 : vector<1x512xi32>
    %20 = arith.andi %15, %19 : vector<1x512xi1>
    %c-1_i32_8 = arith.constant -1 : i32
    %21 = vector.broadcast %c-1_i32_8 : i32 to vector<1x512xi32>
    %22 = arith.addi %2, %21 : vector<1x512xi32>
    %c0_i32_9 = arith.constant 0 : i32
    %23 = vector.broadcast %c0_i32_9 : i32 to vector<1x512xi32>
    %24 = arith.cmpi sge, %22, %23 : vector<1x512xi32>
    %c-1_i32_10 = arith.constant -1 : i32
    %25 = vector.broadcast %c-1_i32_10 : i32 to vector<1x512xi32>
    %26 = arith.addi %2, %25 : vector<1x512xi32>
    %c16_i32_11 = arith.constant 16 : i32
    %27 = vector.broadcast %c16_i32_11 : i32 to vector<1x512xi32>
    %28 = arith.cmpi slt, %26, %27 : vector<1x512xi32>
    %29 = arith.andi %24, %28 : vector<1x512xi1>
    %c1_i32_12 = arith.constant 1 : i32
    %30 = vector.broadcast %c1_i32_12 : i32 to vector<1x512xi32>
    %31 = arith.addi %2, %30 : vector<1x512xi32>
    %c0_i32_13 = arith.constant 0 : i32
    %32 = vector.broadcast %c0_i32_13 : i32 to vector<1x512xi32>
    %33 = arith.cmpi sge, %31, %32 : vector<1x512xi32>
    %c1_i32_14 = arith.constant 1 : i32
    %34 = vector.broadcast %c1_i32_14 : i32 to vector<1x512xi32>
    %35 = arith.addi %2, %34 : vector<1x512xi32>
    %c16_i32_15 = arith.constant 16 : i32
    %36 = vector.broadcast %c16_i32_15 : i32 to vector<1x512xi32>
    %37 = arith.cmpi slt, %35, %36 : vector<1x512xi32>
    %38 = arith.andi %33, %37 : vector<1x512xi1>
    %39 = arith.andi %11, %29 : vector<1x512xi1>
    %40 = arith.andi %11, %38 : vector<1x512xi1>
    %41 = arith.andi %20, %29 : vector<1x512xi1>
    %42 = arith.andi %20, %38 : vector<1x512xi1>
    %c0_16 = arith.constant 0 : index
    %c0_17 = arith.constant 0 : index
    %43 = vector.load %arg2[%c0_16, %c0_17] : memref<4x36xf32, #tpu.memory_space<vmem>>, vector<4x36xf32>
    %cst = arith.constant 0.000000e+00 : f32
    %44 = vector.broadcast %cst : f32 to vector<4x512xf32>
    %c17_i32 = arith.constant 17 : i32
    %45 = tpu.dynamic_rotate %0 by %c17_i32 dim 1 : vector<4x512xf32>, i32 -> vector<4x512xf32>
    %cst_18 = arith.constant 0.000000e+00 : f32
    %46 = vector.shape_cast %39 : vector<1x512xi1> to vector<1x512xi1>
    %47 = vector.broadcast %46 : vector<1x512xi1> to vector<4x512xi1>
    %48 = vector.broadcast %cst_18 : f32 to vector<4x512xf32>
    %49 = arith.select %47, %45, %48 : vector<4x512xi1>, vector<4x512xf32>
    %50 = vector.extract_strided_slice %49 {offsets = [0, 0], sizes = [1, 512], strides = [1, 1]} : vector<4x512xf32> to vector<1x512xf32>
    %51 = vector.extract_strided_slice %43 {offsets = [0, 0], sizes = [4, 1], strides = [1, 1]} : vector<4x36xf32> to vector<4x1xf32>
    %52 = vector.broadcast %50 : vector<1x512xf32> to vector<4x512xf32>
    %53 = vector.broadcast %51 : vector<4x1xf32> to vector<4x512xf32>
    %54 = arith.mulf %52, %53 : vector<4x512xf32>
    %55 = arith.addf %44, %54 : vector<4x512xf32>
    %56 = vector.extract_strided_slice %49 {offsets = [1, 0], sizes = [1, 512], strides = [1, 1]} : vector<4x512xf32> to vector<1x512xf32>
    %57 = vector.extract_strided_slice %43 {offsets = [0, 9], sizes = [4, 1], strides = [1, 1]} : vector<4x36xf32> to vector<4x1xf32>
    %58 = vector.broadcast %56 : vector<1x512xf32> to vector<4x512xf32>
    %59 = vector.broadcast %57 : vector<4x1xf32> to vector<4x512xf32>
    %60 = arith.mulf %58, %59 : vector<4x512xf32>
    %61 = arith.addf %55, %60 : vector<4x512xf32>
    %62 = vector.extract_strided_slice %49 {offsets = [2, 0], sizes = [1, 512], strides = [1, 1]} : vector<4x512xf32> to vector<1x512xf32>
    %63 = vector.extract_strided_slice %43 {offsets = [0, 18], sizes = [4, 1], strides = [1, 1]} : vector<4x36xf32> to vector<4x1xf32>
    %64 = vector.broadcast %62 : vector<1x512xf32> to vector<4x512xf32>
    %65 = vector.broadcast %63 : vector<4x1xf32> to vector<4x512xf32>
    %66 = arith.mulf %64, %65 : vector<4x512xf32>
    %67 = arith.addf %61, %66 : vector<4x512xf32>
    %68 = vector.extract_strided_slice %49 {offsets = [3, 0], sizes = [1, 512], strides = [1, 1]} : vector<4x512xf32> to vector<1x512xf32>
    %69 = vector.extract_strided_slice %43 {offsets = [0, 27], sizes = [4, 1], strides = [1, 1]} : vector<4x36xf32> to vector<4x1xf32>
    %70 = vector.broadcast %68 : vector<1x512xf32> to vector<4x512xf32>
    %71 = vector.broadcast %69 : vector<4x1xf32> to vector<4x512xf32>
    %72 = arith.mulf %70, %71 : vector<4x512xf32>
    %73 = arith.addf %67, %72 : vector<4x512xf32>
    %c16_i32_19 = arith.constant 16 : i32
    %74 = tpu.dynamic_rotate %0 by %c16_i32_19 dim 1 : vector<4x512xf32>, i32 -> vector<4x512xf32>
    %cst_20 = arith.constant 0.000000e+00 : f32
    %75 = vector.shape_cast %11 : vector<1x512xi1> to vector<1x512xi1>
    %76 = vector.broadcast %75 : vector<1x512xi1> to vector<4x512xi1>
    %77 = vector.broadcast %cst_20 : f32 to vector<4x512xf32>
    %78 = arith.select %76, %74, %77 : vector<4x512xi1>, vector<4x512xf32>
    %79 = vector.extract_strided_slice %78 {offsets = [0, 0], sizes = [1, 512], strides = [1, 1]} : vector<4x512xf32> to vector<1x512xf32>
    %80 = vector.extract_strided_slice %43 {offsets = [0, 1], sizes = [4, 1], strides = [1, 1]} : vector<4x36xf32> to vector<4x1xf32>
    %81 = vector.broadcast %79 : vector<1x512xf32> to vector<4x512xf32>
    %82 = vector.broadcast %80 : vector<4x1xf32> to vector<4x512xf32>
    %83 = arith.mulf %81, %82 : vector<4x512xf32>
    %84 = arith.addf %73, %83 : vector<4x512xf32>
    %85 = vector.extract_strided_slice %78 {offsets = [1, 0], sizes = [1, 512], strides = [1, 1]} : vector<4x512xf32> to vector<1x512xf32>
    %86 = vector.extract_strided_slice %43 {offsets = [0, 10], sizes = [4, 1], strides = [1, 1]} : vector<4x36xf32> to vector<4x1xf32>
    %87 = vector.broadcast %85 : vector<1x512xf32> to vector<4x512xf32>
    %88 = vector.broadcast %86 : vector<4x1xf32> to vector<4x512xf32>
    %89 = arith.mulf %87, %88 : vector<4x512xf32>
    %90 = arith.addf %84, %89 : vector<4x512xf32>
    %91 = vector.extract_strided_slice %78 {offsets = [2, 0], sizes = [1, 512], strides = [1, 1]} : vector<4x512xf32> to vector<1x512xf32>
    %92 = vector.extract_strided_slice %43 {offsets = [0, 19], sizes = [4, 1], strides = [1, 1]} : vector<4x36xf32> to vector<4x1xf32>
    %93 = vector.broadcast %91 : vector<1x512xf32> to vector<4x512xf32>
    %94 = vector.broadcast %92 : vector<4x1xf32> to vector<4x512xf32>
    %95 = arith.mulf %93, %94 : vector<4x512xf32>
    %96 = arith.addf %90, %95 : vector<4x512xf32>
    %97 = vector.extract_strided_slice %78 {offsets = [3, 0], sizes = [1, 512], strides = [1, 1]} : vector<4x512xf32> to vector<1x512xf32>
    %98 = vector.extract_strided_slice %43 {offsets = [0, 28], sizes = [4, 1], strides = [1, 1]} : vector<4x36xf32> to vector<4x1xf32>
    %99 = vector.broadcast %97 : vector<1x512xf32> to vector<4x512xf32>
    %100 = vector.broadcast %98 : vector<4x1xf32> to vector<4x512xf32>
    %101 = arith.mulf %99, %100 : vector<4x512xf32>
    %102 = arith.addf %96, %101 : vector<4x512xf32>
    %c15_i32 = arith.constant 15 : i32
    %103 = tpu.dynamic_rotate %0 by %c15_i32 dim 1 : vector<4x512xf32>, i32 -> vector<4x512xf32>
    %cst_21 = arith.constant 0.000000e+00 : f32
    %104 = vector.shape_cast %40 : vector<1x512xi1> to vector<1x512xi1>
    %105 = vector.broadcast %104 : vector<1x512xi1> to vector<4x512xi1>
    %106 = vector.broadcast %cst_21 : f32 to vector<4x512xf32>
    %107 = arith.select %105, %103, %106 : vector<4x512xi1>, vector<4x512xf32>
    %108 = vector.extract_strided_slice %107 {offsets = [0, 0], sizes = [1, 512], strides = [1, 1]} : vector<4x512xf32> to vector<1x512xf32>
    %109 = vector.extract_strided_slice %43 {offsets = [0, 2], sizes = [4, 1], strides = [1, 1]} : vector<4x36xf32> to vector<4x1xf32>
    %110 = vector.broadcast %108 : vector<1x512xf32> to vector<4x512xf32>
    %111 = vector.broadcast %109 : vector<4x1xf32> to vector<4x512xf32>
    %112 = arith.mulf %110, %111 : vector<4x512xf32>
    %113 = arith.addf %102, %112 : vector<4x512xf32>
    %114 = vector.extract_strided_slice %107 {offsets = [1, 0], sizes = [1, 512], strides = [1, 1]} : vector<4x512xf32> to vector<1x512xf32>
    %115 = vector.extract_strided_slice %43 {offsets = [0, 11], sizes = [4, 1], strides = [1, 1]} : vector<4x36xf32> to vector<4x1xf32>
    %116 = vector.broadcast %114 : vector<1x512xf32> to vector<4x512xf32>
    %117 = vector.broadcast %115 : vector<4x1xf32> to vector<4x512xf32>
    %118 = arith.mulf %116, %117 : vector<4x512xf32>
    %119 = arith.addf %113, %118 : vector<4x512xf32>
    %120 = vector.extract_strided_slice %107 {offsets = [2, 0], sizes = [1, 512], strides = [1, 1]} : vector<4x512xf32> to vector<1x512xf32>
    %121 = vector.extract_strided_slice %43 {offsets = [0, 20], sizes = [4, 1], strides = [1, 1]} : vector<4x36xf32> to vector<4x1xf32>
    %122 = vector.broadcast %120 : vector<1x512xf32> to vector<4x512xf32>
    %123 = vector.broadcast %121 : vector<4x1xf32> to vector<4x512xf32>
    %124 = arith.mulf %122, %123 : vector<4x512xf32>
    %125 = arith.addf %119, %124 : vector<4x512xf32>
    %126 = vector.extract_strided_slice %107 {offsets = [3, 0], sizes = [1, 512], strides = [1, 1]} : vector<4x512xf32> to vector<1x512xf32>
    %127 = vector.extract_strided_slice %43 {offsets = [0, 29], sizes = [4, 1], strides = [1, 1]} : vector<4x36xf32> to vector<4x1xf32>
    %128 = vector.broadcast %126 : vector<1x512xf32> to vector<4x512xf32>
    %129 = vector.broadcast %127 : vector<4x1xf32> to vector<4x512xf32>
    %130 = arith.mulf %128, %129 : vector<4x512xf32>
    %131 = arith.addf %125, %130 : vector<4x512xf32>
    %c1_i32_22 = arith.constant 1 : i32
    %132 = tpu.dynamic_rotate %0 by %c1_i32_22 dim 1 : vector<4x512xf32>, i32 -> vector<4x512xf32>
    %cst_23 = arith.constant 0.000000e+00 : f32
    %133 = vector.shape_cast %29 : vector<1x512xi1> to vector<1x512xi1>
    %134 = vector.broadcast %133 : vector<1x512xi1> to vector<4x512xi1>
    %135 = vector.broadcast %cst_23 : f32 to vector<4x512xf32>
    %136 = arith.select %134, %132, %135 : vector<4x512xi1>, vector<4x512xf32>
    %137 = vector.extract_strided_slice %136 {offsets = [0, 0], sizes = [1, 512], strides = [1, 1]} : vector<4x512xf32> to vector<1x512xf32>
    %138 = vector.extract_strided_slice %43 {offsets = [0, 3], sizes = [4, 1], strides = [1, 1]} : vector<4x36xf32> to vector<4x1xf32>
    %139 = vector.broadcast %137 : vector<1x512xf32> to vector<4x512xf32>
    %140 = vector.broadcast %138 : vector<4x1xf32> to vector<4x512xf32>
    %141 = arith.mulf %139, %140 : vector<4x512xf32>
    %142 = arith.addf %131, %141 : vector<4x512xf32>
    %143 = vector.extract_strided_slice %136 {offsets = [1, 0], sizes = [1, 512], strides = [1, 1]} : vector<4x512xf32> to vector<1x512xf32>
    %144 = vector.extract_strided_slice %43 {offsets = [0, 12], sizes = [4, 1], strides = [1, 1]} : vector<4x36xf32> to vector<4x1xf32>
    %145 = vector.broadcast %143 : vector<1x512xf32> to vector<4x512xf32>
    %146 = vector.broadcast %144 : vector<4x1xf32> to vector<4x512xf32>
    %147 = arith.mulf %145, %146 : vector<4x512xf32>
    %148 = arith.addf %142, %147 : vector<4x512xf32>
    %149 = vector.extract_strided_slice %136 {offsets = [2, 0], sizes = [1, 512], strides = [1, 1]} : vector<4x512xf32> to vector<1x512xf32>
    %150 = vector.extract_strided_slice %43 {offsets = [0, 21], sizes = [4, 1], strides = [1, 1]} : vector<4x36xf32> to vector<4x1xf32>
    %151 = vector.broadcast %149 : vector<1x512xf32> to vector<4x512xf32>
    %152 = vector.broadcast %150 : vector<4x1xf32> to vector<4x512xf32>
    %153 = arith.mulf %151, %152 : vector<4x512xf32>
    %154 = arith.addf %148, %153 : vector<4x512xf32>
    %155 = vector.extract_strided_slice %136 {offsets = [3, 0], sizes = [1, 512], strides = [1, 1]} : vector<4x512xf32> to vector<1x512xf32>
    %156 = vector.extract_strided_slice %43 {offsets = [0, 30], sizes = [4, 1], strides = [1, 1]} : vector<4x36xf32> to vector<4x1xf32>
    %157 = vector.broadcast %155 : vector<1x512xf32> to vector<4x512xf32>
    %158 = vector.broadcast %156 : vector<4x1xf32> to vector<4x512xf32>
    %159 = arith.mulf %157, %158 : vector<4x512xf32>
    %160 = arith.addf %154, %159 : vector<4x512xf32>
    %161 = vector.extract_strided_slice %0 {offsets = [0, 0], sizes = [1, 512], strides = [1, 1]} : vector<4x512xf32> to vector<1x512xf32>
    %162 = vector.extract_strided_slice %43 {offsets = [0, 4], sizes = [4, 1], strides = [1, 1]} : vector<4x36xf32> to vector<4x1xf32>
    %163 = vector.broadcast %161 : vector<1x512xf32> to vector<4x512xf32>
    %164 = vector.broadcast %162 : vector<4x1xf32> to vector<4x512xf32>
    %165 = arith.mulf %163, %164 : vector<4x512xf32>
    %166 = arith.addf %160, %165 : vector<4x512xf32>
    %167 = vector.extract_strided_slice %0 {offsets = [1, 0], sizes = [1, 512], strides = [1, 1]} : vector<4x512xf32> to vector<1x512xf32>
    %168 = vector.extract_strided_slice %43 {offsets = [0, 13], sizes = [4, 1], strides = [1, 1]} : vector<4x36xf32> to vector<4x1xf32>
    %169 = vector.broadcast %167 : vector<1x512xf32> to vector<4x512xf32>
    %170 = vector.broadcast %168 : vector<4x1xf32> to vector<4x512xf32>
    %171 = arith.mulf %169, %170 : vector<4x512xf32>
    %172 = arith.addf %166, %171 : vector<4x512xf32>
    %173 = vector.extract_strided_slice %0 {offsets = [2, 0], sizes = [1, 512], strides = [1, 1]} : vector<4x512xf32> to vector<1x512xf32>
    %174 = vector.extract_strided_slice %43 {offsets = [0, 22], sizes = [4, 1], strides = [1, 1]} : vector<4x36xf32> to vector<4x1xf32>
    %175 = vector.broadcast %173 : vector<1x512xf32> to vector<4x512xf32>
    %176 = vector.broadcast %174 : vector<4x1xf32> to vector<4x512xf32>
    %177 = arith.mulf %175, %176 : vector<4x512xf32>
    %178 = arith.addf %172, %177 : vector<4x512xf32>
    %179 = vector.extract_strided_slice %0 {offsets = [3, 0], sizes = [1, 512], strides = [1, 1]} : vector<4x512xf32> to vector<1x512xf32>
    %180 = vector.extract_strided_slice %43 {offsets = [0, 31], sizes = [4, 1], strides = [1, 1]} : vector<4x36xf32> to vector<4x1xf32>
    %181 = vector.broadcast %179 : vector<1x512xf32> to vector<4x512xf32>
    %182 = vector.broadcast %180 : vector<4x1xf32> to vector<4x512xf32>
    %183 = arith.mulf %181, %182 : vector<4x512xf32>
    %184 = arith.addf %178, %183 : vector<4x512xf32>
    %c511_i32 = arith.constant 511 : i32
    %185 = tpu.dynamic_rotate %0 by %c511_i32 dim 1 : vector<4x512xf32>, i32 -> vector<4x512xf32>
    %cst_24 = arith.constant 0.000000e+00 : f32
    %186 = vector.shape_cast %38 : vector<1x512xi1> to vector<1x512xi1>
    %187 = vector.broadcast %186 : vector<1x512xi1> to vector<4x512xi1>
    %188 = vector.broadcast %cst_24 : f32 to vector<4x512xf32>
    %189 = arith.select %187, %185, %188 : vector<4x512xi1>, vector<4x512xf32>
    %190 = vector.extract_strided_slice %189 {offsets = [0, 0], sizes = [1, 512], strides = [1, 1]} : vector<4x512xf32> to vector<1x512xf32>
    %191 = vector.extract_strided_slice %43 {offsets = [0, 5], sizes = [4, 1], strides = [1, 1]} : vector<4x36xf32> to vector<4x1xf32>
    %192 = vector.broadcast %190 : vector<1x512xf32> to vector<4x512xf32>
    %193 = vector.broadcast %191 : vector<4x1xf32> to vector<4x512xf32>
    %194 = arith.mulf %192, %193 : vector<4x512xf32>
    %195 = arith.addf %184, %194 : vector<4x512xf32>
    %196 = vector.extract_strided_slice %189 {offsets = [1, 0], sizes = [1, 512], strides = [1, 1]} : vector<4x512xf32> to vector<1x512xf32>
    %197 = vector.extract_strided_slice %43 {offsets = [0, 14], sizes = [4, 1], strides = [1, 1]} : vector<4x36xf32> to vector<4x1xf32>
    %198 = vector.broadcast %196 : vector<1x512xf32> to vector<4x512xf32>
    %199 = vector.broadcast %197 : vector<4x1xf32> to vector<4x512xf32>
    %200 = arith.mulf %198, %199 : vector<4x512xf32>
    %201 = arith.addf %195, %200 : vector<4x512xf32>
    %202 = vector.extract_strided_slice %189 {offsets = [2, 0], sizes = [1, 512], strides = [1, 1]} : vector<4x512xf32> to vector<1x512xf32>
    %203 = vector.extract_strided_slice %43 {offsets = [0, 23], sizes = [4, 1], strides = [1, 1]} : vector<4x36xf32> to vector<4x1xf32>
    %204 = vector.broadcast %202 : vector<1x512xf32> to vector<4x512xf32>
    %205 = vector.broadcast %203 : vector<4x1xf32> to vector<4x512xf32>
    %206 = arith.mulf %204, %205 : vector<4x512xf32>
    %207 = arith.addf %201, %206 : vector<4x512xf32>
    %208 = vector.extract_strided_slice %189 {offsets = [3, 0], sizes = [1, 512], strides = [1, 1]} : vector<4x512xf32> to vector<1x512xf32>
    %209 = vector.extract_strided_slice %43 {offsets = [0, 32], sizes = [4, 1], strides = [1, 1]} : vector<4x36xf32> to vector<4x1xf32>
    %210 = vector.broadcast %208 : vector<1x512xf32> to vector<4x512xf32>
    %211 = vector.broadcast %209 : vector<4x1xf32> to vector<4x512xf32>
    %212 = arith.mulf %210, %211 : vector<4x512xf32>
    %213 = arith.addf %207, %212 : vector<4x512xf32>
    %c497_i32 = arith.constant 497 : i32
    %214 = tpu.dynamic_rotate %0 by %c497_i32 dim 1 : vector<4x512xf32>, i32 -> vector<4x512xf32>
    %cst_25 = arith.constant 0.000000e+00 : f32
    %215 = vector.shape_cast %41 : vector<1x512xi1> to vector<1x512xi1>
    %216 = vector.broadcast %215 : vector<1x512xi1> to vector<4x512xi1>
    %217 = vector.broadcast %cst_25 : f32 to vector<4x512xf32>
    %218 = arith.select %216, %214, %217 : vector<4x512xi1>, vector<4x512xf32>
    %219 = vector.extract_strided_slice %218 {offsets = [0, 0], sizes = [1, 512], strides = [1, 1]} : vector<4x512xf32> to vector<1x512xf32>
    %220 = vector.extract_strided_slice %43 {offsets = [0, 6], sizes = [4, 1], strides = [1, 1]} : vector<4x36xf32> to vector<4x1xf32>
    %221 = vector.broadcast %219 : vector<1x512xf32> to vector<4x512xf32>
    %222 = vector.broadcast %220 : vector<4x1xf32> to vector<4x512xf32>
    %223 = arith.mulf %221, %222 : vector<4x512xf32>
    %224 = arith.addf %213, %223 : vector<4x512xf32>
    %225 = vector.extract_strided_slice %218 {offsets = [1, 0], sizes = [1, 512], strides = [1, 1]} : vector<4x512xf32> to vector<1x512xf32>
    %226 = vector.extract_strided_slice %43 {offsets = [0, 15], sizes = [4, 1], strides = [1, 1]} : vector<4x36xf32> to vector<4x1xf32>
    %227 = vector.broadcast %225 : vector<1x512xf32> to vector<4x512xf32>
    %228 = vector.broadcast %226 : vector<4x1xf32> to vector<4x512xf32>
    %229 = arith.mulf %227, %228 : vector<4x512xf32>
    %230 = arith.addf %224, %229 : vector<4x512xf32>
    %231 = vector.extract_strided_slice %218 {offsets = [2, 0], sizes = [1, 512], strides = [1, 1]} : vector<4x512xf32> to vector<1x512xf32>
    %232 = vector.extract_strided_slice %43 {offsets = [0, 24], sizes = [4, 1], strides = [1, 1]} : vector<4x36xf32> to vector<4x1xf32>
    %233 = vector.broadcast %231 : vector<1x512xf32> to vector<4x512xf32>
    %234 = vector.broadcast %232 : vector<4x1xf32> to vector<4x512xf32>
    %235 = arith.mulf %233, %234 : vector<4x512xf32>
    %236 = arith.addf %230, %235 : vector<4x512xf32>
    %237 = vector.extract_strided_slice %218 {offsets = [3, 0], sizes = [1, 512], strides = [1, 1]} : vector<4x512xf32> to vector<1x512xf32>
    %238 = vector.extract_strided_slice %43 {offsets = [0, 33], sizes = [4, 1], strides = [1, 1]} : vector<4x36xf32> to vector<4x1xf32>
    %239 = vector.broadcast %237 : vector<1x512xf32> to vector<4x512xf32>
    %240 = vector.broadcast %238 : vector<4x1xf32> to vector<4x512xf32>
    %241 = arith.mulf %239, %240 : vector<4x512xf32>
    %242 = arith.addf %236, %241 : vector<4x512xf32>
    %c496_i32 = arith.constant 496 : i32
    %243 = tpu.dynamic_rotate %0 by %c496_i32 dim 1 : vector<4x512xf32>, i32 -> vector<4x512xf32>
    %cst_26 = arith.constant 0.000000e+00 : f32
    %244 = vector.shape_cast %20 : vector<1x512xi1> to vector<1x512xi1>
    %245 = vector.broadcast %244 : vector<1x512xi1> to vector<4x512xi1>
    %246 = vector.broadcast %cst_26 : f32 to vector<4x512xf32>
    %247 = arith.select %245, %243, %246 : vector<4x512xi1>, vector<4x512xf32>
    %248 = vector.extract_strided_slice %247 {offsets = [0, 0], sizes = [1, 512], strides = [1, 1]} : vector<4x512xf32> to vector<1x512xf32>
    %249 = vector.extract_strided_slice %43 {offsets = [0, 7], sizes = [4, 1], strides = [1, 1]} : vector<4x36xf32> to vector<4x1xf32>
    %250 = vector.broadcast %248 : vector<1x512xf32> to vector<4x512xf32>
    %251 = vector.broadcast %249 : vector<4x1xf32> to vector<4x512xf32>
    %252 = arith.mulf %250, %251 : vector<4x512xf32>
    %253 = arith.addf %242, %252 : vector<4x512xf32>
    %254 = vector.extract_strided_slice %247 {offsets = [1, 0], sizes = [1, 512], strides = [1, 1]} : vector<4x512xf32> to vector<1x512xf32>
    %255 = vector.extract_strided_slice %43 {offsets = [0, 16], sizes = [4, 1], strides = [1, 1]} : vector<4x36xf32> to vector<4x1xf32>
    %256 = vector.broadcast %254 : vector<1x512xf32> to vector<4x512xf32>
    %257 = vector.broadcast %255 : vector<4x1xf32> to vector<4x512xf32>
    %258 = arith.mulf %256, %257 : vector<4x512xf32>
    %259 = arith.addf %253, %258 : vector<4x512xf32>
    %260 = vector.extract_strided_slice %247 {offsets = [2, 0], sizes = [1, 512], strides = [1, 1]} : vector<4x512xf32> to vector<1x512xf32>
    %261 = vector.extract_strided_slice %43 {offsets = [0, 25], sizes = [4, 1], strides = [1, 1]} : vector<4x36xf32> to vector<4x1xf32>
    %262 = vector.broadcast %260 : vector<1x512xf32> to vector<4x512xf32>
    %263 = vector.broadcast %261 : vector<4x1xf32> to vector<4x512xf32>
    %264 = arith.mulf %262, %263 : vector<4x512xf32>
    %265 = arith.addf %259, %264 : vector<4x512xf32>
    %266 = vector.extract_strided_slice %247 {offsets = [3, 0], sizes = [1, 512], strides = [1, 1]} : vector<4x512xf32> to vector<1x512xf32>
    %267 = vector.extract_strided_slice %43 {offsets = [0, 34], sizes = [4, 1], strides = [1, 1]} : vector<4x36xf32> to vector<4x1xf32>
    %268 = vector.broadcast %266 : vector<1x512xf32> to vector<4x512xf32>
    %269 = vector.broadcast %267 : vector<4x1xf32> to vector<4x512xf32>
    %270 = arith.mulf %268, %269 : vector<4x512xf32>
    %271 = arith.addf %265, %270 : vector<4x512xf32>
    %c495_i32 = arith.constant 495 : i32
    %272 = tpu.dynamic_rotate %0 by %c495_i32 dim 1 : vector<4x512xf32>, i32 -> vector<4x512xf32>
    %cst_27 = arith.constant 0.000000e+00 : f32
    %273 = vector.shape_cast %42 : vector<1x512xi1> to vector<1x512xi1>
    %274 = vector.broadcast %273 : vector<1x512xi1> to vector<4x512xi1>
    %275 = vector.broadcast %cst_27 : f32 to vector<4x512xf32>
    %276 = arith.select %274, %272, %275 : vector<4x512xi1>, vector<4x512xf32>
    %277 = vector.extract_strided_slice %276 {offsets = [0, 0], sizes = [1, 512], strides = [1, 1]} : vector<4x512xf32> to vector<1x512xf32>
    %278 = vector.extract_strided_slice %43 {offsets = [0, 8], sizes = [4, 1], strides = [1, 1]} : vector<4x36xf32> to vector<4x1xf32>
    %279 = vector.broadcast %277 : vector<1x512xf32> to vector<4x512xf32>
    %280 = vector.broadcast %278 : vector<4x1xf32> to vector<4x512xf32>
    %281 = arith.mulf %279, %280 : vector<4x512xf32>
    %282 = arith.addf %271, %281 : vector<4x512xf32>
    %283 = vector.extract_strided_slice %276 {offsets = [1, 0], sizes = [1, 512], strides = [1, 1]} : vector<4x512xf32> to vector<1x512xf32>
    %284 = vector.extract_strided_slice %43 {offsets = [0, 17], sizes = [4, 1], strides = [1, 1]} : vector<4x36xf32> to vector<4x1xf32>
    %285 = vector.broadcast %283 : vector<1x512xf32> to vector<4x512xf32>
    %286 = vector.broadcast %284 : vector<4x1xf32> to vector<4x512xf32>
    %287 = arith.mulf %285, %286 : vector<4x512xf32>
    %288 = arith.addf %282, %287 : vector<4x512xf32>
    %289 = vector.extract_strided_slice %276 {offsets = [2, 0], sizes = [1, 512], strides = [1, 1]} : vector<4x512xf32> to vector<1x512xf32>
    %290 = vector.extract_strided_slice %43 {offsets = [0, 26], sizes = [4, 1], strides = [1, 1]} : vector<4x36xf32> to vector<4x1xf32>
    %291 = vector.broadcast %289 : vector<1x512xf32> to vector<4x512xf32>
    %292 = vector.broadcast %290 : vector<4x1xf32> to vector<4x512xf32>
    %293 = arith.mulf %291, %292 : vector<4x512xf32>
    %294 = arith.addf %288, %293 : vector<4x512xf32>
    %295 = vector.extract_strided_slice %276 {offsets = [3, 0], sizes = [1, 512], strides = [1, 1]} : vector<4x512xf32> to vector<1x512xf32>
    %296 = vector.extract_strided_slice %43 {offsets = [0, 35], sizes = [4, 1], strides = [1, 1]} : vector<4x36xf32> to vector<4x1xf32>
    %297 = vector.broadcast %295 : vector<1x512xf32> to vector<4x512xf32>
    %298 = vector.broadcast %296 : vector<4x1xf32> to vector<4x512xf32>
    %299 = arith.mulf %297, %298 : vector<4x512xf32>
    %300 = arith.addf %294, %299 : vector<4x512xf32>
    %c0_28 = arith.constant 0 : index
    %c0_29 = arith.constant 0 : index
    %301 = vector.load %arg4[%c0_28, %c0_29] : memref<4x1xf32, #tpu.memory_space<vmem>>, vector<4x1xf32>
    %c0_30 = arith.constant 0 : index
    %c0_31 = arith.constant 0 : index
    %302 = vector.load %arg5[%c0_30, %c0_31] : memref<4x1xf32, #tpu.memory_space<vmem>>, vector<4x1xf32>
    %cst_32 = arith.constant dense<0.000000e+00> : vector<4xf32>
    %303 = vector.multi_reduction <add>, %300, %cst_32 [1] : vector<4x512xf32> to vector<4xf32>
    %304 = vector.shape_cast %303 : vector<4xf32> to vector<4x1xf32>
    %305 = arith.mulf %300, %300 : vector<4x512xf32>
    %cst_33 = arith.constant dense<0.000000e+00> : vector<4xf32>
    %306 = vector.multi_reduction <add>, %305, %cst_33 [1] : vector<4x512xf32> to vector<4xf32>
    %307 = vector.shape_cast %306 : vector<4xf32> to vector<4x1xf32>
    %cst_34 = arith.constant 0.001953125 : f32
    %308 = vector.broadcast %cst_34 : f32 to vector<4x1xf32>
    %309 = arith.mulf %304, %308 : vector<4x1xf32>
    %cst_35 = arith.constant 0.001953125 : f32
    %310 = vector.broadcast %cst_35 : f32 to vector<4x1xf32>
    %311 = arith.mulf %307, %310 : vector<4x1xf32>
    %312 = arith.mulf %309, %309 : vector<4x1xf32>
    %313 = arith.subf %311, %312 : vector<4x1xf32>
    %cst_36 = arith.constant 9.99999974E-6 : f32
    %314 = vector.broadcast %cst_36 : f32 to vector<4x1xf32>
    %315 = arith.addf %313, %314 : vector<4x1xf32>
    %316 = math.rsqrt %315 : vector<4x1xf32>
    %317 = arith.mulf %301, %316 : vector<4x1xf32>
    %318 = arith.mulf %309, %317 : vector<4x1xf32>
    %319 = arith.subf %302, %318 : vector<4x1xf32>
    %320 = vector.broadcast %317 : vector<4x1xf32> to vector<4x512xf32>
    %321 = arith.mulf %300, %320 : vector<4x512xf32>
    %322 = vector.broadcast %319 : vector<4x1xf32> to vector<4x512xf32>
    %323 = arith.addf %321, %322 : vector<4x512xf32>
    %cst_37 = arith.constant 5.000000e-01 : f32
    %324 = vector.broadcast %cst_37 : f32 to vector<4x512xf32>
    %325 = arith.mulf %324, %323 : vector<4x512xf32>
    %cst_38 = arith.constant 0.707106769 : f32
    %326 = vector.broadcast %cst_38 : f32 to vector<4x512xf32>
    %327 = arith.mulf %323, %326 : vector<4x512xf32>
    %cst_39 = arith.constant 0.000000e+00 : f32
    %328 = vector.broadcast %cst_39 : f32 to vector<4x512xf32>
    %329 = arith.cmpf oge, %327, %328 : vector<4x512xf32>
    %cst_40 = arith.constant 1.000000e+00 : f32
    %cst_41 = arith.constant -1.000000e+00 : f32
    %330 = vector.broadcast %cst_40 : f32 to vector<4x512xf32>
    %331 = vector.broadcast %cst_41 : f32 to vector<4x512xf32>
    %332 = arith.select %329, %330, %331 : vector<4x512xi1>, vector<4x512xf32>
    %333 = math.absf %327 : vector<4x512xf32>
    %cst_42 = arith.constant 0.327591091 : f32
    %334 = vector.broadcast %cst_42 : f32 to vector<4x512xf32>
    %335 = arith.mulf %334, %333 : vector<4x512xf32>
    %cst_43 = arith.constant 1.000000e+00 : f32
    %336 = vector.broadcast %cst_43 : f32 to vector<4x512xf32>
    %337 = arith.addf %336, %335 : vector<4x512xf32>
    %cst_44 = arith.constant 1.000000e+00 : f32
    %338 = vector.broadcast %cst_44 : f32 to vector<4x512xf32>
    %339 = arith.divf %338, %337 : vector<4x512xf32>
    %cst_45 = arith.constant 1.06140542 : f32
    %340 = vector.broadcast %cst_45 : f32 to vector<4x512xf32>
    %341 = arith.mulf %339, %340 : vector<4x512xf32>
    %cst_46 = arith.constant -1.45315206 : f32
    %342 = vector.broadcast %cst_46 : f32 to vector<4x512xf32>
    %343 = arith.addf %342, %341 : vector<4x512xf32>
    %344 = arith.mulf %339, %343 : vector<4x512xf32>
    %cst_47 = arith.constant 1.42141378 : f32
    %345 = vector.broadcast %cst_47 : f32 to vector<4x512xf32>
    %346 = arith.addf %345, %344 : vector<4x512xf32>
    %347 = arith.mulf %339, %346 : vector<4x512xf32>
    %cst_48 = arith.constant -0.284496725 : f32
    %348 = vector.broadcast %cst_48 : f32 to vector<4x512xf32>
    %349 = arith.addf %348, %347 : vector<4x512xf32>
    %350 = arith.mulf %339, %349 : vector<4x512xf32>
    %cst_49 = arith.constant 0.254829586 : f32
    %351 = vector.broadcast %cst_49 : f32 to vector<4x512xf32>
    %352 = arith.addf %351, %350 : vector<4x512xf32>
    %353 = arith.mulf %339, %352 : vector<4x512xf32>
    %cst_50 = arith.constant 0.000000e+00 : f32
    %354 = vector.broadcast %cst_50 : f32 to vector<4x512xf32>
    %355 = arith.subf %354, %333 : vector<4x512xf32>
    %356 = arith.mulf %355, %333 : vector<4x512xf32>
    %357 = math.exp %356 : vector<4x512xf32>
    %358 = arith.mulf %353, %357 : vector<4x512xf32>
    %cst_51 = arith.constant 1.000000e+00 : f32
    %359 = vector.broadcast %cst_51 : f32 to vector<4x512xf32>
    %360 = arith.subf %359, %358 : vector<4x512xf32>
    %361 = arith.mulf %332, %360 : vector<4x512xf32>
    %cst_52 = arith.constant 1.000000e+00 : f32
    %362 = vector.broadcast %cst_52 : f32 to vector<4x512xf32>
    %363 = arith.addf %362, %361 : vector<4x512xf32>
    %364 = arith.mulf %325, %363 : vector<4x512xf32>
    %c0_53 = arith.constant 0 : index
    %c0_54 = arith.constant 0 : index
    %365 = vector.load %arg3[%c0_53, %c0_54] : memref<4x36xf32, #tpu.memory_space<vmem>>, vector<4x36xf32>
    %cst_55 = arith.constant 0.000000e+00 : f32
    %366 = vector.broadcast %cst_55 : f32 to vector<4x512xf32>
    %c17_i32_56 = arith.constant 17 : i32
    %367 = tpu.dynamic_rotate %364 by %c17_i32_56 dim 1 : vector<4x512xf32>, i32 -> vector<4x512xf32>
    %cst_57 = arith.constant 0.000000e+00 : f32
    %368 = vector.shape_cast %39 : vector<1x512xi1> to vector<1x512xi1>
    %369 = vector.broadcast %368 : vector<1x512xi1> to vector<4x512xi1>
    %370 = vector.broadcast %cst_57 : f32 to vector<4x512xf32>
    %371 = arith.select %369, %367, %370 : vector<4x512xi1>, vector<4x512xf32>
    %372 = vector.extract_strided_slice %371 {offsets = [0, 0], sizes = [1, 512], strides = [1, 1]} : vector<4x512xf32> to vector<1x512xf32>
    %373 = vector.extract_strided_slice %365 {offsets = [0, 0], sizes = [4, 1], strides = [1, 1]} : vector<4x36xf32> to vector<4x1xf32>
    %374 = vector.broadcast %372 : vector<1x512xf32> to vector<4x512xf32>
    %375 = vector.broadcast %373 : vector<4x1xf32> to vector<4x512xf32>
    %376 = arith.mulf %374, %375 : vector<4x512xf32>
    %377 = arith.addf %366, %376 : vector<4x512xf32>
    %378 = vector.extract_strided_slice %371 {offsets = [1, 0], sizes = [1, 512], strides = [1, 1]} : vector<4x512xf32> to vector<1x512xf32>
    %379 = vector.extract_strided_slice %365 {offsets = [0, 9], sizes = [4, 1], strides = [1, 1]} : vector<4x36xf32> to vector<4x1xf32>
    %380 = vector.broadcast %378 : vector<1x512xf32> to vector<4x512xf32>
    %381 = vector.broadcast %379 : vector<4x1xf32> to vector<4x512xf32>
    %382 = arith.mulf %380, %381 : vector<4x512xf32>
    %383 = arith.addf %377, %382 : vector<4x512xf32>
    %384 = vector.extract_strided_slice %371 {offsets = [2, 0], sizes = [1, 512], strides = [1, 1]} : vector<4x512xf32> to vector<1x512xf32>
    %385 = vector.extract_strided_slice %365 {offsets = [0, 18], sizes = [4, 1], strides = [1, 1]} : vector<4x36xf32> to vector<4x1xf32>
    %386 = vector.broadcast %384 : vector<1x512xf32> to vector<4x512xf32>
    %387 = vector.broadcast %385 : vector<4x1xf32> to vector<4x512xf32>
    %388 = arith.mulf %386, %387 : vector<4x512xf32>
    %389 = arith.addf %383, %388 : vector<4x512xf32>
    %390 = vector.extract_strided_slice %371 {offsets = [3, 0], sizes = [1, 512], strides = [1, 1]} : vector<4x512xf32> to vector<1x512xf32>
    %391 = vector.extract_strided_slice %365 {offsets = [0, 27], sizes = [4, 1], strides = [1, 1]} : vector<4x36xf32> to vector<4x1xf32>
    %392 = vector.broadcast %390 : vector<1x512xf32> to vector<4x512xf32>
    %393 = vector.broadcast %391 : vector<4x1xf32> to vector<4x512xf32>
    %394 = arith.mulf %392, %393 : vector<4x512xf32>
    %395 = arith.addf %389, %394 : vector<4x512xf32>
    %c16_i32_58 = arith.constant 16 : i32
    %396 = tpu.dynamic_rotate %364 by %c16_i32_58 dim 1 : vector<4x512xf32>, i32 -> vector<4x512xf32>
    %cst_59 = arith.constant 0.000000e+00 : f32
    %397 = vector.shape_cast %11 : vector<1x512xi1> to vector<1x512xi1>
    %398 = vector.broadcast %397 : vector<1x512xi1> to vector<4x512xi1>
    %399 = vector.broadcast %cst_59 : f32 to vector<4x512xf32>
    %400 = arith.select %398, %396, %399 : vector<4x512xi1>, vector<4x512xf32>
    %401 = vector.extract_strided_slice %400 {offsets = [0, 0], sizes = [1, 512], strides = [1, 1]} : vector<4x512xf32> to vector<1x512xf32>
    %402 = vector.extract_strided_slice %365 {offsets = [0, 1], sizes = [4, 1], strides = [1, 1]} : vector<4x36xf32> to vector<4x1xf32>
    %403 = vector.broadcast %401 : vector<1x512xf32> to vector<4x512xf32>
    %404 = vector.broadcast %402 : vector<4x1xf32> to vector<4x512xf32>
    %405 = arith.mulf %403, %404 : vector<4x512xf32>
    %406 = arith.addf %395, %405 : vector<4x512xf32>
    %407 = vector.extract_strided_slice %400 {offsets = [1, 0], sizes = [1, 512], strides = [1, 1]} : vector<4x512xf32> to vector<1x512xf32>
    %408 = vector.extract_strided_slice %365 {offsets = [0, 10], sizes = [4, 1], strides = [1, 1]} : vector<4x36xf32> to vector<4x1xf32>
    %409 = vector.broadcast %407 : vector<1x512xf32> to vector<4x512xf32>
    %410 = vector.broadcast %408 : vector<4x1xf32> to vector<4x512xf32>
    %411 = arith.mulf %409, %410 : vector<4x512xf32>
    %412 = arith.addf %406, %411 : vector<4x512xf32>
    %413 = vector.extract_strided_slice %400 {offsets = [2, 0], sizes = [1, 512], strides = [1, 1]} : vector<4x512xf32> to vector<1x512xf32>
    %414 = vector.extract_strided_slice %365 {offsets = [0, 19], sizes = [4, 1], strides = [1, 1]} : vector<4x36xf32> to vector<4x1xf32>
    %415 = vector.broadcast %413 : vector<1x512xf32> to vector<4x512xf32>
    %416 = vector.broadcast %414 : vector<4x1xf32> to vector<4x512xf32>
    %417 = arith.mulf %415, %416 : vector<4x512xf32>
    %418 = arith.addf %412, %417 : vector<4x512xf32>
    %419 = vector.extract_strided_slice %400 {offsets = [3, 0], sizes = [1, 512], strides = [1, 1]} : vector<4x512xf32> to vector<1x512xf32>
    %420 = vector.extract_strided_slice %365 {offsets = [0, 28], sizes = [4, 1], strides = [1, 1]} : vector<4x36xf32> to vector<4x1xf32>
    %421 = vector.broadcast %419 : vector<1x512xf32> to vector<4x512xf32>
    %422 = vector.broadcast %420 : vector<4x1xf32> to vector<4x512xf32>
    %423 = arith.mulf %421, %422 : vector<4x512xf32>
    %424 = arith.addf %418, %423 : vector<4x512xf32>
    %c15_i32_60 = arith.constant 15 : i32
    %425 = tpu.dynamic_rotate %364 by %c15_i32_60 dim 1 : vector<4x512xf32>, i32 -> vector<4x512xf32>
    %cst_61 = arith.constant 0.000000e+00 : f32
    %426 = vector.shape_cast %40 : vector<1x512xi1> to vector<1x512xi1>
    %427 = vector.broadcast %426 : vector<1x512xi1> to vector<4x512xi1>
    %428 = vector.broadcast %cst_61 : f32 to vector<4x512xf32>
    %429 = arith.select %427, %425, %428 : vector<4x512xi1>, vector<4x512xf32>
    %430 = vector.extract_strided_slice %429 {offsets = [0, 0], sizes = [1, 512], strides = [1, 1]} : vector<4x512xf32> to vector<1x512xf32>
    %431 = vector.extract_strided_slice %365 {offsets = [0, 2], sizes = [4, 1], strides = [1, 1]} : vector<4x36xf32> to vector<4x1xf32>
    %432 = vector.broadcast %430 : vector<1x512xf32> to vector<4x512xf32>
    %433 = vector.broadcast %431 : vector<4x1xf32> to vector<4x512xf32>
    %434 = arith.mulf %432, %433 : vector<4x512xf32>
    %435 = arith.addf %424, %434 : vector<4x512xf32>
    %436 = vector.extract_strided_slice %429 {offsets = [1, 0], sizes = [1, 512], strides = [1, 1]} : vector<4x512xf32> to vector<1x512xf32>
    %437 = vector.extract_strided_slice %365 {offsets = [0, 11], sizes = [4, 1], strides = [1, 1]} : vector<4x36xf32> to vector<4x1xf32>
    %438 = vector.broadcast %436 : vector<1x512xf32> to vector<4x512xf32>
    %439 = vector.broadcast %437 : vector<4x1xf32> to vector<4x512xf32>
    %440 = arith.mulf %438, %439 : vector<4x512xf32>
    %441 = arith.addf %435, %440 : vector<4x512xf32>
    %442 = vector.extract_strided_slice %429 {offsets = [2, 0], sizes = [1, 512], strides = [1, 1]} : vector<4x512xf32> to vector<1x512xf32>
    %443 = vector.extract_strided_slice %365 {offsets = [0, 20], sizes = [4, 1], strides = [1, 1]} : vector<4x36xf32> to vector<4x1xf32>
    %444 = vector.broadcast %442 : vector<1x512xf32> to vector<4x512xf32>
    %445 = vector.broadcast %443 : vector<4x1xf32> to vector<4x512xf32>
    %446 = arith.mulf %444, %445 : vector<4x512xf32>
    %447 = arith.addf %441, %446 : vector<4x512xf32>
    %448 = vector.extract_strided_slice %429 {offsets = [3, 0], sizes = [1, 512], strides = [1, 1]} : vector<4x512xf32> to vector<1x512xf32>
    %449 = vector.extract_strided_slice %365 {offsets = [0, 29], sizes = [4, 1], strides = [1, 1]} : vector<4x36xf32> to vector<4x1xf32>
    %450 = vector.broadcast %448 : vector<1x512xf32> to vector<4x512xf32>
    %451 = vector.broadcast %449 : vector<4x1xf32> to vector<4x512xf32>
    %452 = arith.mulf %450, %451 : vector<4x512xf32>
    %453 = arith.addf %447, %452 : vector<4x512xf32>
    %c1_i32_62 = arith.constant 1 : i32
    %454 = tpu.dynamic_rotate %364 by %c1_i32_62 dim 1 : vector<4x512xf32>, i32 -> vector<4x512xf32>
    %cst_63 = arith.constant 0.000000e+00 : f32
    %455 = vector.shape_cast %29 : vector<1x512xi1> to vector<1x512xi1>
    %456 = vector.broadcast %455 : vector<1x512xi1> to vector<4x512xi1>
    %457 = vector.broadcast %cst_63 : f32 to vector<4x512xf32>
    %458 = arith.select %456, %454, %457 : vector<4x512xi1>, vector<4x512xf32>
    %459 = vector.extract_strided_slice %458 {offsets = [0, 0], sizes = [1, 512], strides = [1, 1]} : vector<4x512xf32> to vector<1x512xf32>
    %460 = vector.extract_strided_slice %365 {offsets = [0, 3], sizes = [4, 1], strides = [1, 1]} : vector<4x36xf32> to vector<4x1xf32>
    %461 = vector.broadcast %459 : vector<1x512xf32> to vector<4x512xf32>
    %462 = vector.broadcast %460 : vector<4x1xf32> to vector<4x512xf32>
    %463 = arith.mulf %461, %462 : vector<4x512xf32>
    %464 = arith.addf %453, %463 : vector<4x512xf32>
    %465 = vector.extract_strided_slice %458 {offsets = [1, 0], sizes = [1, 512], strides = [1, 1]} : vector<4x512xf32> to vector<1x512xf32>
    %466 = vector.extract_strided_slice %365 {offsets = [0, 12], sizes = [4, 1], strides = [1, 1]} : vector<4x36xf32> to vector<4x1xf32>
    %467 = vector.broadcast %465 : vector<1x512xf32> to vector<4x512xf32>
    %468 = vector.broadcast %466 : vector<4x1xf32> to vector<4x512xf32>
    %469 = arith.mulf %467, %468 : vector<4x512xf32>
    %470 = arith.addf %464, %469 : vector<4x512xf32>
    %471 = vector.extract_strided_slice %458 {offsets = [2, 0], sizes = [1, 512], strides = [1, 1]} : vector<4x512xf32> to vector<1x512xf32>
    %472 = vector.extract_strided_slice %365 {offsets = [0, 21], sizes = [4, 1], strides = [1, 1]} : vector<4x36xf32> to vector<4x1xf32>
    %473 = vector.broadcast %471 : vector<1x512xf32> to vector<4x512xf32>
    %474 = vector.broadcast %472 : vector<4x1xf32> to vector<4x512xf32>
    %475 = arith.mulf %473, %474 : vector<4x512xf32>
    %476 = arith.addf %470, %475 : vector<4x512xf32>
    %477 = vector.extract_strided_slice %458 {offsets = [3, 0], sizes = [1, 512], strides = [1, 1]} : vector<4x512xf32> to vector<1x512xf32>
    %478 = vector.extract_strided_slice %365 {offsets = [0, 30], sizes = [4, 1], strides = [1, 1]} : vector<4x36xf32> to vector<4x1xf32>
    %479 = vector.broadcast %477 : vector<1x512xf32> to vector<4x512xf32>
    %480 = vector.broadcast %478 : vector<4x1xf32> to vector<4x512xf32>
    %481 = arith.mulf %479, %480 : vector<4x512xf32>
    %482 = arith.addf %476, %481 : vector<4x512xf32>
    %483 = vector.extract_strided_slice %364 {offsets = [0, 0], sizes = [1, 512], strides = [1, 1]} : vector<4x512xf32> to vector<1x512xf32>
    %484 = vector.extract_strided_slice %365 {offsets = [0, 4], sizes = [4, 1], strides = [1, 1]} : vector<4x36xf32> to vector<4x1xf32>
    %485 = vector.broadcast %483 : vector<1x512xf32> to vector<4x512xf32>
    %486 = vector.broadcast %484 : vector<4x1xf32> to vector<4x512xf32>
    %487 = arith.mulf %485, %486 : vector<4x512xf32>
    %488 = arith.addf %482, %487 : vector<4x512xf32>
    %489 = vector.extract_strided_slice %364 {offsets = [1, 0], sizes = [1, 512], strides = [1, 1]} : vector<4x512xf32> to vector<1x512xf32>
    %490 = vector.extract_strided_slice %365 {offsets = [0, 13], sizes = [4, 1], strides = [1, 1]} : vector<4x36xf32> to vector<4x1xf32>
    %491 = vector.broadcast %489 : vector<1x512xf32> to vector<4x512xf32>
    %492 = vector.broadcast %490 : vector<4x1xf32> to vector<4x512xf32>
    %493 = arith.mulf %491, %492 : vector<4x512xf32>
    %494 = arith.addf %488, %493 : vector<4x512xf32>
    %495 = vector.extract_strided_slice %364 {offsets = [2, 0], sizes = [1, 512], strides = [1, 1]} : vector<4x512xf32> to vector<1x512xf32>
    %496 = vector.extract_strided_slice %365 {offsets = [0, 22], sizes = [4, 1], strides = [1, 1]} : vector<4x36xf32> to vector<4x1xf32>
    %497 = vector.broadcast %495 : vector<1x512xf32> to vector<4x512xf32>
    %498 = vector.broadcast %496 : vector<4x1xf32> to vector<4x512xf32>
    %499 = arith.mulf %497, %498 : vector<4x512xf32>
    %500 = arith.addf %494, %499 : vector<4x512xf32>
    %501 = vector.extract_strided_slice %364 {offsets = [3, 0], sizes = [1, 512], strides = [1, 1]} : vector<4x512xf32> to vector<1x512xf32>
    %502 = vector.extract_strided_slice %365 {offsets = [0, 31], sizes = [4, 1], strides = [1, 1]} : vector<4x36xf32> to vector<4x1xf32>
    %503 = vector.broadcast %501 : vector<1x512xf32> to vector<4x512xf32>
    %504 = vector.broadcast %502 : vector<4x1xf32> to vector<4x512xf32>
    %505 = arith.mulf %503, %504 : vector<4x512xf32>
    %506 = arith.addf %500, %505 : vector<4x512xf32>
    %c511_i32_64 = arith.constant 511 : i32
    %507 = tpu.dynamic_rotate %364 by %c511_i32_64 dim 1 : vector<4x512xf32>, i32 -> vector<4x512xf32>
    %cst_65 = arith.constant 0.000000e+00 : f32
    %508 = vector.shape_cast %38 : vector<1x512xi1> to vector<1x512xi1>
    %509 = vector.broadcast %508 : vector<1x512xi1> to vector<4x512xi1>
    %510 = vector.broadcast %cst_65 : f32 to vector<4x512xf32>
    %511 = arith.select %509, %507, %510 : vector<4x512xi1>, vector<4x512xf32>
    %512 = vector.extract_strided_slice %511 {offsets = [0, 0], sizes = [1, 512], strides = [1, 1]} : vector<4x512xf32> to vector<1x512xf32>
    %513 = vector.extract_strided_slice %365 {offsets = [0, 5], sizes = [4, 1], strides = [1, 1]} : vector<4x36xf32> to vector<4x1xf32>
    %514 = vector.broadcast %512 : vector<1x512xf32> to vector<4x512xf32>
    %515 = vector.broadcast %513 : vector<4x1xf32> to vector<4x512xf32>
    %516 = arith.mulf %514, %515 : vector<4x512xf32>
    %517 = arith.addf %506, %516 : vector<4x512xf32>
    %518 = vector.extract_strided_slice %511 {offsets = [1, 0], sizes = [1, 512], strides = [1, 1]} : vector<4x512xf32> to vector<1x512xf32>
    %519 = vector.extract_strided_slice %365 {offsets = [0, 14], sizes = [4, 1], strides = [1, 1]} : vector<4x36xf32> to vector<4x1xf32>
    %520 = vector.broadcast %518 : vector<1x512xf32> to vector<4x512xf32>
    %521 = vector.broadcast %519 : vector<4x1xf32> to vector<4x512xf32>
    %522 = arith.mulf %520, %521 : vector<4x512xf32>
    %523 = arith.addf %517, %522 : vector<4x512xf32>
    %524 = vector.extract_strided_slice %511 {offsets = [2, 0], sizes = [1, 512], strides = [1, 1]} : vector<4x512xf32> to vector<1x512xf32>
    %525 = vector.extract_strided_slice %365 {offsets = [0, 23], sizes = [4, 1], strides = [1, 1]} : vector<4x36xf32> to vector<4x1xf32>
    %526 = vector.broadcast %524 : vector<1x512xf32> to vector<4x512xf32>
    %527 = vector.broadcast %525 : vector<4x1xf32> to vector<4x512xf32>
    %528 = arith.mulf %526, %527 : vector<4x512xf32>
    %529 = arith.addf %523, %528 : vector<4x512xf32>
    %530 = vector.extract_strided_slice %511 {offsets = [3, 0], sizes = [1, 512], strides = [1, 1]} : vector<4x512xf32> to vector<1x512xf32>
    %531 = vector.extract_strided_slice %365 {offsets = [0, 32], sizes = [4, 1], strides = [1, 1]} : vector<4x36xf32> to vector<4x1xf32>
    %532 = vector.broadcast %530 : vector<1x512xf32> to vector<4x512xf32>
    %533 = vector.broadcast %531 : vector<4x1xf32> to vector<4x512xf32>
    %534 = arith.mulf %532, %533 : vector<4x512xf32>
    %535 = arith.addf %529, %534 : vector<4x512xf32>
    %c497_i32_66 = arith.constant 497 : i32
    %536 = tpu.dynamic_rotate %364 by %c497_i32_66 dim 1 : vector<4x512xf32>, i32 -> vector<4x512xf32>
    %cst_67 = arith.constant 0.000000e+00 : f32
    %537 = vector.shape_cast %41 : vector<1x512xi1> to vector<1x512xi1>
    %538 = vector.broadcast %537 : vector<1x512xi1> to vector<4x512xi1>
    %539 = vector.broadcast %cst_67 : f32 to vector<4x512xf32>
    %540 = arith.select %538, %536, %539 : vector<4x512xi1>, vector<4x512xf32>
    %541 = vector.extract_strided_slice %540 {offsets = [0, 0], sizes = [1, 512], strides = [1, 1]} : vector<4x512xf32> to vector<1x512xf32>
    %542 = vector.extract_strided_slice %365 {offsets = [0, 6], sizes = [4, 1], strides = [1, 1]} : vector<4x36xf32> to vector<4x1xf32>
    %543 = vector.broadcast %541 : vector<1x512xf32> to vector<4x512xf32>
    %544 = vector.broadcast %542 : vector<4x1xf32> to vector<4x512xf32>
    %545 = arith.mulf %543, %544 : vector<4x512xf32>
    %546 = arith.addf %535, %545 : vector<4x512xf32>
    %547 = vector.extract_strided_slice %540 {offsets = [1, 0], sizes = [1, 512], strides = [1, 1]} : vector<4x512xf32> to vector<1x512xf32>
    %548 = vector.extract_strided_slice %365 {offsets = [0, 15], sizes = [4, 1], strides = [1, 1]} : vector<4x36xf32> to vector<4x1xf32>
    %549 = vector.broadcast %547 : vector<1x512xf32> to vector<4x512xf32>
    %550 = vector.broadcast %548 : vector<4x1xf32> to vector<4x512xf32>
    %551 = arith.mulf %549, %550 : vector<4x512xf32>
    %552 = arith.addf %546, %551 : vector<4x512xf32>
    %553 = vector.extract_strided_slice %540 {offsets = [2, 0], sizes = [1, 512], strides = [1, 1]} : vector<4x512xf32> to vector<1x512xf32>
    %554 = vector.extract_strided_slice %365 {offsets = [0, 24], sizes = [4, 1], strides = [1, 1]} : vector<4x36xf32> to vector<4x1xf32>
    %555 = vector.broadcast %553 : vector<1x512xf32> to vector<4x512xf32>
    %556 = vector.broadcast %554 : vector<4x1xf32> to vector<4x512xf32>
    %557 = arith.mulf %555, %556 : vector<4x512xf32>
    %558 = arith.addf %552, %557 : vector<4x512xf32>
    %559 = vector.extract_strided_slice %540 {offsets = [3, 0], sizes = [1, 512], strides = [1, 1]} : vector<4x512xf32> to vector<1x512xf32>
    %560 = vector.extract_strided_slice %365 {offsets = [0, 33], sizes = [4, 1], strides = [1, 1]} : vector<4x36xf32> to vector<4x1xf32>
    %561 = vector.broadcast %559 : vector<1x512xf32> to vector<4x512xf32>
    %562 = vector.broadcast %560 : vector<4x1xf32> to vector<4x512xf32>
    %563 = arith.mulf %561, %562 : vector<4x512xf32>
    %564 = arith.addf %558, %563 : vector<4x512xf32>
    %c496_i32_68 = arith.constant 496 : i32
    %565 = tpu.dynamic_rotate %364 by %c496_i32_68 dim 1 : vector<4x512xf32>, i32 -> vector<4x512xf32>
    %cst_69 = arith.constant 0.000000e+00 : f32
    %566 = vector.shape_cast %20 : vector<1x512xi1> to vector<1x512xi1>
    %567 = vector.broadcast %566 : vector<1x512xi1> to vector<4x512xi1>
    %568 = vector.broadcast %cst_69 : f32 to vector<4x512xf32>
    %569 = arith.select %567, %565, %568 : vector<4x512xi1>, vector<4x512xf32>
    %570 = vector.extract_strided_slice %569 {offsets = [0, 0], sizes = [1, 512], strides = [1, 1]} : vector<4x512xf32> to vector<1x512xf32>
    %571 = vector.extract_strided_slice %365 {offsets = [0, 7], sizes = [4, 1], strides = [1, 1]} : vector<4x36xf32> to vector<4x1xf32>
    %572 = vector.broadcast %570 : vector<1x512xf32> to vector<4x512xf32>
    %573 = vector.broadcast %571 : vector<4x1xf32> to vector<4x512xf32>
    %574 = arith.mulf %572, %573 : vector<4x512xf32>
    %575 = arith.addf %564, %574 : vector<4x512xf32>
    %576 = vector.extract_strided_slice %569 {offsets = [1, 0], sizes = [1, 512], strides = [1, 1]} : vector<4x512xf32> to vector<1x512xf32>
    %577 = vector.extract_strided_slice %365 {offsets = [0, 16], sizes = [4, 1], strides = [1, 1]} : vector<4x36xf32> to vector<4x1xf32>
    %578 = vector.broadcast %576 : vector<1x512xf32> to vector<4x512xf32>
    %579 = vector.broadcast %577 : vector<4x1xf32> to vector<4x512xf32>
    %580 = arith.mulf %578, %579 : vector<4x512xf32>
    %581 = arith.addf %575, %580 : vector<4x512xf32>
    %582 = vector.extract_strided_slice %569 {offsets = [2, 0], sizes = [1, 512], strides = [1, 1]} : vector<4x512xf32> to vector<1x512xf32>
    %583 = vector.extract_strided_slice %365 {offsets = [0, 25], sizes = [4, 1], strides = [1, 1]} : vector<4x36xf32> to vector<4x1xf32>
    %584 = vector.broadcast %582 : vector<1x512xf32> to vector<4x512xf32>
    %585 = vector.broadcast %583 : vector<4x1xf32> to vector<4x512xf32>
    %586 = arith.mulf %584, %585 : vector<4x512xf32>
    %587 = arith.addf %581, %586 : vector<4x512xf32>
    %588 = vector.extract_strided_slice %569 {offsets = [3, 0], sizes = [1, 512], strides = [1, 1]} : vector<4x512xf32> to vector<1x512xf32>
    %589 = vector.extract_strided_slice %365 {offsets = [0, 34], sizes = [4, 1], strides = [1, 1]} : vector<4x36xf32> to vector<4x1xf32>
    %590 = vector.broadcast %588 : vector<1x512xf32> to vector<4x512xf32>
    %591 = vector.broadcast %589 : vector<4x1xf32> to vector<4x512xf32>
    %592 = arith.mulf %590, %591 : vector<4x512xf32>
    %593 = arith.addf %587, %592 : vector<4x512xf32>
    %c495_i32_70 = arith.constant 495 : i32
    %594 = tpu.dynamic_rotate %364 by %c495_i32_70 dim 1 : vector<4x512xf32>, i32 -> vector<4x512xf32>
    %cst_71 = arith.constant 0.000000e+00 : f32
    %595 = vector.shape_cast %42 : vector<1x512xi1> to vector<1x512xi1>
    %596 = vector.broadcast %595 : vector<1x512xi1> to vector<4x512xi1>
    %597 = vector.broadcast %cst_71 : f32 to vector<4x512xf32>
    %598 = arith.select %596, %594, %597 : vector<4x512xi1>, vector<4x512xf32>
    %599 = vector.extract_strided_slice %598 {offsets = [0, 0], sizes = [1, 512], strides = [1, 1]} : vector<4x512xf32> to vector<1x512xf32>
    %600 = vector.extract_strided_slice %365 {offsets = [0, 8], sizes = [4, 1], strides = [1, 1]} : vector<4x36xf32> to vector<4x1xf32>
    %601 = vector.broadcast %599 : vector<1x512xf32> to vector<4x512xf32>
    %602 = vector.broadcast %600 : vector<4x1xf32> to vector<4x512xf32>
    %603 = arith.mulf %601, %602 : vector<4x512xf32>
    %604 = arith.addf %593, %603 : vector<4x512xf32>
    %605 = vector.extract_strided_slice %598 {offsets = [1, 0], sizes = [1, 512], strides = [1, 1]} : vector<4x512xf32> to vector<1x512xf32>
    %606 = vector.extract_strided_slice %365 {offsets = [0, 17], sizes = [4, 1], strides = [1, 1]} : vector<4x36xf32> to vector<4x1xf32>
    %607 = vector.broadcast %605 : vector<1x512xf32> to vector<4x512xf32>
    %608 = vector.broadcast %606 : vector<4x1xf32> to vector<4x512xf32>
    %609 = arith.mulf %607, %608 : vector<4x512xf32>
    %610 = arith.addf %604, %609 : vector<4x512xf32>
    %611 = vector.extract_strided_slice %598 {offsets = [2, 0], sizes = [1, 512], strides = [1, 1]} : vector<4x512xf32> to vector<1x512xf32>
    %612 = vector.extract_strided_slice %365 {offsets = [0, 26], sizes = [4, 1], strides = [1, 1]} : vector<4x36xf32> to vector<4x1xf32>
    %613 = vector.broadcast %611 : vector<1x512xf32> to vector<4x512xf32>
    %614 = vector.broadcast %612 : vector<4x1xf32> to vector<4x512xf32>
    %615 = arith.mulf %613, %614 : vector<4x512xf32>
    %616 = arith.addf %610, %615 : vector<4x512xf32>
    %617 = vector.extract_strided_slice %598 {offsets = [3, 0], sizes = [1, 512], strides = [1, 1]} : vector<4x512xf32> to vector<1x512xf32>
    %618 = vector.extract_strided_slice %365 {offsets = [0, 35], sizes = [4, 1], strides = [1, 1]} : vector<4x36xf32> to vector<4x1xf32>
    %619 = vector.broadcast %617 : vector<1x512xf32> to vector<4x512xf32>
    %620 = vector.broadcast %618 : vector<4x1xf32> to vector<4x512xf32>
    %621 = arith.mulf %619, %620 : vector<4x512xf32>
    %622 = arith.addf %616, %621 : vector<4x512xf32>
    %c0_72 = arith.constant 0 : index
    %c0_73 = arith.constant 0 : index
    %623 = vector.load %arg6[%c0_72, %c0_73] : memref<4x1xf32, #tpu.memory_space<vmem>>, vector<4x1xf32>
    %c0_74 = arith.constant 0 : index
    %c0_75 = arith.constant 0 : index
    %624 = vector.load %arg7[%c0_74, %c0_75] : memref<4x1xf32, #tpu.memory_space<vmem>>, vector<4x1xf32>
    %cst_76 = arith.constant dense<0.000000e+00> : vector<4xf32>
    %625 = vector.multi_reduction <add>, %622, %cst_76 [1] : vector<4x512xf32> to vector<4xf32>
    %626 = vector.shape_cast %625 : vector<4xf32> to vector<4x1xf32>
    %627 = arith.mulf %622, %622 : vector<4x512xf32>
    %cst_77 = arith.constant dense<0.000000e+00> : vector<4xf32>
    %628 = vector.multi_reduction <add>, %627, %cst_77 [1] : vector<4x512xf32> to vector<4xf32>
    %629 = vector.shape_cast %628 : vector<4xf32> to vector<4x1xf32>
    %cst_78 = arith.constant 0.001953125 : f32
    %630 = vector.broadcast %cst_78 : f32 to vector<4x1xf32>
    %631 = arith.mulf %626, %630 : vector<4x1xf32>
    %cst_79 = arith.constant 0.001953125 : f32
    %632 = vector.broadcast %cst_79 : f32 to vector<4x1xf32>
    %633 = arith.mulf %629, %632 : vector<4x1xf32>
    %634 = arith.mulf %631, %631 : vector<4x1xf32>
    %635 = arith.subf %633, %634 : vector<4x1xf32>
    %cst_80 = arith.constant 9.99999974E-6 : f32
    %636 = vector.broadcast %cst_80 : f32 to vector<4x1xf32>
    %637 = arith.addf %635, %636 : vector<4x1xf32>
    %638 = math.rsqrt %637 : vector<4x1xf32>
    %639 = arith.mulf %623, %638 : vector<4x1xf32>
    %640 = arith.mulf %631, %639 : vector<4x1xf32>
    %641 = arith.subf %624, %640 : vector<4x1xf32>
    %642 = vector.broadcast %639 : vector<4x1xf32> to vector<4x512xf32>
    %643 = arith.mulf %622, %642 : vector<4x512xf32>
    %644 = vector.broadcast %641 : vector<4x1xf32> to vector<4x512xf32>
    %645 = arith.addf %643, %644 : vector<4x512xf32>
    %cst_81 = arith.constant 5.000000e-01 : f32
    %646 = vector.broadcast %cst_81 : f32 to vector<4x512xf32>
    %647 = arith.mulf %646, %645 : vector<4x512xf32>
    %cst_82 = arith.constant 0.707106769 : f32
    %648 = vector.broadcast %cst_82 : f32 to vector<4x512xf32>
    %649 = arith.mulf %645, %648 : vector<4x512xf32>
    %cst_83 = arith.constant 0.000000e+00 : f32
    %650 = vector.broadcast %cst_83 : f32 to vector<4x512xf32>
    %651 = arith.cmpf oge, %649, %650 : vector<4x512xf32>
    %cst_84 = arith.constant 1.000000e+00 : f32
    %cst_85 = arith.constant -1.000000e+00 : f32
    %652 = vector.broadcast %cst_84 : f32 to vector<4x512xf32>
    %653 = vector.broadcast %cst_85 : f32 to vector<4x512xf32>
    %654 = arith.select %651, %652, %653 : vector<4x512xi1>, vector<4x512xf32>
    %655 = math.absf %649 : vector<4x512xf32>
    %cst_86 = arith.constant 0.327591091 : f32
    %656 = vector.broadcast %cst_86 : f32 to vector<4x512xf32>
    %657 = arith.mulf %656, %655 : vector<4x512xf32>
    %cst_87 = arith.constant 1.000000e+00 : f32
    %658 = vector.broadcast %cst_87 : f32 to vector<4x512xf32>
    %659 = arith.addf %658, %657 : vector<4x512xf32>
    %cst_88 = arith.constant 1.000000e+00 : f32
    %660 = vector.broadcast %cst_88 : f32 to vector<4x512xf32>
    %661 = arith.divf %660, %659 : vector<4x512xf32>
    %cst_89 = arith.constant 1.06140542 : f32
    %662 = vector.broadcast %cst_89 : f32 to vector<4x512xf32>
    %663 = arith.mulf %661, %662 : vector<4x512xf32>
    %cst_90 = arith.constant -1.45315206 : f32
    %664 = vector.broadcast %cst_90 : f32 to vector<4x512xf32>
    %665 = arith.addf %664, %663 : vector<4x512xf32>
    %666 = arith.mulf %661, %665 : vector<4x512xf32>
    %cst_91 = arith.constant 1.42141378 : f32
    %667 = vector.broadcast %cst_91 : f32 to vector<4x512xf32>
    %668 = arith.addf %667, %666 : vector<4x512xf32>
    %669 = arith.mulf %661, %668 : vector<4x512xf32>
    %cst_92 = arith.constant -0.284496725 : f32
    %670 = vector.broadcast %cst_92 : f32 to vector<4x512xf32>
    %671 = arith.addf %670, %669 : vector<4x512xf32>
    %672 = arith.mulf %661, %671 : vector<4x512xf32>
    %cst_93 = arith.constant 0.254829586 : f32
    %673 = vector.broadcast %cst_93 : f32 to vector<4x512xf32>
    %674 = arith.addf %673, %672 : vector<4x512xf32>
    %675 = arith.mulf %661, %674 : vector<4x512xf32>
    %cst_94 = arith.constant 0.000000e+00 : f32
    %676 = vector.broadcast %cst_94 : f32 to vector<4x512xf32>
    %677 = arith.subf %676, %655 : vector<4x512xf32>
    %678 = arith.mulf %677, %655 : vector<4x512xf32>
    %679 = math.exp %678 : vector<4x512xf32>
    %680 = arith.mulf %675, %679 : vector<4x512xf32>
    %cst_95 = arith.constant 1.000000e+00 : f32
    %681 = vector.broadcast %cst_95 : f32 to vector<4x512xf32>
    %682 = arith.subf %681, %680 : vector<4x512xf32>
    %683 = arith.mulf %654, %682 : vector<4x512xf32>
    %cst_96 = arith.constant 1.000000e+00 : f32
    %684 = vector.broadcast %cst_96 : f32 to vector<4x512xf32>
    %685 = arith.addf %684, %683 : vector<4x512xf32>
    %686 = arith.mulf %647, %685 : vector<4x512xf32>
    %687 = arith.addf %686, %0 : vector<4x512xf32>
    %c0_97 = arith.constant 0 : index
    %c0_98 = arith.constant 0 : index
    %688 = vector.load %arg8[%c0_97, %c0_98] : memref<4x1xf32, #tpu.memory_space<vmem>>, vector<4x1xf32>
    %c0_99 = arith.constant 0 : index
    %c0_100 = arith.constant 0 : index
    %689 = vector.load %arg9[%c0_99, %c0_100] : memref<4x1xf32, #tpu.memory_space<vmem>>, vector<4x1xf32>
    %cst_101 = arith.constant dense<0.000000e+00> : vector<4xf32>
    %690 = vector.multi_reduction <add>, %687, %cst_101 [1] : vector<4x512xf32> to vector<4xf32>
    %691 = vector.shape_cast %690 : vector<4xf32> to vector<4x1xf32>
    %692 = arith.mulf %687, %687 : vector<4x512xf32>
    %cst_102 = arith.constant dense<0.000000e+00> : vector<4xf32>
    %693 = vector.multi_reduction <add>, %692, %cst_102 [1] : vector<4x512xf32> to vector<4xf32>
    %694 = vector.shape_cast %693 : vector<4xf32> to vector<4x1xf32>
    %cst_103 = arith.constant 0.001953125 : f32
    %695 = vector.broadcast %cst_103 : f32 to vector<4x1xf32>
    %696 = arith.mulf %691, %695 : vector<4x1xf32>
    %cst_104 = arith.constant 0.001953125 : f32
    %697 = vector.broadcast %cst_104 : f32 to vector<4x1xf32>
    %698 = arith.mulf %694, %697 : vector<4x1xf32>
    %699 = arith.mulf %696, %696 : vector<4x1xf32>
    %700 = arith.subf %698, %699 : vector<4x1xf32>
    %cst_105 = arith.constant 9.99999974E-6 : f32
    %701 = vector.broadcast %cst_105 : f32 to vector<4x1xf32>
    %702 = arith.addf %700, %701 : vector<4x1xf32>
    %703 = math.rsqrt %702 : vector<4x1xf32>
    %704 = arith.mulf %688, %703 : vector<4x1xf32>
    %705 = arith.mulf %696, %704 : vector<4x1xf32>
    %706 = arith.subf %689, %705 : vector<4x1xf32>
    %707 = vector.broadcast %704 : vector<4x1xf32> to vector<4x512xf32>
    %708 = arith.mulf %687, %707 : vector<4x512xf32>
    %709 = vector.broadcast %706 : vector<4x1xf32> to vector<4x512xf32>
    %710 = arith.addf %708, %709 : vector<4x512xf32>
    %c511_i32_106 = arith.constant 511 : i32
    %711 = tpu.dynamic_rotate %0 by %c511_i32_106 dim 1 : vector<4x512xf32>, i32 -> vector<4x512xf32>
    %712 = arith.maximumf %0, %711 : vector<4x512xf32>
    %c496_i32_107 = arith.constant 496 : i32
    %713 = tpu.dynamic_rotate %712 by %c496_i32_107 dim 1 : vector<4x512xf32>, i32 -> vector<4x512xf32>
    %714 = arith.maximumf %712, %713 : vector<4x512xf32>
    %c511_i32_108 = arith.constant 511 : i32
    %715 = tpu.dynamic_rotate %710 by %c511_i32_108 dim 1 : vector<4x512xf32>, i32 -> vector<4x512xf32>
    %716 = arith.maximumf %710, %715 : vector<4x512xf32>
    %c496_i32_109 = arith.constant 496 : i32
    %717 = tpu.dynamic_rotate %716 by %c496_i32_109 dim 1 : vector<4x512xf32>, i32 -> vector<4x512xf32>
    %718 = arith.maximumf %716, %717 : vector<4x512xf32>
    %719 = arith.addf %714, %718 : vector<4x512xf32>
    %c1_i32_110 = arith.constant 1 : i32
    %720 = vector.broadcast %c1_i32_110 : i32 to vector<1x512xi32>
    %721 = arith.andi %1, %720 : vector<1x512xi32>
    %c0_i32_111 = arith.constant 0 : i32
    %722 = vector.broadcast %c0_i32_111 : i32 to vector<1x512xi32>
    %723 = arith.cmpi eq, %721, %722 : vector<1x512xi32>
    %c1_i32_112 = arith.constant 1 : i32
    %724 = vector.broadcast %c1_i32_112 : i32 to vector<1x512xi32>
    %725 = arith.andi %2, %724 : vector<1x512xi32>
    %c0_i32_113 = arith.constant 0 : i32
    %726 = vector.broadcast %c0_i32_113 : i32 to vector<1x512xi32>
    %727 = arith.cmpi eq, %725, %726 : vector<1x512xi32>
    %728 = arith.andi %723, %727 : vector<1x512xi1>
    %c0_114 = arith.constant 0 : index
    %c0_115 = arith.constant 0 : index
    %729 = vector.load %arg10[%c0_114, %c0_115] : memref<4x1xf32, #tpu.memory_space<vmem>>, vector<4x1xf32>
    %c0_116 = arith.constant 0 : index
    %c0_117 = arith.constant 0 : index
    %730 = vector.load %arg11[%c0_116, %c0_117] : memref<4x1xf32, #tpu.memory_space<vmem>>, vector<4x1xf32>
    %cst_118 = arith.constant 0.000000e+00 : f32
    %731 = vector.shape_cast %728 : vector<1x512xi1> to vector<1x512xi1>
    %732 = vector.broadcast %731 : vector<1x512xi1> to vector<4x512xi1>
    %733 = vector.broadcast %cst_118 : f32 to vector<4x512xf32>
    %734 = arith.select %732, %719, %733 : vector<4x512xi1>, vector<4x512xf32>
    %cst_119 = arith.constant dense<0.000000e+00> : vector<4xf32>
    %735 = vector.multi_reduction <add>, %734, %cst_119 [1] : vector<4x512xf32> to vector<4xf32>
    %736 = vector.shape_cast %735 : vector<4xf32> to vector<4x1xf32>
    %737 = arith.mulf %734, %734 : vector<4x512xf32>
    %cst_120 = arith.constant dense<0.000000e+00> : vector<4xf32>
    %738 = vector.multi_reduction <add>, %737, %cst_120 [1] : vector<4x512xf32> to vector<4xf32>
    %739 = vector.shape_cast %738 : vector<4xf32> to vector<4x1xf32>
    %cst_121 = arith.constant 7.812500e-03 : f32
    %740 = vector.broadcast %cst_121 : f32 to vector<4x1xf32>
    %741 = arith.mulf %736, %740 : vector<4x1xf32>
    %cst_122 = arith.constant 7.812500e-03 : f32
    %742 = vector.broadcast %cst_122 : f32 to vector<4x1xf32>
    %743 = arith.mulf %739, %742 : vector<4x1xf32>
    %744 = arith.mulf %741, %741 : vector<4x1xf32>
    %745 = arith.subf %743, %744 : vector<4x1xf32>
    %cst_123 = arith.constant 9.99999974E-6 : f32
    %746 = vector.broadcast %cst_123 : f32 to vector<4x1xf32>
    %747 = arith.addf %745, %746 : vector<4x1xf32>
    %748 = math.rsqrt %747 : vector<4x1xf32>
    %749 = arith.mulf %729, %748 : vector<4x1xf32>
    %750 = arith.mulf %741, %749 : vector<4x1xf32>
    %751 = arith.subf %730, %750 : vector<4x1xf32>
    %752 = vector.broadcast %749 : vector<4x1xf32> to vector<4x512xf32>
    %753 = arith.mulf %719, %752 : vector<4x512xf32>
    %754 = vector.broadcast %751 : vector<4x1xf32> to vector<4x512xf32>
    %755 = arith.addf %753, %754 : vector<4x512xf32>
    %c0_124 = arith.constant 0 : index
    %c0_125 = arith.constant 0 : index
    %756 = vector.load %arg12[%c0_124, %c0_125] : memref<4x512xf32, #tpu.memory_space<vmem>>, vector<4x512xf32>
    tpu.vector_store %arg12[%c0_124, %c0_125], %755 {strides = array<i32>} : memref<4x512xf32, #tpu.memory_space<vmem>>, vector<4x512xf32>,
    return
  }
}

</mosaic_0001>

<llo_original>
// kernel: tpu_custom_call.1
$region0: #{tpu_custom_call.1}
  #allocation0 [shape = 'u32[]', space=smem, size = 0x4, offset = 0x4, fixed_abs, tag = 'smem constant byte address 0x4 - core index']
  #allocation1 [shape = 'u32[144,128]{1,0:T(1,128)}', space=vmem, size = 0x12000, scoped, tag = 'internal scratch']
  %s0 = inlined_call_operand.vmem [shape: f32[4,512], index: 0, kind: input, shape index: {}]
  %s1 = inlined_call_operand.vmem [shape: s32[2,512], index: 1, kind: input, shape index: {}]
  %s2 = inlined_call_operand.vmem [shape: f32[4,36], index: 2, kind: input, shape index: {}]
  %s3 = inlined_call_operand.vmem [shape: f32[4,36], index: 3, kind: input, shape index: {}]
  %s4 = inlined_call_operand.vmem [shape: f32[4,1], index: 4, kind: input, shape index: {}]
  %s5 = inlined_call_operand.vmem [shape: f32[4,1], index: 5, kind: input, shape index: {}]
  %s6 = inlined_call_operand.vmem [shape: f32[4,1], index: 6, kind: input, shape index: {}]
  %s7 = inlined_call_operand.vmem [shape: f32[4,1], index: 7, kind: input, shape index: {}]
  %s8 = inlined_call_operand.vmem [shape: f32[4,1], index: 8, kind: input, shape index: {}]
  %s9 = inlined_call_operand.vmem [shape: f32[4,1], index: 9, kind: input, shape index: {}]
  %s10 = inlined_call_operand.vmem [shape: f32[4,1], index: 10, kind: input, shape index: {}]
  %s11 = inlined_call_operand.vmem [shape: f32[4,1], index: 11, kind: input, shape index: {}]
  %s12 = inlined_call_operand.hbm [shape: f32[4,512], index: 12, kind: output, shape index: {}]
  %s13 = sld [smem:[#allocation0]]
  $region58: #{tpu_custom_call.1} parent=0
    _
  %s15 = ssub.s32 1, %s13
  %s16 = scalar_select 0, %s15, %s13
  $region1: #{tpu_custom_call.1} parent=0
    #allocation2 [shape = 'u8[8192]{0}', space=vmem, size = 0x2000, scoped, tag = 'output window, operand 0, single buffered']
    #allocation3 [shape = 's32[1]{0}', space=sflag, size = 0x4, scoped, tag = 'scoped memory for tpu_custom_call.1']
    %17 = vsyncpa [#allocation3], 0
    // Predicated region
    $region2: #{tpu_custom_call.1} parent=1 // pred_check
      _
    $region3: #{tpu_custom_call.1} parent=1 // pred_check_branch
      %19 = sbr.rel (0) target = $region5
    $region4: #{tpu_custom_call.1} parent=1 // pred_region
      _
    $region5: #{tpu_custom_call.1} parent=1 // pred_fallthru
      _
    // Predicated region
    $region6: #{tpu_custom_call.1} parent=1 // pred_check
      _
    $region7: #{tpu_custom_call.1} parent=1 // pred_check_branch
      %21 = sbr.rel (0) target = $region9
    $region8: #{tpu_custom_call.1} parent=1 // pred_region
      _
    $region9: #{tpu_custom_call.1} parent=1 // pred_fallthru
      _
    // Predicated region
    $region10: #{tpu_custom_call.1} parent=1 // pred_check
      _
    $region11: #{tpu_custom_call.1} parent=1 // pred_check_branch
      %23 = sbr.rel (0) target = $region13
    $region12: #{tpu_custom_call.1} parent=1 // pred_region
      _
    $region13: #{tpu_custom_call.1} parent=1 // pred_fallthru
      _
    // Predicated region
    $region14: #{tpu_custom_call.1} parent=1 // pred_check
      _
    $region15: #{tpu_custom_call.1} parent=1 // pred_check_branch
      %25 = sbr.rel (0) target = $region17
    $region16: #{tpu_custom_call.1} parent=1 // pred_region
      _
    $region17: #{tpu_custom_call.1} parent=1 // pred_fallthru
      _
    // Predicated region
    $region18: #{tpu_custom_call.1} parent=1 // pred_check
      _
    $region19: #{tpu_custom_call.1} parent=1 // pred_check_branch
      %27 = sbr.rel (0) target = $region21
    $region20: #{tpu_custom_call.1} parent=1 // pred_region
      _
    $region21: #{tpu_custom_call.1} parent=1 // pred_fallthru
      _
    // Predicated region
    $region22: #{tpu_custom_call.1} parent=1 // pred_check
      _
    $region23: #{tpu_custom_call.1} parent=1 // pred_check_branch
      %29 = sbr.rel (0) target = $region25
    $region24: #{tpu_custom_call.1} parent=1 // pred_region
      _
    $region25: #{tpu_custom_call.1} parent=1 // pred_fallthru
      _
    // Predicated region
    $region26: #{tpu_custom_call.1} parent=1 // pred_check
      _
    $region27: #{tpu_custom_call.1} parent=1 // pred_check_branch
      %31 = sbr.rel (0) target = $region29
    $region28: #{tpu_custom_call.1} parent=1 // pred_region
      _
    $region29: #{tpu_custom_call.1} parent=1 // pred_fallthru
      _
    // Predicated region
    $region30: #{tpu_custom_call.1} parent=1 // pred_check
      _
    $region31: #{tpu_custom_call.1} parent=1 // pred_check_branch
      %33 = sbr.rel (0) target = $region33
    $region32: #{tpu_custom_call.1} parent=1 // pred_region
      _
    $region33: #{tpu_custom_call.1} parent=1 // pred_fallthru
      _
    // Predicated region
    $region34: #{tpu_custom_call.1} parent=1 // pred_check
      _
    $region35: #{tpu_custom_call.1} parent=1 // pred_check_branch
      %35 = sbr.rel (0) target = $region37
    $region36: #{tpu_custom_call.1} parent=1 // pred_region
      _
    $region37: #{tpu_custom_call.1} parent=1 // pred_fallthru
      _
    // Predicated region
    $region38: #{tpu_custom_call.1} parent=1 // pred_check
      _
    $region39: #{tpu_custom_call.1} parent=1 // pred_check_branch
      %37 = sbr.rel (0) target = $region41
    $region40: #{tpu_custom_call.1} parent=1 // pred_region
      _
    $region41: #{tpu_custom_call.1} parent=1 // pred_fallthru
      _
    // Predicated region
    $region42: #{tpu_custom_call.1} parent=1 // pred_check
      _
    $region43: #{tpu_custom_call.1} parent=1 // pred_check_branch
      %39 = sbr.rel (0) target = $region45
    $region44: #{tpu_custom_call.1} parent=1 // pred_region
      _
    $region45: #{tpu_custom_call.1} parent=1 // pred_fallthru
      _
    // Predicated region
    $region46: #{tpu_custom_call.1} parent=1 // pred_check
      _
    $region47: #{tpu_custom_call.1} parent=1 // pred_check_branch
      %41 = sbr.rel (0) target = $region49
    $region48: #{tpu_custom_call.1} parent=1 // pred_region
      _
    $region49: #{tpu_custom_call.1} parent=1 // pred_fallthru
      _
    %v42 = vld [vmem:[%s0] sm:$0xff]
    %v43 = vld [vmem:[%s0 + $0x8] sm:$0xff]
    %v44 = vld [vmem:[%s1] ss:$2 sm:$0xf]
    %s45 = scalar_lea.vmem %s1, 1
    %v46 = vld [vmem:[%s45] ss:$2 sm:$0xf]
    %v47 = vadd.s32 %v44, 4294967295
    %vm48 = vcmp.ge.s32.totalorder %v47, 0
    %vm49 = vcmp.lt.s32.totalorder %v47, 16
    %vm50 = vmand %vm48, %vm49
    %v51 = vadd.s32 %v44, 1
    %vm52 = vcmp.ge.s32.totalorder %v51, 0
    %vm53 = vcmp.lt.s32.totalorder %v51, 16
    %vm54 = vmand %vm52, %vm53
    %v55 = vadd.s32 %v46, 4294967295
    %vm56 = vcmp.ge.s32.totalorder %v55, 0
    %vm57 = vcmp.lt.s32.totalorder %v55, 16
    %vm58 = vmand %vm56, %vm57
    %v59 = vadd.s32 %v46, 1
    %vm60 = vcmp.ge.s32.totalorder %v59, 0
    %vm61 = vcmp.lt.s32.totalorder %v59, 16
    %vm62 = vmand %vm60, %vm61
    %vm63 = vmand %vm50, %vm58
    %vm64 = vmand %vm50, %vm62
    %vm65 = vmand %vm54, %vm58
    %vm66 = vmand %vm54, %vm62
    %v67 = vld [vmem:[%s2] sm:$0xf]
    %v70 = vcombine.high %v42, %v42
    %v71 = vcombine.high %v43, %v43
    %74 = vrot.lane.b32.xlu0 %v42, 17
    %v75 = vpop.permute.xlu0 %74
    %76 = vrot.lane.b32.xlu0 %v70, 17
    %v77 = vpop.permute.xlu0 %76
    %78 = vrot.lane.b32.xlu0 %v43, 17
    %v79 = vpop.permute.xlu0 %78
    %80 = vrot.lane.b32.xlu0 %v71, 17
    %v81 = vpop.permute.xlu0 %80
    %v82 = vlaneseq
    %v83 = vand.u32 %v82, 127
    %vm84 = vcmp.lt.s32.totalorder %v83, 17
    %v85 = vsel %vm84, %v79, %v81
    %v86 = vsel %vm84, %v77, %v79
    %v87 = vsel %vm84, %v75, %v77
    %v88 = vsel %vm84, %v81, %v75
    %v89 = vsel %vm63, 1, 0
    %v90 = vlaneseq
    %v91 = vshrl.u32 %v90, 7
    %v92 = vsub.s32 0, %v91
    %v93 = vrot.slane %v89, %v92
    %v94 = vlaneseq
    %v95 = vshrl.u32 %v94, 7
    %v96 = vsub.s32 1, %v95
    %v97 = vrot.slane %v89, %v96
    %v98 = vlaneseq
    %v99 = vshrl.u32 %v98, 7
    %v100 = vsub.s32 2, %v99
    %v101 = vrot.slane %v89, %v100
    %v102 = vlaneseq
    %v103 = vshrl.u32 %v102, 7
    %v104 = vsub.s32 3, %v103
    %v105 = vrot.slane %v89, %v104
    %vm106 = vcmp.eq.s32.totalorder %v93, 1
    %vm107 = vcmp.eq.s32.totalorder %v97, 1
    %vm108 = vcmp.eq.s32.totalorder %v101, 1
    %vm109 = vcmp.eq.s32.totalorder %v105, 1
    %v110 = vsel %vm106, %v88, 0.0
    %v111 = vsel %vm107, %v87, 0.0
    %v112 = vsel %vm108, %v86, 0.0
    %v113 = vsel %vm109, %v85, 0.0
    %v114 = vlaneseq
    %v115 = vshrl.u32 %v114, 7
    %v116 = vsub.s32 0, %v115
    %v117 = vrot.slane %v110, %v116
    %v118 = vlaneseq
    %v119 = vshrl.u32 %v118, 7
    %v120 = vsub.s32 0, %v119
    %v121 = vrot.slane %v111, %v120
    %v122 = vlaneseq
    %v123 = vshrl.u32 %v122, 7
    %v124 = vsub.s32 0, %v123
    %v125 = vrot.slane %v112, %v124
    %v126 = vlaneseq
    %v127 = vshrl.u32 %v126, 7
    %v128 = vsub.s32 0, %v127
    %v129 = vrot.slane %v113, %v128
    %131 = vset.pattern.permute.xlu0 0
    %132 = vperm.xlu0 %131, %v67
    %v133 = vpop.permute.xlu0 %132
    %v135 = vmul.f32 %v117, %v133
    %v136 = vmul.f32 %v121, %v133
    %v137 = vmul.f32 %v125, %v133
    %v138 = vmul.f32 %v129, %v133
    %v139 = vadd.f32 %v135, 0.0
    %v140 = vadd.f32 %v136, 0.0
    %v141 = vadd.f32 %v137, 0.0
    %v142 = vadd.f32 %v138, 0.0
    %v143 = vlaneseq
    %v144 = vshrl.u32 %v143, 7
    %v145 = vsub.s32 1, %v144
    %v146 = vrot.slane %v110, %v145
    %v147 = vlaneseq
    %v148 = vshrl.u32 %v147, 7
    %v149 = vsub.s32 1, %v148
    %v150 = vrot.slane %v111, %v149
    %v151 = vlaneseq
    %v152 = vshrl.u32 %v151, 7
    %v153 = vsub.s32 1, %v152
    %v154 = vrot.slane %v112, %v153
    %v155 = vlaneseq
    %v156 = vshrl.u32 %v155, 7
    %v157 = vsub.s32 1, %v156
    %v158 = vrot.slane %v113, %v157
    %159 = vset.pattern.permute.xlu0 9
    %160 = vperm.xlu0 %159, %v67
    %v161 = vpop.permute.xlu0 %160
    %v163 = vmul.f32 %v146, %v161
    %v164 = vmul.f32 %v150, %v161
    %v165 = vmul.f32 %v154, %v161
    %v166 = vmul.f32 %v158, %v161
    %v167 = vadd.f32 %v139, %v163
    %v168 = vadd.f32 %v140, %v164
    %v169 = vadd.f32 %v141, %v165
    %v170 = vadd.f32 %v142, %v166
    %v171 = vlaneseq
    %v172 = vshrl.u32 %v171, 7
    %v173 = vsub.s32 2, %v172
    %v174 = vrot.slane %v110, %v173
    %v175 = vlaneseq
    %v176 = vshrl.u32 %v175, 7
    %v177 = vsub.s32 2, %v176
    %v178 = vrot.slane %v111, %v177
    %v179 = vlaneseq
    %v180 = vshrl.u32 %v179, 7
    %v181 = vsub.s32 2, %v180
    %v182 = vrot.slane %v112, %v181
    %v183 = vlaneseq
    %v184 = vshrl.u32 %v183, 7
    %v185 = vsub.s32 2, %v184
    %v186 = vrot.slane %v113, %v185
    %187 = vset.pattern.permute.xlu0 18
    %188 = vperm.xlu0 %187, %v67
    %v189 = vpop.permute.xlu0 %188
    %v191 = vmul.f32 %v174, %v189
    %v192 = vmul.f32 %v178, %v189
    %v193 = vmul.f32 %v182, %v189
    %v194 = vmul.f32 %v186, %v189
    %v195 = vadd.f32 %v167, %v191
    %v196 = vadd.f32 %v168, %v192
    %v197 = vadd.f32 %v169, %v193
    %v198 = vadd.f32 %v170, %v194
    %v199 = vlaneseq
    %v200 = vshrl.u32 %v199, 7
    %v201 = vsub.s32 3, %v200
    %v202 = vrot.slane %v110, %v201
    %v203 = vlaneseq
    %v204 = vshrl.u32 %v203, 7
    %v205 = vsub.s32 3, %v204
    %v206 = vrot.slane %v111, %v205
    %v207 = vlaneseq
    %v208 = vshrl.u32 %v207, 7
    %v209 = vsub.s32 3, %v208
    %v210 = vrot.slane %v112, %v209
    %v211 = vlaneseq
    %v212 = vshrl.u32 %v211, 7
    %v213 = vsub.s32 3, %v212
    %v214 = vrot.slane %v113, %v213
    %215 = vset.pattern.permute.xlu0 27
    %216 = vperm.xlu0 %215, %v67
    %v217 = vpop.permute.xlu0 %216
    %v219 = vmul.f32 %v202, %v217
    %v220 = vmul.f32 %v206, %v217
    %v221 = vmul.f32 %v210, %v217
    %v222 = vmul.f32 %v214, %v217
    %v223 = vadd.f32 %v195, %v219
    %v224 = vadd.f32 %v196, %v220
    %v225 = vadd.f32 %v197, %v221
    %v226 = vadd.f32 %v198, %v222
    %227 = vrot.lane.b32.xlu0 %v42, 16
    %v228 = vpop.permute.xlu0 %227
    %229 = vrot.lane.b32.xlu0 %v70, 16
    %v230 = vpop.permute.xlu0 %229
    %231 = vrot.lane.b32.xlu0 %v43, 16
    %v232 = vpop.permute.xlu0 %231
    %233 = vrot.lane.b32.xlu0 %v71, 16
    %v234 = vpop.permute.xlu0 %233
    %vm235 = vcmp.lt.s32.totalorder %v83, 16
    %v236 = vsel %vm235, %v232, %v234
    %v237 = vsel %vm235, %v230, %v232
    %v238 = vsel %vm235, %v228, %v230
    %v239 = vsel %vm235, %v234, %v228
    %v240 = vsel %vm50, 1, 0
    %v241 = vlaneseq
    %v242 = vshrl.u32 %v241, 7
    %v243 = vsub.s32 0, %v242
    %v244 = vrot.slane %v240, %v243
    %v245 = vlaneseq
    %v246 = vshrl.u32 %v245, 7
    %v247 = vsub.s32 1, %v246
    %v248 = vrot.slane %v240, %v247
    %v249 = vlaneseq
    %v250 = vshrl.u32 %v249, 7
    %v251 = vsub.s32 2, %v250
    %v252 = vrot.slane %v240, %v251
    %v253 = vlaneseq
    %v254 = vshrl.u32 %v253, 7
    %v255 = vsub.s32 3, %v254
    %v256 = vrot.slane %v240, %v255
    %vm257 = vcmp.eq.s32.totalorder %v244, 1
    %vm258 = vcmp.eq.s32.totalorder %v248, 1
    %vm259 = vcmp.eq.s32.totalorder %v252, 1
    %vm260 = vcmp.eq.s32.totalorder %v256, 1
    %v261 = vsel %vm257, %v239, 0.0
    %v262 = vsel %vm258, %v238, 0.0
    %v263 = vsel %vm259, %v237, 0.0
    %v264 = vsel %vm260, %v236, 0.0
    %v265 = vlaneseq
    %v266 = vshrl.u32 %v265, 7
    %v267 = vsub.s32 0, %v266
    %v268 = vrot.slane %v261, %v267
    %v269 = vlaneseq
    %v270 = vshrl.u32 %v269, 7
    %v271 = vsub.s32 0, %v270
    %v272 = vrot.slane %v262, %v271
    %v273 = vlaneseq
    %v274 = vshrl.u32 %v273, 7
    %v275 = vsub.s32 0, %v274
    %v276 = vrot.slane %v263, %v275
    %v277 = vlaneseq
    %v278 = vshrl.u32 %v277, 7
    %v279 = vsub.s32 0, %v278
    %v280 = vrot.slane %v264, %v279
    %281 = vset.pattern.permute.xlu0 1
    %282 = vperm.xlu0 %281, %v67
    %v283 = vpop.permute.xlu0 %282
    %v285 = vmul.f32 %v268, %v283
    %v286 = vmul.f32 %v272, %v283
    %v287 = vmul.f32 %v276, %v283
    %v288 = vmul.f32 %v280, %v283
    %v289 = vadd.f32 %v223, %v285
    %v290 = vadd.f32 %v224, %v286
    %v291 = vadd.f32 %v225, %v287
    %v292 = vadd.f32 %v226, %v288
    %v293 = vlaneseq
    %v294 = vshrl.u32 %v293, 7
    %v295 = vsub.s32 1, %v294
    %v296 = vrot.slane %v261, %v295
    %v297 = vlaneseq
    %v298 = vshrl.u32 %v297, 7
    %v299 = vsub.s32 1, %v298
    %v300 = vrot.slane %v262, %v299
    %v301 = vlaneseq
    %v302 = vshrl.u32 %v301, 7
    %v303 = vsub.s32 1, %v302
    %v304 = vrot.slane %v263, %v303
    %v305 = vlaneseq
    %v306 = vshrl.u32 %v305, 7
    %v307 = vsub.s32 1, %v306
    %v308 = vrot.slane %v264, %v307
    %309 = vset.pattern.permute.xlu0 10
    %310 = vperm.xlu0 %309, %v67
    %v311 = vpop.permute.xlu0 %310
    %v313 = vmul.f32 %v296, %v311
    %v314 = vmul.f32 %v300, %v311
    %v315 = vmul.f32 %v304, %v311
    %v316 = vmul.f32 %v308, %v311
    %v317 = vadd.f32 %v289, %v313
    %v318 = vadd.f32 %v290, %v314
    %v319 = vadd.f32 %v291, %v315
    %v320 = vadd.f32 %v292, %v316
    %v321 = vlaneseq
    %v322 = vshrl.u32 %v321, 7
    %v323 = vsub.s32 2, %v322
    %v324 = vrot.slane %v261, %v323
    %v325 = vlaneseq
    %v326 = vshrl.u32 %v325, 7
    %v327 = vsub.s32 2, %v326
    %v328 = vrot.slane %v262, %v327
    %v329 = vlaneseq
    %v330 = vshrl.u32 %v329, 7
    %v331 = vsub.s32 2, %v330
    %v332 = vrot.slane %v263, %v331
    %v333 = vlaneseq
    %v334 = vshrl.u32 %v333, 7
    %v335 = vsub.s32 2, %v334
    %v336 = vrot.slane %v264, %v335
    %337 = vset.pattern.permute.xlu0 19
    %338 = vperm.xlu0 %337, %v67
    %v339 = vpop.permute.xlu0 %338
    %v341 = vmul.f32 %v324, %v339
    %v342 = vmul.f32 %v328, %v339
    %v343 = vmul.f32 %v332, %v339
    %v344 = vmul.f32 %v336, %v339
    %v345 = vadd.f32 %v317, %v341
    %v346 = vadd.f32 %v318, %v342
    %v347 = vadd.f32 %v319, %v343
    %v348 = vadd.f32 %v320, %v344
    %v349 = vlaneseq
    %v350 = vshrl.u32 %v349, 7
    %v351 = vsub.s32 3, %v350
    %v352 = vrot.slane %v261, %v351
    %v353 = vlaneseq
    %v354 = vshrl.u32 %v353, 7
    %v355 = vsub.s32 3, %v354
    %v356 = vrot.slane %v262, %v355
    %v357 = vlaneseq
    %v358 = vshrl.u32 %v357, 7
    %v359 = vsub.s32 3, %v358
    %v360 = vrot.slane %v263, %v359
    %v361 = vlaneseq
    %v362 = vshrl.u32 %v361, 7
    %v363 = vsub.s32 3, %v362
    %v364 = vrot.slane %v264, %v363
    %365 = vset.pattern.permute.xlu0 28
    %366 = vperm.xlu0 %365, %v67
    %v367 = vpop.permute.xlu0 %366
    %v369 = vmul.f32 %v352, %v367
    %v370 = vmul.f32 %v356, %v367
    %v371 = vmul.f32 %v360, %v367
    %v372 = vmul.f32 %v364, %v367
    %v373 = vadd.f32 %v345, %v369
    %v374 = vadd.f32 %v346, %v370
    %v375 = vadd.f32 %v347, %v371
    %v376 = vadd.f32 %v348, %v372
    %377 = vrot.lane.b32.xlu0 %v42, 15
    %v378 = vpop.permute.xlu0 %377
    %379 = vrot.lane.b32.xlu0 %v70, 15
    %v380 = vpop.permute.xlu0 %379
    %381 = vrot.lane.b32.xlu0 %v43, 15
    %v382 = vpop.permute.xlu0 %381
    %383 = vrot.lane.b32.xlu0 %v71, 15
    %v384 = vpop.permute.xlu0 %383
    %vm385 = vcmp.lt.s32.totalorder %v83, 15
    %v386 = vsel %vm385, %v382, %v384
    %v387 = vsel %vm385, %v380, %v382
    %v388 = vsel %vm385, %v378, %v380
    %v389 = vsel %vm385, %v384, %v378
    %v390 = vsel %vm64, 1, 0
    %v391 = vlaneseq
    %v392 = vshrl.u32 %v391, 7
    %v393 = vsub.s32 0, %v392
    %v394 = vrot.slane %v390, %v393
    %v395 = vlaneseq
    %v396 = vshrl.u32 %v395, 7
    %v397 = vsub.s32 1, %v396
    %v398 = vrot.slane %v390, %v397
    %v399 = vlaneseq
    %v400 = vshrl.u32 %v399, 7
    %v401 = vsub.s32 2, %v400
    %v402 = vrot.slane %v390, %v401
    %v403 = vlaneseq
    %v404 = vshrl.u32 %v403, 7
    %v405 = vsub.s32 3, %v404
    %v406 = vrot.slane %v390, %v405
    %vm407 = vcmp.eq.s32.totalorder %v394, 1
    %vm408 = vcmp.eq.s32.totalorder %v398, 1
    %vm409 = vcmp.eq.s32.totalorder %v402, 1
    %vm410 = vcmp.eq.s32.totalorder %v406, 1
    %v411 = vsel %vm407, %v389, 0.0
    %v412 = vsel %vm408, %v388, 0.0
    %v413 = vsel %vm409, %v387, 0.0
    %v414 = vsel %vm410, %v386, 0.0
    %v415 = vlaneseq
    %v416 = vshrl.u32 %v415, 7
    %v417 = vsub.s32 0, %v416
    %v418 = vrot.slane %v411, %v417
    %v419 = vlaneseq
    %v420 = vshrl.u32 %v419, 7
    %v421 = vsub.s32 0, %v420
    %v422 = vrot.slane %v412, %v421
    %v423 = vlaneseq
    %v424 = vshrl.u32 %v423, 7
    %v425 = vsub.s32 0, %v424
    %v426 = vrot.slane %v413, %v425
    %v427 = vlaneseq
    %v428 = vshrl.u32 %v427, 7
    %v429 = vsub.s32 0, %v428
    %v430 = vrot.slane %v414, %v429
    %431 = vset.pattern.permute.xlu0 2
    %432 = vperm.xlu0 %431, %v67
    %v433 = vpop.permute.xlu0 %432
    %v435 = vmul.f32 %v418, %v433
    %v436 = vmul.f32 %v422, %v433
    %v437 = vmul.f32 %v426, %v433
    %v438 = vmul.f32 %v430, %v433
    %v439 = vadd.f32 %v373, %v435
    %v440 = vadd.f32 %v374, %v436
    %v441 = vadd.f32 %v375, %v437
    %v442 = vadd.f32 %v376, %v438
    %v443 = vlaneseq
    %v444 = vshrl.u32 %v443, 7
    %v445 = vsub.s32 1, %v444
    %v446 = vrot.slane %v411, %v445
    %v447 = vlaneseq
    %v448 = vshrl.u32 %v447, 7
    %v449 = vsub.s32 1, %v448
    %v450 = vrot.slane %v412, %v449
    %v451 = vlaneseq
    %v452 = vshrl.u32 %v451, 7
    %v453 = vsub.s32 1, %v452
    %v454 = vrot.slane %v413, %v453
    %v455 = vlaneseq
    %v456 = vshrl.u32 %v455, 7
    %v457 = vsub.s32 1, %v456
    %v458 = vrot.slane %v414, %v457
    %459 = vset.pattern.permute.xlu0 11
    %460 = vperm.xlu0 %459, %v67
    %v461 = vpop.permute.xlu0 %460
    %v463 = vmul.f32 %v446, %v461
    %v464 = vmul.f32 %v450, %v461
    %v465 = vmul.f32 %v454, %v461
    %v466 = vmul.f32 %v458, %v461
    %v467 = vadd.f32 %v439, %v463
    %v468 = vadd.f32 %v440, %v464
    %v469 = vadd.f32 %v441, %v465
    %v470 = vadd.f32 %v442, %v466
    %v471 = vlaneseq
    %v472 = vshrl.u32 %v471, 7
    %v473 = vsub.s32 2, %v472
    %v474 = vrot.slane %v411, %v473
    %v475 = vlaneseq
    %v476 = vshrl.u32 %v475, 7
    %v477 = vsub.s32 2, %v476
    %v478 = vrot.slane %v412, %v477
    %v479 = vlaneseq
    %v480 = vshrl.u32 %v479, 7
    %v481 = vsub.s32 2, %v480
    %v482 = vrot.slane %v413, %v481
    %v483 = vlaneseq
    %v484 = vshrl.u32 %v483, 7
    %v485 = vsub.s32 2, %v484
    %v486 = vrot.slane %v414, %v485
    %487 = vset.pattern.permute.xlu0 20
    %488 = vperm.xlu0 %487, %v67
    %v489 = vpop.permute.xlu0 %488
    %v491 = vmul.f32 %v474, %v489
    %v492 = vmul.f32 %v478, %v489
    %v493 = vmul.f32 %v482, %v489
    %v494 = vmul.f32 %v486, %v489
    %v495 = vadd.f32 %v467, %v491
    %v496 = vadd.f32 %v468, %v492
    %v497 = vadd.f32 %v469, %v493
    %v498 = vadd.f32 %v470, %v494
    %v499 = vlaneseq
    %v500 = vshrl.u32 %v499, 7
    %v501 = vsub.s32 3, %v500
    %v502 = vrot.slane %v411, %v501
    %v503 = vlaneseq
    %v504 = vshrl.u32 %v503, 7
    %v505 = vsub.s32 3, %v504
    %v506 = vrot.slane %v412, %v505
    %v507 = vlaneseq
    %v508 = vshrl.u32 %v507, 7
    %v509 = vsub.s32 3, %v508
    %v510 = vrot.slane %v413, %v509
    %v511 = vlaneseq
    %v512 = vshrl.u32 %v511, 7
    %v513 = vsub.s32 3, %v512
    %v514 = vrot.slane %v414, %v513
    %515 = vset.pattern.permute.xlu0 29
    %516 = vperm.xlu0 %515, %v67
    %v517 = vpop.permute.xlu0 %516
    %v519 = vmul.f32 %v502, %v517
    %v520 = vmul.f32 %v506, %v517
    %v521 = vmul.f32 %v510, %v517
    %v522 = vmul.f32 %v514, %v517
    %v523 = vadd.f32 %v495, %v519
    %v524 = vadd.f32 %v496, %v520
    %v525 = vadd.f32 %v497, %v521
    %v526 = vadd.f32 %v498, %v522
    %527 = vrot.lane.b32.xlu0 %v42, 1
    %v528 = vpop.permute.xlu0 %527
    %529 = vrot.lane.b32.xlu0 %v70, 1
    %v530 = vpop.permute.xlu0 %529
    %531 = vrot.lane.b32.xlu0 %v43, 1
    %v532 = vpop.permute.xlu0 %531
    %533 = vrot.lane.b32.xlu0 %v71, 1
    %v534 = vpop.permute.xlu0 %533
    %vm535 = vcmp.lt.s32.totalorder %v83, 1
    %v536 = vsel %vm535, %v532, %v534
    %v537 = vsel %vm535, %v530, %v532
    %v538 = vsel %vm535, %v528, %v530
    %v539 = vsel %vm535, %v534, %v528
    %v540 = vsel %vm58, 1, 0
    %v541 = vlaneseq
    %v542 = vshrl.u32 %v541, 7
    %v543 = vsub.s32 0, %v542
    %v544 = vrot.slane %v540, %v543
    %v545 = vlaneseq
    %v546 = vshrl.u32 %v545, 7
    %v547 = vsub.s32 1, %v546
    %v548 = vrot.slane %v540, %v547
    %v549 = vlaneseq
    %v550 = vshrl.u32 %v549, 7
    %v551 = vsub.s32 2, %v550
    %v552 = vrot.slane %v540, %v551
    %v553 = vlaneseq
    %v554 = vshrl.u32 %v553, 7
    %v555 = vsub.s32 3, %v554
    %v556 = vrot.slane %v540, %v555
    %vm557 = vcmp.eq.s32.totalorder %v544, 1
    %vm558 = vcmp.eq.s32.totalorder %v548, 1
    %vm559 = vcmp.eq.s32.totalorder %v552, 1
    %vm560 = vcmp.eq.s32.totalorder %v556, 1
    %v561 = vsel %vm557, %v539, 0.0
    %v562 = vsel %vm558, %v538, 0.0
    %v563 = vsel %vm559, %v537, 0.0
    %v564 = vsel %vm560, %v536, 0.0
    %v565 = vlaneseq
    %v566 = vshrl.u32 %v565, 7
    %v567 = vsub.s32 0, %v566
    %v568 = vrot.slane %v561, %v567
    %v569 = vlaneseq
    %v570 = vshrl.u32 %v569, 7
    %v571 = vsub.s32 0, %v570
    %v572 = vrot.slane %v562, %v571
    %v573 = vlaneseq
    %v574 = vshrl.u32 %v573, 7
    %v575 = vsub.s32 0, %v574
    %v576 = vrot.slane %v563, %v575
    %v577 = vlaneseq
    %v578 = vshrl.u32 %v577, 7
    %v579 = vsub.s32 0, %v578
    %v580 = vrot.slane %v564, %v579
    %581 = vset.pattern.permute.xlu0 3
    %582 = vperm.xlu0 %581, %v67
    %v583 = vpop.permute.xlu0 %582
    %v585 = vmul.f32 %v568, %v583
    %v586 = vmul.f32 %v572, %v583
    %v587 = vmul.f32 %v576, %v583
    %v588 = vmul.f32 %v580, %v583
    %v589 = vadd.f32 %v523, %v585
    %v590 = vadd.f32 %v524, %v586
    %v591 = vadd.f32 %v525, %v587
    %v592 = vadd.f32 %v526, %v588
    %v593 = vlaneseq
    %v594 = vshrl.u32 %v593, 7
    %v595 = vsub.s32 1, %v594
    %v596 = vrot.slane %v561, %v595
    %v597 = vlaneseq
    %v598 = vshrl.u32 %v597, 7
    %v599 = vsub.s32 1, %v598
    %v600 = vrot.slane %v562, %v599
    %v601 = vlaneseq
    %v602 = vshrl.u32 %v601, 7
    %v603 = vsub.s32 1, %v602
    %v604 = vrot.slane %v563, %v603
    %v605 = vlaneseq
    %v606 = vshrl.u32 %v605, 7
    %v607 = vsub.s32 1, %v606
    %v608 = vrot.slane %v564, %v607
    %609 = vset.pattern.permute.xlu0 12
    %610 = vperm.xlu0 %609, %v67
    %v611 = vpop.permute.xlu0 %610
    %v613 = vmul.f32 %v596, %v611
    %v614 = vmul.f32 %v600, %v611
    %v615 = vmul.f32 %v604, %v611
    %v616 = vmul.f32 %v608, %v611
    %v617 = vadd.f32 %v589, %v613
    %v618 = vadd.f32 %v590, %v614
    %v619 = vadd.f32 %v591, %v615
    %v620 = vadd.f32 %v592, %v616
    %v621 = vlaneseq
    %v622 = vshrl.u32 %v621, 7
    %v623 = vsub.s32 2, %v622
    %v624 = vrot.slane %v561, %v623
    %v625 = vlaneseq
    %v626 = vshrl.u32 %v625, 7
    %v627 = vsub.s32 2, %v626
    %v628 = vrot.slane %v562, %v627
    %v629 = vlaneseq
    %v630 = vshrl.u32 %v629, 7
    %v631 = vsub.s32 2, %v630
    %v632 = vrot.slane %v563, %v631
    %v633 = vlaneseq
    %v634 = vshrl.u32 %v633, 7
    %v635 = vsub.s32 2, %v634
    %v636 = vrot.slane %v564, %v635
    %637 = vset.pattern.permute.xlu0 21
    %638 = vperm.xlu0 %637, %v67
    %v639 = vpop.permute.xlu0 %638
    %v641 = vmul.f32 %v624, %v639
    %v642 = vmul.f32 %v628, %v639
    %v643 = vmul.f32 %v632, %v639
    %v644 = vmul.f32 %v636, %v639
    %v645 = vadd.f32 %v617, %v641
    %v646 = vadd.f32 %v618, %v642
    %v647 = vadd.f32 %v619, %v643
    %v648 = vadd.f32 %v620, %v644
    %v649 = vlaneseq
    %v650 = vshrl.u32 %v649, 7
    %v651 = vsub.s32 3, %v650
    %v652 = vrot.slane %v561, %v651
    %v653 = vlaneseq
    %v654 = vshrl.u32 %v653, 7
    %v655 = vsub.s32 3, %v654
    %v656 = vrot.slane %v562, %v655
    %v657 = vlaneseq
    %v658 = vshrl.u32 %v657, 7
    %v659 = vsub.s32 3, %v658
    %v660 = vrot.slane %v563, %v659
    %v661 = vlaneseq
    %v662 = vshrl.u32 %v661, 7
    %v663 = vsub.s32 3, %v662
    %v664 = vrot.slane %v564, %v663
    %665 = vset.pattern.permute.xlu0 30
    %666 = vperm.xlu0 %665, %v67
    %v667 = vpop.permute.xlu0 %666
    %v669 = vmul.f32 %v652, %v667
    %v670 = vmul.f32 %v656, %v667
    %v671 = vmul.f32 %v660, %v667
    %v672 = vmul.f32 %v664, %v667
    %v673 = vadd.f32 %v645, %v669
    %v674 = vadd.f32 %v646, %v670
    %v675 = vadd.f32 %v647, %v671
    %v676 = vadd.f32 %v648, %v672
    %v677 = vlaneseq
    %v678 = vshrl.u32 %v677, 7
    %v679 = vsub.s32 0, %v678
    %v680 = vrot.slane %v42, %v679
    %v681 = vlaneseq
    %v682 = vshrl.u32 %v681, 7
    %v683 = vsub.s32 4, %v682
    %v684 = vrot.slane %v42, %v683
    %v685 = vlaneseq
    %v686 = vshrl.u32 %v685, 7
    %v687 = vsub.s32 0, %v686
    %v688 = vrot.slane %v43, %v687
    %v689 = vlaneseq
    %v690 = vshrl.u32 %v689, 7
    %v691 = vsub.s32 4, %v690
    %v692 = vrot.slane %v43, %v691
    %v697 = vlaneseq
    %v698 = vshrl.u32 %v697, 7
    %v699 = vsub.s32 0, %v698
    %v700 = vrot.slane %v680, %v699
    %v701 = vlaneseq
    %v702 = vshrl.u32 %v701, 7
    %v703 = vsub.s32 0, %v702
    %v704 = vrot.slane %v684, %v703
    %v705 = vlaneseq
    %v706 = vshrl.u32 %v705, 7
    %v707 = vsub.s32 0, %v706
    %v708 = vrot.slane %v688, %v707
    %v709 = vlaneseq
    %v710 = vshrl.u32 %v709, 7
    %v711 = vsub.s32 0, %v710
    %v712 = vrot.slane %v692, %v711
    %713 = vset.pattern.permute.xlu0 4
    %714 = vperm.xlu0 %713, %v67
    %v715 = vpop.permute.xlu0 %714
    %v717 = vmul.f32 %v700, %v715
    %v718 = vmul.f32 %v704, %v715
    %v719 = vmul.f32 %v708, %v715
    %v720 = vmul.f32 %v712, %v715
    %v721 = vadd.f32 %v673, %v717
    %v722 = vadd.f32 %v674, %v718
    %v723 = vadd.f32 %v675, %v719
    %v724 = vadd.f32 %v676, %v720
    %v725 = vlaneseq
    %v726 = vshrl.u32 %v725, 7
    %v727 = vsub.s32 1, %v726
    %v728 = vrot.slane %v42, %v727
    %v729 = vlaneseq
    %v730 = vshrl.u32 %v729, 7
    %v731 = vsub.s32 5, %v730
    %v732 = vrot.slane %v42, %v731
    %v733 = vlaneseq
    %v734 = vshrl.u32 %v733, 7
    %v735 = vsub.s32 1, %v734
    %v736 = vrot.slane %v43, %v735
    %v737 = vlaneseq
    %v738 = vshrl.u32 %v737, 7
    %v739 = vsub.s32 5, %v738
    %v740 = vrot.slane %v43, %v739
    %v745 = vlaneseq
    %v746 = vshrl.u32 %v745, 7
    %v747 = vsub.s32 1, %v746
    %v748 = vrot.slane %v728, %v747
    %v749 = vlaneseq
    %v750 = vshrl.u32 %v749, 7
    %v751 = vsub.s32 1, %v750
    %v752 = vrot.slane %v732, %v751
    %v753 = vlaneseq
    %v754 = vshrl.u32 %v753, 7
    %v755 = vsub.s32 1, %v754
    %v756 = vrot.slane %v736, %v755
    %v757 = vlaneseq
    %v758 = vshrl.u32 %v757, 7
    %v759 = vsub.s32 1, %v758
    %v760 = vrot.slane %v740, %v759
    %761 = vset.pattern.permute.xlu0 13
    %762 = vperm.xlu0 %761, %v67
    %v763 = vpop.permute.xlu0 %762
    %v765 = vmul.f32 %v748, %v763
    %v766 = vmul.f32 %v752, %v763
    %v767 = vmul.f32 %v756, %v763
    %v768 = vmul.f32 %v760, %v763
    %v769 = vadd.f32 %v721, %v765
    %v770 = vadd.f32 %v722, %v766
    %v771 = vadd.f32 %v723, %v767
    %v772 = vadd.f32 %v724, %v768
    %v773 = vlaneseq
    %v774 = vshrl.u32 %v773, 7
    %v775 = vsub.s32 2, %v774
    %v776 = vrot.slane %v42, %v775
    %v777 = vlaneseq
    %v778 = vshrl.u32 %v777, 7
    %v779 = vsub.s32 6, %v778
    %v780 = vrot.slane %v42, %v779
    %v781 = vlaneseq
    %v782 = vshrl.u32 %v781, 7
    %v783 = vsub.s32 2, %v782
    %v784 = vrot.slane %v43, %v783
    %v785 = vlaneseq
    %v786 = vshrl.u32 %v785, 7
    %v787 = vsub.s32 6, %v786
    %v788 = vrot.slane %v43, %v787
    %v793 = vlaneseq
    %v794 = vshrl.u32 %v793, 7
    %v795 = vsub.s32 2, %v794
    %v796 = vrot.slane %v776, %v795
    %v797 = vlaneseq
    %v798 = vshrl.u32 %v797, 7
    %v799 = vsub.s32 2, %v798
    %v800 = vrot.slane %v780, %v799
    %v801 = vlaneseq
    %v802 = vshrl.u32 %v801, 7
    %v803 = vsub.s32 2, %v802
    %v804 = vrot.slane %v784, %v803
    %v805 = vlaneseq
    %v806 = vshrl.u32 %v805, 7
    %v807 = vsub.s32 2, %v806
    %v808 = vrot.slane %v788, %v807
    %809 = vset.pattern.permute.xlu0 22
    %810 = vperm.xlu0 %809, %v67
    %v811 = vpop.permute.xlu0 %810
    %v813 = vmul.f32 %v796, %v811
    %v814 = vmul.f32 %v800, %v811
    %v815 = vmul.f32 %v804, %v811
    %v816 = vmul.f32 %v808, %v811
    %v817 = vadd.f32 %v769, %v813
    %v818 = vadd.f32 %v770, %v814
    %v819 = vadd.f32 %v771, %v815
    %v820 = vadd.f32 %v772, %v816
    %v821 = vlaneseq
    %v822 = vshrl.u32 %v821, 7
    %v823 = vsub.s32 3, %v822
    %v824 = vrot.slane %v42, %v823
    %v825 = vlaneseq
    %v826 = vshrl.u32 %v825, 7
    %v827 = vsub.s32 7, %v826
    %v828 = vrot.slane %v42, %v827
    %v829 = vlaneseq
    %v830 = vshrl.u32 %v829, 7
    %v831 = vsub.s32 3, %v830
    %v832 = vrot.slane %v43, %v831
    %v833 = vlaneseq
    %v834 = vshrl.u32 %v833, 7
    %v835 = vsub.s32 7, %v834
    %v836 = vrot.slane %v43, %v835
    %v841 = vlaneseq
    %v842 = vshrl.u32 %v841, 7
    %v843 = vsub.s32 3, %v842
    %v844 = vrot.slane %v824, %v843
    %v845 = vlaneseq
    %v846 = vshrl.u32 %v845, 7
    %v847 = vsub.s32 3, %v846
    %v848 = vrot.slane %v828, %v847
    %v849 = vlaneseq
    %v850 = vshrl.u32 %v849, 7
    %v851 = vsub.s32 3, %v850
    %v852 = vrot.slane %v832, %v851
    %v853 = vlaneseq
    %v854 = vshrl.u32 %v853, 7
    %v855 = vsub.s32 3, %v854
    %v856 = vrot.slane %v836, %v855
    %857 = vset.pattern.permute.xlu0 31
    %858 = vperm.xlu0 %857, %v67
    %v859 = vpop.permute.xlu0 %858
    %v861 = vmul.f32 %v844, %v859
    %v862 = vmul.f32 %v848, %v859
    %v863 = vmul.f32 %v852, %v859
    %v864 = vmul.f32 %v856, %v859
    %v865 = vadd.f32 %v817, %v861
    %v866 = vadd.f32 %v818, %v862
    %v867 = vadd.f32 %v819, %v863
    %v868 = vadd.f32 %v820, %v864
    %869 = vrot.lane.b32.xlu0 %v42, 127
    %v870 = vpop.permute.xlu0 %869
    %871 = vrot.lane.b32.xlu0 %v70, 127
    %v872 = vpop.permute.xlu0 %871
    %873 = vrot.lane.b32.xlu0 %v43, 127
    %v874 = vpop.permute.xlu0 %873
    %875 = vrot.lane.b32.xlu0 %v71, 127
    %v876 = vpop.permute.xlu0 %875
    %vm877 = vcmp.lt.s32.totalorder %v83, 127
    %v878 = vsel %vm877, %v874, %v876
    %v879 = vsel %vm877, %v872, %v874
    %v880 = vsel %vm877, %v870, %v872
    %v881 = vsel %vm877, %v876, %v870
    %v882 = vsel %vm62, 1, 0
    %v883 = vlaneseq
    %v884 = vshrl.u32 %v883, 7
    %v885 = vsub.s32 0, %v884
    %v886 = vrot.slane %v882, %v885
    %v887 = vlaneseq
    %v888 = vshrl.u32 %v887, 7
    %v889 = vsub.s32 1, %v888
    %v890 = vrot.slane %v882, %v889
    %v891 = vlaneseq
    %v892 = vshrl.u32 %v891, 7
    %v893 = vsub.s32 2, %v892
    %v894 = vrot.slane %v882, %v893
    %v895 = vlaneseq
    %v896 = vshrl.u32 %v895, 7
    %v897 = vsub.s32 3, %v896
    %v898 = vrot.slane %v882, %v897
    %vm899 = vcmp.eq.s32.totalorder %v886, 1
    %vm900 = vcmp.eq.s32.totalorder %v890, 1
    %vm901 = vcmp.eq.s32.totalorder %v894, 1
    %vm902 = vcmp.eq.s32.totalorder %v898, 1
    %v903 = vsel %vm899, %v880, 0.0
    %v904 = vsel %vm900, %v879, 0.0
    %v905 = vsel %vm901, %v878, 0.0
    %v906 = vsel %vm902, %v881, 0.0
    %v907 = vlaneseq
    %v908 = vshrl.u32 %v907, 7
    %v909 = vsub.s32 0, %v908
    %v910 = vrot.slane %v903, %v909
    %v911 = vlaneseq
    %v912 = vshrl.u32 %v911, 7
    %v913 = vsub.s32 0, %v912
    %v914 = vrot.slane %v904, %v913
    %v915 = vlaneseq
    %v916 = vshrl.u32 %v915, 7
    %v917 = vsub.s32 0, %v916
    %v918 = vrot.slane %v905, %v917
    %v919 = vlaneseq
    %v920 = vshrl.u32 %v919, 7
    %v921 = vsub.s32 0, %v920
    %v922 = vrot.slane %v906, %v921
    %923 = vset.pattern.permute.xlu0 5
    %924 = vperm.xlu0 %923, %v67
    %v925 = vpop.permute.xlu0 %924
    %v927 = vmul.f32 %v910, %v925
    %v928 = vmul.f32 %v914, %v925
    %v929 = vmul.f32 %v918, %v925
    %v930 = vmul.f32 %v922, %v925
    %v931 = vadd.f32 %v865, %v927
    %v932 = vadd.f32 %v866, %v928
    %v933 = vadd.f32 %v867, %v929
    %v934 = vadd.f32 %v868, %v930
    %v935 = vlaneseq
    %v936 = vshrl.u32 %v935, 7
    %v937 = vsub.s32 1, %v936
    %v938 = vrot.slane %v903, %v937
    %v939 = vlaneseq
    %v940 = vshrl.u32 %v939, 7
    %v941 = vsub.s32 1, %v940
    %v942 = vrot.slane %v904, %v941
    %v943 = vlaneseq
    %v944 = vshrl.u32 %v943, 7
    %v945 = vsub.s32 1, %v944
    %v946 = vrot.slane %v905, %v945
    %v947 = vlaneseq
    %v948 = vshrl.u32 %v947, 7
    %v949 = vsub.s32 1, %v948
    %v950 = vrot.slane %v906, %v949
    %951 = vset.pattern.permute.xlu0 14
    %952 = vperm.xlu0 %951, %v67
    %v953 = vpop.permute.xlu0 %952
    %v955 = vmul.f32 %v938, %v953
    %v956 = vmul.f32 %v942, %v953
    %v957 = vmul.f32 %v946, %v953
    %v958 = vmul.f32 %v950, %v953
    %v959 = vadd.f32 %v931, %v955
    %v960 = vadd.f32 %v932, %v956
    %v961 = vadd.f32 %v933, %v957
    %v962 = vadd.f32 %v934, %v958
    %v963 = vlaneseq
    %v964 = vshrl.u32 %v963, 7
    %v965 = vsub.s32 2, %v964
    %v966 = vrot.slane %v903, %v965
    %v967 = vlaneseq
    %v968 = vshrl.u32 %v967, 7
    %v969 = vsub.s32 2, %v968
    %v970 = vrot.slane %v904, %v969
    %v971 = vlaneseq
    %v972 = vshrl.u32 %v971, 7
    %v973 = vsub.s32 2, %v972
    %v974 = vrot.slane %v905, %v973
    %v975 = vlaneseq
    %v976 = vshrl.u32 %v975, 7
    %v977 = vsub.s32 2, %v976
    %v978 = vrot.slane %v906, %v977
    %979 = vset.pattern.permute.xlu0 23
    %980 = vperm.xlu0 %979, %v67
    %v981 = vpop.permute.xlu0 %980
    %v983 = vmul.f32 %v966, %v981
    %v984 = vmul.f32 %v970, %v981
    %v985 = vmul.f32 %v974, %v981
    %v986 = vmul.f32 %v978, %v981
    %v987 = vadd.f32 %v959, %v983
    %v988 = vadd.f32 %v960, %v984
    %v989 = vadd.f32 %v961, %v985
    %v990 = vadd.f32 %v962, %v986
    %v991 = vlaneseq
    %v992 = vshrl.u32 %v991, 7
    %v993 = vsub.s32 3, %v992
    %v994 = vrot.slane %v903, %v993
    %v995 = vlaneseq
    %v996 = vshrl.u32 %v995, 7
    %v997 = vsub.s32 3, %v996
    %v998 = vrot.slane %v904, %v997
    %v999 = vlaneseq
    %v1000 = vshrl.u32 %v999, 7
    %v1001 = vsub.s32 3, %v1000
    %v1002 = vrot.slane %v905, %v1001
    %v1003 = vlaneseq
    %v1004 = vshrl.u32 %v1003, 7
    %v1005 = vsub.s32 3, %v1004
    %v1006 = vrot.slane %v906, %v1005
    %1007 = vset.pattern.permute.xlu0 32
    %1008 = vperm.xlu0 %1007, %v67
    %v1009 = vpop.permute.xlu0 %1008
    %v1011 = vmul.f32 %v994, %v1009
    %v1012 = vmul.f32 %v998, %v1009
    %v1013 = vmul.f32 %v1002, %v1009
    %v1014 = vmul.f32 %v1006, %v1009
    %v1015 = vadd.f32 %v987, %v1011
    %v1016 = vadd.f32 %v988, %v1012
    %v1017 = vadd.f32 %v989, %v1013
    %v1018 = vadd.f32 %v990, %v1014
    %1019 = vrot.lane.b32.xlu0 %v42, 113
    %v1020 = vpop.permute.xlu0 %1019
    %1021 = vrot.lane.b32.xlu0 %v70, 113
    %v1022 = vpop.permute.xlu0 %1021
    %1023 = vrot.lane.b32.xlu0 %v43, 113
    %v1024 = vpop.permute.xlu0 %1023
    %1025 = vrot.lane.b32.xlu0 %v71, 113
    %v1026 = vpop.permute.xlu0 %1025
    %vm1027 = vcmp.lt.s32.totalorder %v83, 113
    %v1028 = vsel %vm1027, %v1024, %v1026
    %v1029 = vsel %vm1027, %v1022, %v1024
    %v1030 = vsel %vm1027, %v1020, %v1022
    %v1031 = vsel %vm1027, %v1026, %v1020
    %v1032 = vsel %vm65, 1, 0
    %v1033 = vlaneseq
    %v1034 = vshrl.u32 %v1033, 7
    %v1035 = vsub.s32 0, %v1034
    %v1036 = vrot.slane %v1032, %v1035
    %v1037 = vlaneseq
    %v1038 = vshrl.u32 %v1037, 7
    %v1039 = vsub.s32 1, %v1038
    %v1040 = vrot.slane %v1032, %v1039
    %v1041 = vlaneseq
    %v1042 = vshrl.u32 %v1041, 7
    %v1043 = vsub.s32 2, %v1042
    %v1044 = vrot.slane %v1032, %v1043
    %v1045 = vlaneseq
    %v1046 = vshrl.u32 %v1045, 7
    %v1047 = vsub.s32 3, %v1046
    %v1048 = vrot.slane %v1032, %v1047
    %vm1049 = vcmp.eq.s32.totalorder %v1036, 1
    %vm1050 = vcmp.eq.s32.totalorder %v1040, 1
    %vm1051 = vcmp.eq.s32.totalorder %v1044, 1
    %vm1052 = vcmp.eq.s32.totalorder %v1048, 1
    %v1053 = vsel %vm1049, %v1030, 0.0
    %v1054 = vsel %vm1050, %v1029, 0.0
    %v1055 = vsel %vm1051, %v1028, 0.0
    %v1056 = vsel %vm1052, %v1031, 0.0
    %v1057 = vlaneseq
    %v1058 = vshrl.u32 %v1057, 7
    %v1059 = vsub.s32 0, %v1058
    %v1060 = vrot.slane %v1053, %v1059
    %v1061 = vlaneseq
    %v1062 = vshrl.u32 %v1061, 7
    %v1063 = vsub.s32 0, %v1062
    %v1064 = vrot.slane %v1054, %v1063
    %v1065 = vlaneseq
    %v1066 = vshrl.u32 %v1065, 7
    %v1067 = vsub.s32 0, %v1066
    %v1068 = vrot.slane %v1055, %v1067
    %v1069 = vlaneseq
    %v1070 = vshrl.u32 %v1069, 7
    %v1071 = vsub.s32 0, %v1070
    %v1072 = vrot.slane %v1056, %v1071
    %1073 = vset.pattern.permute.xlu0 6
    %1074 = vperm.xlu0 %1073, %v67
    %v1075 = vpop.permute.xlu0 %1074
    %v1077 = vmul.f32 %v1060, %v1075
    %v1078 = vmul.f32 %v1064, %v1075
    %v1079 = vmul.f32 %v1068, %v1075
    %v1080 = vmul.f32 %v1072, %v1075
    %v1081 = vadd.f32 %v1015, %v1077
    %v1082 = vadd.f32 %v1016, %v1078
    %v1083 = vadd.f32 %v1017, %v1079
    %v1084 = vadd.f32 %v1018, %v1080
    %v1085 = vlaneseq
    %v1086 = vshrl.u32 %v1085, 7
    %v1087 = vsub.s32 1, %v1086
    %v1088 = vrot.slane %v1053, %v1087
    %v1089 = vlaneseq
    %v1090 = vshrl.u32 %v1089, 7
    %v1091 = vsub.s32 1, %v1090
    %v1092 = vrot.slane %v1054, %v1091
    %v1093 = vlaneseq
    %v1094 = vshrl.u32 %v1093, 7
    %v1095 = vsub.s32 1, %v1094
    %v1096 = vrot.slane %v1055, %v1095
    %v1097 = vlaneseq
    %v1098 = vshrl.u32 %v1097, 7
    %v1099 = vsub.s32 1, %v1098
    %v1100 = vrot.slane %v1056, %v1099
    %1101 = vset.pattern.permute.xlu0 15
    %1102 = vperm.xlu0 %1101, %v67
    %v1103 = vpop.permute.xlu0 %1102
    %v1105 = vmul.f32 %v1088, %v1103
    %v1106 = vmul.f32 %v1092, %v1103
    %v1107 = vmul.f32 %v1096, %v1103
    %v1108 = vmul.f32 %v1100, %v1103
    %v1109 = vadd.f32 %v1081, %v1105
    %v1110 = vadd.f32 %v1082, %v1106
    %v1111 = vadd.f32 %v1083, %v1107
    %v1112 = vadd.f32 %v1084, %v1108
    %v1113 = vlaneseq
    %v1114 = vshrl.u32 %v1113, 7
    %v1115 = vsub.s32 2, %v1114
    %v1116 = vrot.slane %v1053, %v1115
    %v1117 = vlaneseq
    %v1118 = vshrl.u32 %v1117, 7
    %v1119 = vsub.s32 2, %v1118
    %v1120 = vrot.slane %v1054, %v1119
    %v1121 = vlaneseq
    %v1122 = vshrl.u32 %v1121, 7
    %v1123 = vsub.s32 2, %v1122
    %v1124 = vrot.slane %v1055, %v1123
    %v1125 = vlaneseq
    %v1126 = vshrl.u32 %v1125, 7
    %v1127 = vsub.s32 2, %v1126
    %v1128 = vrot.slane %v1056, %v1127
    %1129 = vset.pattern.permute.xlu0 24
    %1130 = vperm.xlu0 %1129, %v67
    %v1131 = vpop.permute.xlu0 %1130
    %v1133 = vmul.f32 %v1116, %v1131
    %v1134 = vmul.f32 %v1120, %v1131
    %v1135 = vmul.f32 %v1124, %v1131
    %v1136 = vmul.f32 %v1128, %v1131
    %v1137 = vadd.f32 %v1109, %v1133
    %v1138 = vadd.f32 %v1110, %v1134
    %v1139 = vadd.f32 %v1111, %v1135
    %v1140 = vadd.f32 %v1112, %v1136
    %v1141 = vlaneseq
    %v1142 = vshrl.u32 %v1141, 7
    %v1143 = vsub.s32 3, %v1142
    %v1144 = vrot.slane %v1053, %v1143
    %v1145 = vlaneseq
    %v1146 = vshrl.u32 %v1145, 7
    %v1147 = vsub.s32 3, %v1146
    %v1148 = vrot.slane %v1054, %v1147
    %v1149 = vlaneseq
    %v1150 = vshrl.u32 %v1149, 7
    %v1151 = vsub.s32 3, %v1150
    %v1152 = vrot.slane %v1055, %v1151
    %v1153 = vlaneseq
    %v1154 = vshrl.u32 %v1153, 7
    %v1155 = vsub.s32 3, %v1154
    %v1156 = vrot.slane %v1056, %v1155
    %1157 = vset.pattern.permute.xlu0 33
    %1158 = vperm.xlu0 %1157, %v67
    %v1159 = vpop.permute.xlu0 %1158
    %v1161 = vmul.f32 %v1144, %v1159
    %v1162 = vmul.f32 %v1148, %v1159
    %v1163 = vmul.f32 %v1152, %v1159
    %v1164 = vmul.f32 %v1156, %v1159
    %v1165 = vadd.f32 %v1137, %v1161
    %v1166 = vadd.f32 %v1138, %v1162
    %v1167 = vadd.f32 %v1139, %v1163
    %v1168 = vadd.f32 %v1140, %v1164
    %1169 = vrot.lane.b32.xlu0 %v42, 112
    %v1170 = vpop.permute.xlu0 %1169
    %1171 = vrot.lane.b32.xlu0 %v70, 112
    %v1172 = vpop.permute.xlu0 %1171
    %1173 = vrot.lane.b32.xlu0 %v43, 112
    %v1174 = vpop.permute.xlu0 %1173
    %1175 = vrot.lane.b32.xlu0 %v71, 112
    %v1176 = vpop.permute.xlu0 %1175
    %vm1177 = vcmp.lt.s32.totalorder %v83, 112
    %v1178 = vsel %vm1177, %v1174, %v1176
    %v1179 = vsel %vm1177, %v1172, %v1174
    %v1180 = vsel %vm1177, %v1170, %v1172
    %v1181 = vsel %vm1177, %v1176, %v1170
    %v1182 = vsel %vm54, 1, 0
    %v1183 = vlaneseq
    %v1184 = vshrl.u32 %v1183, 7
    %v1185 = vsub.s32 0, %v1184
    %v1186 = vrot.slane %v1182, %v1185
    %v1187 = vlaneseq
    %v1188 = vshrl.u32 %v1187, 7
    %v1189 = vsub.s32 1, %v1188
    %v1190 = vrot.slane %v1182, %v1189
    %v1191 = vlaneseq
    %v1192 = vshrl.u32 %v1191, 7
    %v1193 = vsub.s32 2, %v1192
    %v1194 = vrot.slane %v1182, %v1193
    %v1195 = vlaneseq
    %v1196 = vshrl.u32 %v1195, 7
    %v1197 = vsub.s32 3, %v1196
    %v1198 = vrot.slane %v1182, %v1197
    %vm1199 = vcmp.eq.s32.totalorder %v1186, 1
    %vm1200 = vcmp.eq.s32.totalorder %v1190, 1
    %vm1201 = vcmp.eq.s32.totalorder %v1194, 1
    %vm1202 = vcmp.eq.s32.totalorder %v1198, 1
    %v1203 = vsel %vm1199, %v1180, 0.0
    %v1204 = vsel %vm1200, %v1179, 0.0
    %v1205 = vsel %vm1201, %v1178, 0.0
    %v1206 = vsel %vm1202, %v1181, 0.0
    %v1207 = vlaneseq
    %v1208 = vshrl.u32 %v1207, 7
    %v1209 = vsub.s32 0, %v1208
    %v1210 = vrot.slane %v1203, %v1209
    %v1211 = vlaneseq
    %v1212 = vshrl.u32 %v1211, 7
    %v1213 = vsub.s32 0, %v1212
    %v1214 = vrot.slane %v1204, %v1213
    %v1215 = vlaneseq
    %v1216 = vshrl.u32 %v1215, 7
    %v1217 = vsub.s32 0, %v1216
    %v1218 = vrot.slane %v1205, %v1217
    %v1219 = vlaneseq
    %v1220 = vshrl.u32 %v1219, 7
    %v1221 = vsub.s32 0, %v1220
    %v1222 = vrot.slane %v1206, %v1221
    %1223 = vset.pattern.permute.xlu0 7
    %1224 = vperm.xlu0 %1223, %v67
    %v1225 = vpop.permute.xlu0 %1224
    %v1227 = vmul.f32 %v1210, %v1225
    %v1228 = vmul.f32 %v1214, %v1225
    %v1229 = vmul.f32 %v1218, %v1225
    %v1230 = vmul.f32 %v1222, %v1225
    %v1231 = vadd.f32 %v1165, %v1227
    %v1232 = vadd.f32 %v1166, %v1228
    %v1233 = vadd.f32 %v1167, %v1229
    %v1234 = vadd.f32 %v1168, %v1230
    %v1235 = vlaneseq
    %v1236 = vshrl.u32 %v1235, 7
    %v1237 = vsub.s32 1, %v1236
    %v1238 = vrot.slane %v1203, %v1237
    %v1239 = vlaneseq
    %v1240 = vshrl.u32 %v1239, 7
    %v1241 = vsub.s32 1, %v1240
    %v1242 = vrot.slane %v1204, %v1241
    %v1243 = vlaneseq
    %v1244 = vshrl.u32 %v1243, 7
    %v1245 = vsub.s32 1, %v1244
    %v1246 = vrot.slane %v1205, %v1245
    %v1247 = vlaneseq
    %v1248 = vshrl.u32 %v1247, 7
    %v1249 = vsub.s32 1, %v1248
    %v1250 = vrot.slane %v1206, %v1249
    %1251 = vset.pattern.permute.xlu0 16
    %1252 = vperm.xlu0 %1251, %v67
    %v1253 = vpop.permute.xlu0 %1252
    %v1255 = vmul.f32 %v1238, %v1253
    %v1256 = vmul.f32 %v1242, %v1253
    %v1257 = vmul.f32 %v1246, %v1253
    %v1258 = vmul.f32 %v1250, %v1253
    %v1259 = vadd.f32 %v1231, %v1255
    %v1260 = vadd.f32 %v1232, %v1256
    %v1261 = vadd.f32 %v1233, %v1257
    %v1262 = vadd.f32 %v1234, %v1258
    %v1263 = vlaneseq
    %v1264 = vshrl.u32 %v1263, 7
    %v1265 = vsub.s32 2, %v1264
    %v1266 = vrot.slane %v1203, %v1265
    %v1267 = vlaneseq
    %v1268 = vshrl.u32 %v1267, 7
    %v1269 = vsub.s32 2, %v1268
    %v1270 = vrot.slane %v1204, %v1269
    %v1271 = vlaneseq
    %v1272 = vshrl.u32 %v1271, 7
    %v1273 = vsub.s32 2, %v1272
    %v1274 = vrot.slane %v1205, %v1273
    %v1275 = vlaneseq
    %v1276 = vshrl.u32 %v1275, 7
    %v1277 = vsub.s32 2, %v1276
    %v1278 = vrot.slane %v1206, %v1277
    %1279 = vset.pattern.permute.xlu0 25
    %1280 = vperm.xlu0 %1279, %v67
    %v1281 = vpop.permute.xlu0 %1280
    %v1283 = vmul.f32 %v1266, %v1281
    %v1284 = vmul.f32 %v1270, %v1281
    %v1285 = vmul.f32 %v1274, %v1281
    %v1286 = vmul.f32 %v1278, %v1281
    %v1287 = vadd.f32 %v1259, %v1283
    %v1288 = vadd.f32 %v1260, %v1284
    %v1289 = vadd.f32 %v1261, %v1285
    %v1290 = vadd.f32 %v1262, %v1286
    %v1291 = vlaneseq
    %v1292 = vshrl.u32 %v1291, 7
    %v1293 = vsub.s32 3, %v1292
    %v1294 = vrot.slane %v1203, %v1293
    %v1295 = vlaneseq
    %v1296 = vshrl.u32 %v1295, 7
    %v1297 = vsub.s32 3, %v1296
    %v1298 = vrot.slane %v1204, %v1297
    %v1299 = vlaneseq
    %v1300 = vshrl.u32 %v1299, 7
    %v1301 = vsub.s32 3, %v1300
    %v1302 = vrot.slane %v1205, %v1301
    %v1303 = vlaneseq
    %v1304 = vshrl.u32 %v1303, 7
    %v1305 = vsub.s32 3, %v1304
    %v1306 = vrot.slane %v1206, %v1305
    %1307 = vset.pattern.permute.xlu0 34
    %1308 = vperm.xlu0 %1307, %v67
    %v1309 = vpop.permute.xlu0 %1308
    %v1311 = vmul.f32 %v1294, %v1309
    %v1312 = vmul.f32 %v1298, %v1309
    %v1313 = vmul.f32 %v1302, %v1309
    %v1314 = vmul.f32 %v1306, %v1309
    %v1315 = vadd.f32 %v1287, %v1311
    %v1316 = vadd.f32 %v1288, %v1312
    %v1317 = vadd.f32 %v1289, %v1313
    %v1318 = vadd.f32 %v1290, %v1314
    %1319 = vrot.lane.b32.xlu0 %v42, 111
    %v1320 = vpop.permute.xlu0 %1319
    %1321 = vrot.lane.b32.xlu0 %v70, 111
    %v1322 = vpop.permute.xlu0 %1321
    %1323 = vrot.lane.b32.xlu0 %v43, 111
    %v1324 = vpop.permute.xlu0 %1323
    %1325 = vrot.lane.b32.xlu0 %v71, 111
    %v1326 = vpop.permute.xlu0 %1325
    %vm1327 = vcmp.lt.s32.totalorder %v83, 111
    %v1328 = vsel %vm1327, %v1324, %v1326
    %v1329 = vsel %vm1327, %v1322, %v1324
    %v1330 = vsel %vm1327, %v1320, %v1322
    %v1331 = vsel %vm1327, %v1326, %v1320
    %v1332 = vsel %vm66, 1, 0
    %v1333 = vlaneseq
    %v1334 = vshrl.u32 %v1333, 7
    %v1335 = vsub.s32 0, %v1334
    %v1336 = vrot.slane %v1332, %v1335
    %v1337 = vlaneseq
    %v1338 = vshrl.u32 %v1337, 7
    %v1339 = vsub.s32 1, %v1338
    %v1340 = vrot.slane %v1332, %v1339
    %v1341 = vlaneseq
    %v1342 = vshrl.u32 %v1341, 7
    %v1343 = vsub.s32 2, %v1342
    %v1344 = vrot.slane %v1332, %v1343
    %v1345 = vlaneseq
    %v1346 = vshrl.u32 %v1345, 7
    %v1347 = vsub.s32 3, %v1346
    %v1348 = vrot.slane %v1332, %v1347
    %vm1349 = vcmp.eq.s32.totalorder %v1336, 1
    %vm1350 = vcmp.eq.s32.totalorder %v1340, 1
    %vm1351 = vcmp.eq.s32.totalorder %v1344, 1
    %vm1352 = vcmp.eq.s32.totalorder %v1348, 1
    %v1353 = vsel %vm1349, %v1330, 0.0
    %v1354 = vsel %vm1350, %v1329, 0.0
    %v1355 = vsel %vm1351, %v1328, 0.0
    %v1356 = vsel %vm1352, %v1331, 0.0
    %v1357 = vlaneseq
    %v1358 = vshrl.u32 %v1357, 7
    %v1359 = vsub.s32 0, %v1358
    %v1360 = vrot.slane %v1353, %v1359
    %v1361 = vlaneseq
    %v1362 = vshrl.u32 %v1361, 7
    %v1363 = vsub.s32 0, %v1362
    %v1364 = vrot.slane %v1354, %v1363
    %v1365 = vlaneseq
    %v1366 = vshrl.u32 %v1365, 7
    %v1367 = vsub.s32 0, %v1366
    %v1368 = vrot.slane %v1355, %v1367
    %v1369 = vlaneseq
    %v1370 = vshrl.u32 %v1369, 7
    %v1371 = vsub.s32 0, %v1370
    %v1372 = vrot.slane %v1356, %v1371
    %1373 = vset.pattern.permute.xlu0 8
    %1374 = vperm.xlu0 %1373, %v67
    %v1375 = vpop.permute.xlu0 %1374
    %v1377 = vmul.f32 %v1360, %v1375
    %v1378 = vmul.f32 %v1364, %v1375
    %v1379 = vmul.f32 %v1368, %v1375
    %v1380 = vmul.f32 %v1372, %v1375
    %v1381 = vadd.f32 %v1315, %v1377
    %v1382 = vadd.f32 %v1316, %v1378
    %v1383 = vadd.f32 %v1317, %v1379
    %v1384 = vadd.f32 %v1318, %v1380
    %v1385 = vlaneseq
    %v1386 = vshrl.u32 %v1385, 7
    %v1387 = vsub.s32 1, %v1386
    %v1388 = vrot.slane %v1353, %v1387
    %v1389 = vlaneseq
    %v1390 = vshrl.u32 %v1389, 7
    %v1391 = vsub.s32 1, %v1390
    %v1392 = vrot.slane %v1354, %v1391
    %v1393 = vlaneseq
    %v1394 = vshrl.u32 %v1393, 7
    %v1395 = vsub.s32 1, %v1394
    %v1396 = vrot.slane %v1355, %v1395
    %v1397 = vlaneseq
    %v1398 = vshrl.u32 %v1397, 7
    %v1399 = vsub.s32 1, %v1398
    %v1400 = vrot.slane %v1356, %v1399
    %1401 = vset.pattern.permute.xlu0 17
    %1402 = vperm.xlu0 %1401, %v67
    %v1403 = vpop.permute.xlu0 %1402
    %v1405 = vmul.f32 %v1388, %v1403
    %v1406 = vmul.f32 %v1392, %v1403
    %v1407 = vmul.f32 %v1396, %v1403
    %v1408 = vmul.f32 %v1400, %v1403
    %v1409 = vadd.f32 %v1381, %v1405
    %v1410 = vadd.f32 %v1382, %v1406
    %v1411 = vadd.f32 %v1383, %v1407
    %v1412 = vadd.f32 %v1384, %v1408
    %v1413 = vlaneseq
    %v1414 = vshrl.u32 %v1413, 7
    %v1415 = vsub.s32 2, %v1414
    %v1416 = vrot.slane %v1353, %v1415
    %v1417 = vlaneseq
    %v1418 = vshrl.u32 %v1417, 7
    %v1419 = vsub.s32 2, %v1418
    %v1420 = vrot.slane %v1354, %v1419
    %v1421 = vlaneseq
    %v1422 = vshrl.u32 %v1421, 7
    %v1423 = vsub.s32 2, %v1422
    %v1424 = vrot.slane %v1355, %v1423
    %v1425 = vlaneseq
    %v1426 = vshrl.u32 %v1425, 7
    %v1427 = vsub.s32 2, %v1426
    %v1428 = vrot.slane %v1356, %v1427
    %1429 = vset.pattern.permute.xlu0 26
    %1430 = vperm.xlu0 %1429, %v67
    %v1431 = vpop.permute.xlu0 %1430
    %v1433 = vmul.f32 %v1416, %v1431
    %v1434 = vmul.f32 %v1420, %v1431
    %v1435 = vmul.f32 %v1424, %v1431
    %v1436 = vmul.f32 %v1428, %v1431
    %v1437 = vadd.f32 %v1409, %v1433
    %v1438 = vadd.f32 %v1410, %v1434
    %v1439 = vadd.f32 %v1411, %v1435
    %v1440 = vadd.f32 %v1412, %v1436
    %v1441 = vlaneseq
    %v1442 = vshrl.u32 %v1441, 7
    %v1443 = vsub.s32 3, %v1442
    %v1444 = vrot.slane %v1353, %v1443
    %v1445 = vlaneseq
    %v1446 = vshrl.u32 %v1445, 7
    %v1447 = vsub.s32 3, %v1446
    %v1448 = vrot.slane %v1354, %v1447
    %v1449 = vlaneseq
    %v1450 = vshrl.u32 %v1449, 7
    %v1451 = vsub.s32 3, %v1450
    %v1452 = vrot.slane %v1355, %v1451
    %v1453 = vlaneseq
    %v1454 = vshrl.u32 %v1453, 7
    %v1455 = vsub.s32 3, %v1454
    %v1456 = vrot.slane %v1356, %v1455
    %1457 = vset.pattern.permute.xlu0 35
    %1458 = vperm.xlu0 %1457, %v67
    %v1459 = vpop.permute.xlu0 %1458
    %v1461 = vmul.f32 %v1444, %v1459
    %v1462 = vmul.f32 %v1448, %v1459
    %v1463 = vmul.f32 %v1452, %v1459
    %v1464 = vmul.f32 %v1456, %v1459
    %v1465 = vadd.f32 %v1437, %v1461
    %v1466 = vadd.f32 %v1438, %v1462
    %v1467 = vadd.f32 %v1439, %v1463
    %v1468 = vadd.f32 %v1440, %v1464
    %v1469 = vld [vmem:[%s4] sm:$0xf]
    %v1470 = vld [vmem:[%s5] sm:$0xf]
    %vm1471 = vcmask 1043456
    %v1472 = vsel %vm1471, %v1465, 0.0
    %v1473 = vsel %vm1471, %v1466, 0.0
    %v1474 = vadd.f32 %v1472, %v1473
    %v1475 = vsel %vm1471, %v1467, 0.0
    %v1476 = vadd.f32 %v1474, %v1475
    %v1477 = vsel %vm1471, %v1468, 0.0
    %v1478 = vadd.f32 %v1476, %v1477
    %1479 = vadd.xlane.f32.xlu0 %v1478
    %v1480 = vpop.xlane.xlu0 %1479
    %v1481 = vmul.f32 %v1465, %v1465
    %v1482 = vmul.f32 %v1466, %v1466
    %v1483 = vmul.f32 %v1467, %v1467
    %v1484 = vmul.f32 %v1468, %v1468
    %v1485 = vsel %vm1471, %v1481, 0.0
    %v1486 = vsel %vm1471, %v1482, 0.0
    %v1487 = vadd.f32 %v1485, %v1486
    %v1488 = vsel %vm1471, %v1483, 0.0
    %v1489 = vadd.f32 %v1487, %v1488
    %v1490 = vsel %vm1471, %v1484, 0.0
    %v1491 = vadd.f32 %v1489, %v1490
    %1492 = vadd.xlane.f32.xlu0 %v1491
    %v1493 = vpop.xlane.xlu0 %1492
    %v1494 = vmul.f32 %v1480, 0.001953125
    %v1495 = vmul.f32 %v1493, 0.001953125
    %v1496 = vmul.f32 %v1494, %v1494
    %v1497 = vsub.f32 %v1495, %v1496
    %v1498 = vadd.f32 %v1497, 1e-05
    %v1499 = vrsqrt.pop %v1498
    %v1500 = vmul.f32 %v1469, %v1499
    %v1501 = vmul.f32 %v1494, %v1500
    %v1502 = vsub.f32 %v1470, %v1501
    %1504 = vset.pattern.permute.xlu0 0
    %1505 = vperm.xlu0 %1504, %v1500
    %v1506 = vpop.permute.xlu0 %1505
    %v1508 = vmul.f32 %v1465, %v1506
    %v1509 = vmul.f32 %v1466, %v1506
    %v1510 = vmul.f32 %v1467, %v1506
    %v1511 = vmul.f32 %v1468, %v1506
    %1513 = vset.pattern.permute.xlu0 0
    %1514 = vperm.xlu0 %1513, %v1502
    %v1515 = vpop.permute.xlu0 %1514
    %v1517 = vadd.f32 %v1508, %v1515
    %v1518 = vadd.f32 %v1509, %v1515
    %v1519 = vadd.f32 %v1510, %v1515
    %v1520 = vadd.f32 %v1511, %v1515
    %v1521 = vmul.f32 %v1517, 0.5
    %v1522 = vmul.f32 %v1518, 0.5
    %v1523 = vmul.f32 %v1519, 0.5
    %v1524 = vmul.f32 %v1520, 0.5
    %v1525 = vmul.f32 %v1517, 0.70710677
    %v1526 = vmul.f32 %v1518, 0.70710677
    %v1527 = vmul.f32 %v1519, 0.70710677
    %v1528 = vmul.f32 %v1520, 0.70710677
    %vm1529 = vcmp.ge.f32.partialorder %v1525, 0.0
    %vm1530 = vcmp.ge.f32.partialorder %v1526, 0.0
    %vm1531 = vcmp.ge.f32.partialorder %v1527, 0.0
    %vm1532 = vcmp.ge.f32.partialorder %v1528, 0.0
    %v1533 = vsel %vm1529, 1.0, -1.0
    %v1534 = vsel %vm1530, 1.0, -1.0
    %v1535 = vsel %vm1531, 1.0, -1.0
    %v1536 = vsel %vm1532, 1.0, -1.0
    %v1537 = vand.u32 2147483647, %v1525
    %v1538 = vand.u32 2147483647, %v1526
    %v1539 = vand.u32 2147483647, %v1527
    %v1540 = vand.u32 2147483647, %v1528
    %v1541 = vmul.f32 %v1537, 0.3275911
    %v1542 = vmul.f32 %v1538, 0.3275911
    %v1543 = vmul.f32 %v1539, 0.3275911
    %v1544 = vmul.f32 %v1540, 0.3275911
    %v1545 = vadd.f32 %v1541, 1.0
    %v1546 = vadd.f32 %v1542, 1.0
    %v1547 = vadd.f32 %v1543, 1.0
    %v1548 = vadd.f32 %v1544, 1.0
    %v1549 = vrcp.pop %v1545
    %v1550 = vmul.f32 1.0, %v1549
    %v1551 = vrcp.pop %v1546
    %v1552 = vmul.f32 1.0, %v1551
    %v1553 = vrcp.pop %v1547
    %v1554 = vmul.f32 1.0, %v1553
    %v1555 = vrcp.pop %v1548
    %v1556 = vmul.f32 1.0, %v1555
    %v1557 = vmul.f32 %v1550, 1.0614054
    %v1558 = vmul.f32 %v1552, 1.0614054
    %v1559 = vmul.f32 %v1554, 1.0614054
    %v1560 = vmul.f32 %v1556, 1.0614054
    %v1561 = vadd.f32 %v1557, -1.4531521
    %v1562 = vadd.f32 %v1558, -1.4531521
    %v1563 = vadd.f32 %v1559, -1.4531521
    %v1564 = vadd.f32 %v1560, -1.4531521
    %v1565 = vmul.f32 %v1550, %v1561
    %v1566 = vmul.f32 %v1552, %v1562
    %v1567 = vmul.f32 %v1554, %v1563
    %v1568 = vmul.f32 %v1556, %v1564
    %v1569 = vadd.f32 %v1565, 1.4214138
    %v1570 = vadd.f32 %v1566, 1.4214138
    %v1571 = vadd.f32 %v1567, 1.4214138
    %v1572 = vadd.f32 %v1568, 1.4214138
    %v1573 = vmul.f32 %v1550, %v1569
    %v1574 = vmul.f32 %v1552, %v1570
    %v1575 = vmul.f32 %v1554, %v1571
    %v1576 = vmul.f32 %v1556, %v1572
    %v1577 = vadd.f32 %v1573, -0.28449672
    %v1578 = vadd.f32 %v1574, -0.28449672
    %v1579 = vadd.f32 %v1575, -0.28449672
    %v1580 = vadd.f32 %v1576, -0.28449672
    %v1581 = vmul.f32 %v1550, %v1577
    %v1582 = vmul.f32 %v1552, %v1578
    %v1583 = vmul.f32 %v1554, %v1579
    %v1584 = vmul.f32 %v1556, %v1580
    %v1585 = vadd.f32 %v1581, 0.2548296
    %v1586 = vadd.f32 %v1582, 0.2548296
    %v1587 = vadd.f32 %v1583, 0.2548296
    %v1588 = vadd.f32 %v1584, 0.2548296
    %v1589 = vmul.f32 %v1550, %v1585
    %v1590 = vmul.f32 %v1552, %v1586
    %v1591 = vmul.f32 %v1554, %v1587
    %v1592 = vmul.f32 %v1556, %v1588
    %v1593 = vsub.f32 0.0, %v1537
    %v1594 = vsub.f32 0.0, %v1538
    %v1595 = vsub.f32 0.0, %v1539
    %v1596 = vsub.f32 0.0, %v1540
    %v1597 = vmul.f32 %v1593, %v1537
    %v1598 = vmul.f32 %v1594, %v1538
    %v1599 = vmul.f32 %v1595, %v1539
    %v1600 = vmul.f32 %v1596, %v1540
    %v1601 = vmul.f32 %v1597, 1.442695
    %v1602 = vpow.pop %v1601
    %v1603 = vmul.f32 %v1598, 1.442695
    %v1604 = vpow.pop %v1603
    %v1605 = vmul.f32 %v1599, 1.442695
    %v1606 = vpow.pop %v1605
    %v1607 = vmul.f32 %v1600, 1.442695
    %v1608 = vpow.pop %v1607
    %v1609 = vmul.f32 %v1589, %v1602
    %v1610 = vmul.f32 %v1590, %v1604
    %v1611 = vmul.f32 %v1591, %v1606
    %v1612 = vmul.f32 %v1592, %v1608
    %v1613 = vsub.f32 1.0, %v1609
    %v1614 = vsub.f32 1.0, %v1610
    %v1615 = vsub.f32 1.0, %v1611
    %v1616 = vsub.f32 1.0, %v1612
    %v1617 = vmul.f32 %v1533, %v1613
    %v1618 = vmul.f32 %v1534, %v1614
    %v1619 = vmul.f32 %v1535, %v1615
    %v1620 = vmul.f32 %v1536, %v1616
    %v1621 = vadd.f32 %v1617, 1.0
    %v1622 = vadd.f32 %v1618, 1.0
    %v1623 = vadd.f32 %v1619, 1.0
    %v1624 = vadd.f32 %v1620, 1.0
    %v1625 = vmul.f32 %v1521, %v1621
    %v1626 = vmul.f32 %v1522, %v1622
    %v1627 = vmul.f32 %v1523, %v1623
    %v1628 = vmul.f32 %v1524, %v1624
    %v1629 = vld [vmem:[%s3] sm:$0xf]
    %1630 = vrot.lane.b32.xlu0 %v1625, 17
    %v1631 = vpop.permute.xlu0 %1630
    %1632 = vrot.lane.b32.xlu0 %v1626, 17
    %v1633 = vpop.permute.xlu0 %1632
    %1634 = vrot.lane.b32.xlu0 %v1627, 17
    %v1635 = vpop.permute.xlu0 %1634
    %1636 = vrot.lane.b32.xlu0 %v1628, 17
    %v1637 = vpop.permute.xlu0 %1636
    %v1638 = vsel %vm84, %v1635, %v1637
    %v1639 = vsel %vm84, %v1633, %v1635
    %v1640 = vsel %vm84, %v1631, %v1633
    %v1641 = vsel %vm84, %v1637, %v1631
    %v1642 = vsel %vm106, %v1641, 0.0
    %v1643 = vsel %vm107, %v1640, 0.0
    %v1644 = vsel %vm108, %v1639, 0.0
    %v1645 = vsel %vm109, %v1638, 0.0
    %v1646 = vlaneseq
    %v1647 = vshrl.u32 %v1646, 7
    %v1648 = vsub.s32 0, %v1647
    %v1649 = vrot.slane %v1642, %v1648
    %v1650 = vlaneseq
    %v1651 = vshrl.u32 %v1650, 7
    %v1652 = vsub.s32 0, %v1651
    %v1653 = vrot.slane %v1643, %v1652
    %v1654 = vlaneseq
    %v1655 = vshrl.u32 %v1654, 7
    %v1656 = vsub.s32 0, %v1655
    %v1657 = vrot.slane %v1644, %v1656
    %v1658 = vlaneseq
    %v1659 = vshrl.u32 %v1658, 7
    %v1660 = vsub.s32 0, %v1659
    %v1661 = vrot.slane %v1645, %v1660
    %1663 = vset.pattern.permute.xlu0 0
    %1664 = vperm.xlu0 %1663, %v1629
    %v1665 = vpop.permute.xlu0 %1664
    %v1667 = vmul.f32 %v1649, %v1665
    %v1668 = vmul.f32 %v1653, %v1665
    %v1669 = vmul.f32 %v1657, %v1665
    %v1670 = vmul.f32 %v1661, %v1665
    %v1671 = vadd.f32 %v1667, 0.0
    %v1672 = vadd.f32 %v1668, 0.0
    %v1673 = vadd.f32 %v1669, 0.0
    %v1674 = vadd.f32 %v1670, 0.0
    %v1675 = vlaneseq
    %v1676 = vshrl.u32 %v1675, 7
    %v1677 = vsub.s32 1, %v1676
    %v1678 = vrot.slane %v1642, %v1677
    %v1679 = vlaneseq
    %v1680 = vshrl.u32 %v1679, 7
    %v1681 = vsub.s32 1, %v1680
    %v1682 = vrot.slane %v1643, %v1681
    %v1683 = vlaneseq
    %v1684 = vshrl.u32 %v1683, 7
    %v1685 = vsub.s32 1, %v1684
    %v1686 = vrot.slane %v1644, %v1685
    %v1687 = vlaneseq
    %v1688 = vshrl.u32 %v1687, 7
    %v1689 = vsub.s32 1, %v1688
    %v1690 = vrot.slane %v1645, %v1689
    %1691 = vset.pattern.permute.xlu0 9
    %1692 = vperm.xlu0 %1691, %v1629
    %v1693 = vpop.permute.xlu0 %1692
    %v1695 = vmul.f32 %v1678, %v1693
    %v1696 = vmul.f32 %v1682, %v1693
    %v1697 = vmul.f32 %v1686, %v1693
    %v1698 = vmul.f32 %v1690, %v1693
    %v1699 = vadd.f32 %v1671, %v1695
    %v1700 = vadd.f32 %v1672, %v1696
    %v1701 = vadd.f32 %v1673, %v1697
    %v1702 = vadd.f32 %v1674, %v1698
    %v1703 = vlaneseq
    %v1704 = vshrl.u32 %v1703, 7
    %v1705 = vsub.s32 2, %v1704
    %v1706 = vrot.slane %v1642, %v1705
    %v1707 = vlaneseq
    %v1708 = vshrl.u32 %v1707, 7
    %v1709 = vsub.s32 2, %v1708
    %v1710 = vrot.slane %v1643, %v1709
    %v1711 = vlaneseq
    %v1712 = vshrl.u32 %v1711, 7
    %v1713 = vsub.s32 2, %v1712
    %v1714 = vrot.slane %v1644, %v1713
    %v1715 = vlaneseq
    %v1716 = vshrl.u32 %v1715, 7
    %v1717 = vsub.s32 2, %v1716
    %v1718 = vrot.slane %v1645, %v1717
    %1719 = vset.pattern.permute.xlu0 18
    %1720 = vperm.xlu0 %1719, %v1629
    %v1721 = vpop.permute.xlu0 %1720
    %v1723 = vmul.f32 %v1706, %v1721
    %v1724 = vmul.f32 %v1710, %v1721
    %v1725 = vmul.f32 %v1714, %v1721
    %v1726 = vmul.f32 %v1718, %v1721
    %v1727 = vadd.f32 %v1699, %v1723
    %v1728 = vadd.f32 %v1700, %v1724
    %v1729 = vadd.f32 %v1701, %v1725
    %v1730 = vadd.f32 %v1702, %v1726
    %v1731 = vlaneseq
    %v1732 = vshrl.u32 %v1731, 7
    %v1733 = vsub.s32 3, %v1732
    %v1734 = vrot.slane %v1642, %v1733
    %v1735 = vlaneseq
    %v1736 = vshrl.u32 %v1735, 7
    %v1737 = vsub.s32 3, %v1736
    %v1738 = vrot.slane %v1643, %v1737
    %v1739 = vlaneseq
    %v1740 = vshrl.u32 %v1739, 7
    %v1741 = vsub.s32 3, %v1740
    %v1742 = vrot.slane %v1644, %v1741
    %v1743 = vlaneseq
    %v1744 = vshrl.u32 %v1743, 7
    %v1745 = vsub.s32 3, %v1744
    %v1746 = vrot.slane %v1645, %v1745
    %1747 = vset.pattern.permute.xlu0 27
    %1748 = vperm.xlu0 %1747, %v1629
    %v1749 = vpop.permute.xlu0 %1748
    %v1751 = vmul.f32 %v1734, %v1749
    %v1752 = vmul.f32 %v1738, %v1749
    %v1753 = vmul.f32 %v1742, %v1749
    %v1754 = vmul.f32 %v1746, %v1749
    %v1755 = vadd.f32 %v1727, %v1751
    %v1756 = vadd.f32 %v1728, %v1752
    %v1757 = vadd.f32 %v1729, %v1753
    %v1758 = vadd.f32 %v1730, %v1754
    %1759 = vrot.lane.b32.xlu0 %v1625, 16
    %v1760 = vpop.permute.xlu0 %1759
    %1761 = vrot.lane.b32.xlu0 %v1626, 16
    %v1762 = vpop.permute.xlu0 %1761
    %1763 = vrot.lane.b32.xlu0 %v1627, 16
    %v1764 = vpop.permute.xlu0 %1763
    %1765 = vrot.lane.b32.xlu0 %v1628, 16
    %v1766 = vpop.permute.xlu0 %1765
    %v1767 = vsel %vm235, %v1764, %v1766
    %v1768 = vsel %vm235, %v1762, %v1764
    %v1769 = vsel %vm235, %v1760, %v1762
    %v1770 = vsel %vm235, %v1766, %v1760
    %v1771 = vsel %vm257, %v1770, 0.0
    %v1772 = vsel %vm258, %v1769, 0.0
    %v1773 = vsel %vm259, %v1768, 0.0
    %v1774 = vsel %vm260, %v1767, 0.0
    %v1775 = vlaneseq
    %v1776 = vshrl.u32 %v1775, 7
    %v1777 = vsub.s32 0, %v1776
    %v1778 = vrot.slane %v1771, %v1777
    %v1779 = vlaneseq
    %v1780 = vshrl.u32 %v1779, 7
    %v1781 = vsub.s32 0, %v1780
    %v1782 = vrot.slane %v1772, %v1781
    %v1783 = vlaneseq
    %v1784 = vshrl.u32 %v1783, 7
    %v1785 = vsub.s32 0, %v1784
    %v1786 = vrot.slane %v1773, %v1785
    %v1787 = vlaneseq
    %v1788 = vshrl.u32 %v1787, 7
    %v1789 = vsub.s32 0, %v1788
    %v1790 = vrot.slane %v1774, %v1789
    %1791 = vset.pattern.permute.xlu0 1
    %1792 = vperm.xlu0 %1791, %v1629
    %v1793 = vpop.permute.xlu0 %1792
    %v1795 = vmul.f32 %v1778, %v1793
    %v1796 = vmul.f32 %v1782, %v1793
    %v1797 = vmul.f32 %v1786, %v1793
    %v1798 = vmul.f32 %v1790, %v1793
    %v1799 = vadd.f32 %v1755, %v1795
    %v1800 = vadd.f32 %v1756, %v1796
    %v1801 = vadd.f32 %v1757, %v1797
    %v1802 = vadd.f32 %v1758, %v1798
    %v1803 = vlaneseq
    %v1804 = vshrl.u32 %v1803, 7
    %v1805 = vsub.s32 1, %v1804
    %v1806 = vrot.slane %v1771, %v1805
    %v1807 = vlaneseq
    %v1808 = vshrl.u32 %v1807, 7
    %v1809 = vsub.s32 1, %v1808
    %v1810 = vrot.slane %v1772, %v1809
    %v1811 = vlaneseq
    %v1812 = vshrl.u32 %v1811, 7
    %v1813 = vsub.s32 1, %v1812
    %v1814 = vrot.slane %v1773, %v1813
    %v1815 = vlaneseq
    %v1816 = vshrl.u32 %v1815, 7
    %v1817 = vsub.s32 1, %v1816
    %v1818 = vrot.slane %v1774, %v1817
    %1819 = vset.pattern.permute.xlu0 10
    %1820 = vperm.xlu0 %1819, %v1629
    %v1821 = vpop.permute.xlu0 %1820
    %v1823 = vmul.f32 %v1806, %v1821
    %v1824 = vmul.f32 %v1810, %v1821
    %v1825 = vmul.f32 %v1814, %v1821
    %v1826 = vmul.f32 %v1818, %v1821
    %v1827 = vadd.f32 %v1799, %v1823
    %v1828 = vadd.f32 %v1800, %v1824
    %v1829 = vadd.f32 %v1801, %v1825
    %v1830 = vadd.f32 %v1802, %v1826
    %v1831 = vlaneseq
    %v1832 = vshrl.u32 %v1831, 7
    %v1833 = vsub.s32 2, %v1832
    %v1834 = vrot.slane %v1771, %v1833
    %v1835 = vlaneseq
    %v1836 = vshrl.u32 %v1835, 7
    %v1837 = vsub.s32 2, %v1836
    %v1838 = vrot.slane %v1772, %v1837
    %v1839 = vlaneseq
    %v1840 = vshrl.u32 %v1839, 7
    %v1841 = vsub.s32 2, %v1840
    %v1842 = vrot.slane %v1773, %v1841
    %v1843 = vlaneseq
    %v1844 = vshrl.u32 %v1843, 7
    %v1845 = vsub.s32 2, %v1844
    %v1846 = vrot.slane %v1774, %v1845
    %1847 = vset.pattern.permute.xlu0 19
    %1848 = vperm.xlu0 %1847, %v1629
    %v1849 = vpop.permute.xlu0 %1848
    %v1851 = vmul.f32 %v1834, %v1849
    %v1852 = vmul.f32 %v1838, %v1849
    %v1853 = vmul.f32 %v1842, %v1849
    %v1854 = vmul.f32 %v1846, %v1849
    %v1855 = vadd.f32 %v1827, %v1851
    %v1856 = vadd.f32 %v1828, %v1852
    %v1857 = vadd.f32 %v1829, %v1853
    %v1858 = vadd.f32 %v1830, %v1854
    %v1859 = vlaneseq
    %v1860 = vshrl.u32 %v1859, 7
    %v1861 = vsub.s32 3, %v1860
    %v1862 = vrot.slane %v1771, %v1861
    %v1863 = vlaneseq
    %v1864 = vshrl.u32 %v1863, 7
    %v1865 = vsub.s32 3, %v1864
    %v1866 = vrot.slane %v1772, %v1865
    %v1867 = vlaneseq
    %v1868 = vshrl.u32 %v1867, 7
    %v1869 = vsub.s32 3, %v1868
    %v1870 = vrot.slane %v1773, %v1869
    %v1871 = vlaneseq
    %v1872 = vshrl.u32 %v1871, 7
    %v1873 = vsub.s32 3, %v1872
    %v1874 = vrot.slane %v1774, %v1873
    %1875 = vset.pattern.permute.xlu0 28
    %1876 = vperm.xlu0 %1875, %v1629
    %v1877 = vpop.permute.xlu0 %1876
    %v1879 = vmul.f32 %v1862, %v1877
    %v1880 = vmul.f32 %v1866, %v1877
    %v1881 = vmul.f32 %v1870, %v1877
    %v1882 = vmul.f32 %v1874, %v1877
    %v1883 = vadd.f32 %v1855, %v1879
    %v1884 = vadd.f32 %v1856, %v1880
    %v1885 = vadd.f32 %v1857, %v1881
    %v1886 = vadd.f32 %v1858, %v1882
    %1887 = vrot.lane.b32.xlu0 %v1625, 15
    %v1888 = vpop.permute.xlu0 %1887
    %1889 = vrot.lane.b32.xlu0 %v1626, 15
    %v1890 = vpop.permute.xlu0 %1889
    %1891 = vrot.lane.b32.xlu0 %v1627, 15
    %v1892 = vpop.permute.xlu0 %1891
    %1893 = vrot.lane.b32.xlu0 %v1628, 15
    %v1894 = vpop.permute.xlu0 %1893
    %v1895 = vsel %vm385, %v1892, %v1894
    %v1896 = vsel %vm385, %v1890, %v1892
    %v1897 = vsel %vm385, %v1888, %v1890
    %v1898 = vsel %vm385, %v1894, %v1888
    %v1899 = vsel %vm407, %v1898, 0.0
    %v1900 = vsel %vm408, %v1897, 0.0
    %v1901 = vsel %vm409, %v1896, 0.0
    %v1902 = vsel %vm410, %v1895, 0.0
    %v1903 = vlaneseq
    %v1904 = vshrl.u32 %v1903, 7
    %v1905 = vsub.s32 0, %v1904
    %v1906 = vrot.slane %v1899, %v1905
    %v1907 = vlaneseq
    %v1908 = vshrl.u32 %v1907, 7
    %v1909 = vsub.s32 0, %v1908
    %v1910 = vrot.slane %v1900, %v1909
    %v1911 = vlaneseq
    %v1912 = vshrl.u32 %v1911, 7
    %v1913 = vsub.s32 0, %v1912
    %v1914 = vrot.slane %v1901, %v1913
    %v1915 = vlaneseq
    %v1916 = vshrl.u32 %v1915, 7
    %v1917 = vsub.s32 0, %v1916
    %v1918 = vrot.slane %v1902, %v1917
    %1919 = vset.pattern.permute.xlu0 2
    %1920 = vperm.xlu0 %1919, %v1629
    %v1921 = vpop.permute.xlu0 %1920
    %v1923 = vmul.f32 %v1906, %v1921
    %v1924 = vmul.f32 %v1910, %v1921
    %v1925 = vmul.f32 %v1914, %v1921
    %v1926 = vmul.f32 %v1918, %v1921
    %v1927 = vadd.f32 %v1883, %v1923
    %v1928 = vadd.f32 %v1884, %v1924
    %v1929 = vadd.f32 %v1885, %v1925
    %v1930 = vadd.f32 %v1886, %v1926
    %v1931 = vlaneseq
    %v1932 = vshrl.u32 %v1931, 7
    %v1933 = vsub.s32 1, %v1932
    %v1934 = vrot.slane %v1899, %v1933
    %v1935 = vlaneseq
    %v1936 = vshrl.u32 %v1935, 7
    %v1937 = vsub.s32 1, %v1936
    %v1938 = vrot.slane %v1900, %v1937
    %v1939 = vlaneseq
    %v1940 = vshrl.u32 %v1939, 7
    %v1941 = vsub.s32 1, %v1940
    %v1942 = vrot.slane %v1901, %v1941
    %v1943 = vlaneseq
    %v1944 = vshrl.u32 %v1943, 7
    %v1945 = vsub.s32 1, %v1944
    %v1946 = vrot.slane %v1902, %v1945
    %1947 = vset.pattern.permute.xlu0 11
    %1948 = vperm.xlu0 %1947, %v1629
    %v1949 = vpop.permute.xlu0 %1948
    %v1951 = vmul.f32 %v1934, %v1949
    %v1952 = vmul.f32 %v1938, %v1949
    %v1953 = vmul.f32 %v1942, %v1949
    %v1954 = vmul.f32 %v1946, %v1949
    %v1955 = vadd.f32 %v1927, %v1951
    %v1956 = vadd.f32 %v1928, %v1952
    %v1957 = vadd.f32 %v1929, %v1953
    %v1958 = vadd.f32 %v1930, %v1954
    %v1959 = vlaneseq
    %v1960 = vshrl.u32 %v1959, 7
    %v1961 = vsub.s32 2, %v1960
    %v1962 = vrot.slane %v1899, %v1961
    %v1963 = vlaneseq
    %v1964 = vshrl.u32 %v1963, 7
    %v1965 = vsub.s32 2, %v1964
    %v1966 = vrot.slane %v1900, %v1965
    %v1967 = vlaneseq
    %v1968 = vshrl.u32 %v1967, 7
    %v1969 = vsub.s32 2, %v1968
    %v1970 = vrot.slane %v1901, %v1969
    %v1971 = vlaneseq
    %v1972 = vshrl.u32 %v1971, 7
    %v1973 = vsub.s32 2, %v1972
    %v1974 = vrot.slane %v1902, %v1973
    %1975 = vset.pattern.permute.xlu0 20
    %1976 = vperm.xlu0 %1975, %v1629
    %v1977 = vpop.permute.xlu0 %1976
    %v1979 = vmul.f32 %v1962, %v1977
    %v1980 = vmul.f32 %v1966, %v1977
    %v1981 = vmul.f32 %v1970, %v1977
    %v1982 = vmul.f32 %v1974, %v1977
    %v1983 = vadd.f32 %v1955, %v1979
    %v1984 = vadd.f32 %v1956, %v1980
    %v1985 = vadd.f32 %v1957, %v1981
    %v1986 = vadd.f32 %v1958, %v1982
    %v1987 = vlaneseq
    %v1988 = vshrl.u32 %v1987, 7
    %v1989 = vsub.s32 3, %v1988
    %v1990 = vrot.slane %v1899, %v1989
    %v1991 = vlaneseq
    %v1992 = vshrl.u32 %v1991, 7
    %v1993 = vsub.s32 3, %v1992
    %v1994 = vrot.slane %v1900, %v1993
    %v1995 = vlaneseq
    %v1996 = vshrl.u32 %v1995, 7
    %v1997 = vsub.s32 3, %v1996
    %v1998 = vrot.slane %v1901, %v1997
    %v1999 = vlaneseq
    %v2000 = vshrl.u32 %v1999, 7
    %v2001 = vsub.s32 3, %v2000
    %v2002 = vrot.slane %v1902, %v2001
    %2003 = vset.pattern.permute.xlu0 29
    %2004 = vperm.xlu0 %2003, %v1629
    %v2005 = vpop.permute.xlu0 %2004
    %v2007 = vmul.f32 %v1990, %v2005
    %v2008 = vmul.f32 %v1994, %v2005
    %v2009 = vmul.f32 %v1998, %v2005
    %v2010 = vmul.f32 %v2002, %v2005
    %v2011 = vadd.f32 %v1983, %v2007
    %v2012 = vadd.f32 %v1984, %v2008
    %v2013 = vadd.f32 %v1985, %v2009
    %v2014 = vadd.f32 %v1986, %v2010
    %2015 = vrot.lane.b32.xlu0 %v1625, 1
    %v2016 = vpop.permute.xlu0 %2015
    %2017 = vrot.lane.b32.xlu0 %v1626, 1
    %v2018 = vpop.permute.xlu0 %2017
    %2019 = vrot.lane.b32.xlu0 %v1627, 1
    %v2020 = vpop.permute.xlu0 %2019
    %2021 = vrot.lane.b32.xlu0 %v1628, 1
    %v2022 = vpop.permute.xlu0 %2021
    %v2023 = vsel %vm535, %v2020, %v2022
    %v2024 = vsel %vm535, %v2018, %v2020
    %v2025 = vsel %vm535, %v2016, %v2018
    %v2026 = vsel %vm535, %v2022, %v2016
    %v2027 = vsel %vm557, %v2026, 0.0
    %v2028 = vsel %vm558, %v2025, 0.0
    %v2029 = vsel %vm559, %v2024, 0.0
    %v2030 = vsel %vm560, %v2023, 0.0
    %v2031 = vlaneseq
    %v2032 = vshrl.u32 %v2031, 7
    %v2033 = vsub.s32 0, %v2032
    %v2034 = vrot.slane %v2027, %v2033
    %v2035 = vlaneseq
    %v2036 = vshrl.u32 %v2035, 7
    %v2037 = vsub.s32 0, %v2036
    %v2038 = vrot.slane %v2028, %v2037
    %v2039 = vlaneseq
    %v2040 = vshrl.u32 %v2039, 7
    %v2041 = vsub.s32 0, %v2040
    %v2042 = vrot.slane %v2029, %v2041
    %v2043 = vlaneseq
    %v2044 = vshrl.u32 %v2043, 7
    %v2045 = vsub.s32 0, %v2044
    %v2046 = vrot.slane %v2030, %v2045
    %2047 = vset.pattern.permute.xlu0 3
    %2048 = vperm.xlu0 %2047, %v1629
    %v2049 = vpop.permute.xlu0 %2048
    %v2051 = vmul.f32 %v2034, %v2049
    %v2052 = vmul.f32 %v2038, %v2049
    %v2053 = vmul.f32 %v2042, %v2049
    %v2054 = vmul.f32 %v2046, %v2049
    %v2055 = vadd.f32 %v2011, %v2051
    %v2056 = vadd.f32 %v2012, %v2052
    %v2057 = vadd.f32 %v2013, %v2053
    %v2058 = vadd.f32 %v2014, %v2054
    %v2059 = vlaneseq
    %v2060 = vshrl.u32 %v2059, 7
    %v2061 = vsub.s32 1, %v2060
    %v2062 = vrot.slane %v2027, %v2061
    %v2063 = vlaneseq
    %v2064 = vshrl.u32 %v2063, 7
    %v2065 = vsub.s32 1, %v2064
    %v2066 = vrot.slane %v2028, %v2065
    %v2067 = vlaneseq
    %v2068 = vshrl.u32 %v2067, 7
    %v2069 = vsub.s32 1, %v2068
    %v2070 = vrot.slane %v2029, %v2069
    %v2071 = vlaneseq
    %v2072 = vshrl.u32 %v2071, 7
    %v2073 = vsub.s32 1, %v2072
    %v2074 = vrot.slane %v2030, %v2073
    %2075 = vset.pattern.permute.xlu0 12
    %2076 = vperm.xlu0 %2075, %v1629
    %v2077 = vpop.permute.xlu0 %2076
    %v2079 = vmul.f32 %v2062, %v2077
    %v2080 = vmul.f32 %v2066, %v2077
    %v2081 = vmul.f32 %v2070, %v2077
    %v2082 = vmul.f32 %v2074, %v2077
    %v2083 = vadd.f32 %v2055, %v2079
    %v2084 = vadd.f32 %v2056, %v2080
    %v2085 = vadd.f32 %v2057, %v2081
    %v2086 = vadd.f32 %v2058, %v2082
    %v2087 = vlaneseq
    %v2088 = vshrl.u32 %v2087, 7
    %v2089 = vsub.s32 2, %v2088
    %v2090 = vrot.slane %v2027, %v2089
    %v2091 = vlaneseq
    %v2092 = vshrl.u32 %v2091, 7
    %v2093 = vsub.s32 2, %v2092
    %v2094 = vrot.slane %v2028, %v2093
    %v2095 = vlaneseq
    %v2096 = vshrl.u32 %v2095, 7
    %v2097 = vsub.s32 2, %v2096
    %v2098 = vrot.slane %v2029, %v2097
    %v2099 = vlaneseq
    %v2100 = vshrl.u32 %v2099, 7
    %v2101 = vsub.s32 2, %v2100
    %v2102 = vrot.slane %v2030, %v2101
    %2103 = vset.pattern.permute.xlu0 21
    %2104 = vperm.xlu0 %2103, %v1629
    %v2105 = vpop.permute.xlu0 %2104
    %v2107 = vmul.f32 %v2090, %v2105
    %v2108 = vmul.f32 %v2094, %v2105
    %v2109 = vmul.f32 %v2098, %v2105
    %v2110 = vmul.f32 %v2102, %v2105
    %v2111 = vadd.f32 %v2083, %v2107
    %v2112 = vadd.f32 %v2084, %v2108
    %v2113 = vadd.f32 %v2085, %v2109
    %v2114 = vadd.f32 %v2086, %v2110
    %v2115 = vlaneseq
    %v2116 = vshrl.u32 %v2115, 7
    %v2117 = vsub.s32 3, %v2116
    %v2118 = vrot.slane %v2027, %v2117
    %v2119 = vlaneseq
    %v2120 = vshrl.u32 %v2119, 7
    %v2121 = vsub.s32 3, %v2120
    %v2122 = vrot.slane %v2028, %v2121
    %v2123 = vlaneseq
    %v2124 = vshrl.u32 %v2123, 7
    %v2125 = vsub.s32 3, %v2124
    %v2126 = vrot.slane %v2029, %v2125
    %v2127 = vlaneseq
    %v2128 = vshrl.u32 %v2127, 7
    %v2129 = vsub.s32 3, %v2128
    %v2130 = vrot.slane %v2030, %v2129
    %2131 = vset.pattern.permute.xlu0 30
    %2132 = vperm.xlu0 %2131, %v1629
    %v2133 = vpop.permute.xlu0 %2132
    %v2135 = vmul.f32 %v2118, %v2133
    %v2136 = vmul.f32 %v2122, %v2133
    %v2137 = vmul.f32 %v2126, %v2133
    %v2138 = vmul.f32 %v2130, %v2133
    %v2139 = vadd.f32 %v2111, %v2135
    %v2140 = vadd.f32 %v2112, %v2136
    %v2141 = vadd.f32 %v2113, %v2137
    %v2142 = vadd.f32 %v2114, %v2138
    %v2143 = vlaneseq
    %v2144 = vshrl.u32 %v2143, 7
    %v2145 = vsub.s32 0, %v2144
    %v2146 = vrot.slane %v1625, %v2145
    %v2147 = vlaneseq
    %v2148 = vshrl.u32 %v2147, 7
    %v2149 = vsub.s32 0, %v2148
    %v2150 = vrot.slane %v1626, %v2149
    %v2151 = vlaneseq
    %v2152 = vshrl.u32 %v2151, 7
    %v2153 = vsub.s32 0, %v2152
    %v2154 = vrot.slane %v1627, %v2153
    %v2155 = vlaneseq
    %v2156 = vshrl.u32 %v2155, 7
    %v2157 = vsub.s32 0, %v2156
    %v2158 = vrot.slane %v1628, %v2157
    %2159 = vset.pattern.permute.xlu0 4
    %2160 = vperm.xlu0 %2159, %v1629
    %v2161 = vpop.permute.xlu0 %2160
    %v2163 = vmul.f32 %v2146, %v2161
    %v2164 = vmul.f32 %v2150, %v2161
    %v2165 = vmul.f32 %v2154, %v2161
    %v2166 = vmul.f32 %v2158, %v2161
    %v2167 = vadd.f32 %v2139, %v2163
    %v2168 = vadd.f32 %v2140, %v2164
    %v2169 = vadd.f32 %v2141, %v2165
    %v2170 = vadd.f32 %v2142, %v2166
    %v2171 = vlaneseq
    %v2172 = vshrl.u32 %v2171, 7
    %v2173 = vsub.s32 1, %v2172
    %v2174 = vrot.slane %v1625, %v2173
    %v2175 = vlaneseq
    %v2176 = vshrl.u32 %v2175, 7
    %v2177 = vsub.s32 1, %v2176
    %v2178 = vrot.slane %v1626, %v2177
    %v2179 = vlaneseq
    %v2180 = vshrl.u32 %v2179, 7
    %v2181 = vsub.s32 1, %v2180
    %v2182 = vrot.slane %v1627, %v2181
    %v2183 = vlaneseq
    %v2184 = vshrl.u32 %v2183, 7
    %v2185 = vsub.s32 1, %v2184
    %v2186 = vrot.slane %v1628, %v2185
    %2187 = vset.pattern.permute.xlu0 13
    %2188 = vperm.xlu0 %2187, %v1629
    %v2189 = vpop.permute.xlu0 %2188
    %v2191 = vmul.f32 %v2174, %v2189
    %v2192 = vmul.f32 %v2178, %v2189
    %v2193 = vmul.f32 %v2182, %v2189
    %v2194 = vmul.f32 %v2186, %v2189
    %v2195 = vadd.f32 %v2167, %v2191
    %v2196 = vadd.f32 %v2168, %v2192
    %v2197 = vadd.f32 %v2169, %v2193
    %v2198 = vadd.f32 %v2170, %v2194
    %v2199 = vlaneseq
    %v2200 = vshrl.u32 %v2199, 7
    %v2201 = vsub.s32 2, %v2200
    %v2202 = vrot.slane %v1625, %v2201
    %v2203 = vlaneseq
    %v2204 = vshrl.u32 %v2203, 7
    %v2205 = vsub.s32 2, %v2204
    %v2206 = vrot.slane %v1626, %v2205
    %v2207 = vlaneseq
    %v2208 = vshrl.u32 %v2207, 7
    %v2209 = vsub.s32 2, %v2208
    %v2210 = vrot.slane %v1627, %v2209
    %v2211 = vlaneseq
    %v2212 = vshrl.u32 %v2211, 7
    %v2213 = vsub.s32 2, %v2212
    %v2214 = vrot.slane %v1628, %v2213
    %2215 = vset.pattern.permute.xlu0 22
    %2216 = vperm.xlu0 %2215, %v1629
    %v2217 = vpop.permute.xlu0 %2216
    %v2219 = vmul.f32 %v2202, %v2217
    %v2220 = vmul.f32 %v2206, %v2217
    %v2221 = vmul.f32 %v2210, %v2217
    %v2222 = vmul.f32 %v2214, %v2217
    %v2223 = vadd.f32 %v2195, %v2219
    %v2224 = vadd.f32 %v2196, %v2220
    %v2225 = vadd.f32 %v2197, %v2221
    %v2226 = vadd.f32 %v2198, %v2222
    %v2227 = vlaneseq
    %v2228 = vshrl.u32 %v2227, 7
    %v2229 = vsub.s32 3, %v2228
    %v2230 = vrot.slane %v1625, %v2229
    %v2231 = vlaneseq
    %v2232 = vshrl.u32 %v2231, 7
    %v2233 = vsub.s32 3, %v2232
    %v2234 = vrot.slane %v1626, %v2233
    %v2235 = vlaneseq
    %v2236 = vshrl.u32 %v2235, 7
    %v2237 = vsub.s32 3, %v2236
    %v2238 = vrot.slane %v1627, %v2237
    %v2239 = vlaneseq
    %v2240 = vshrl.u32 %v2239, 7
    %v2241 = vsub.s32 3, %v2240
    %v2242 = vrot.slane %v1628, %v2241
    %2243 = vset.pattern.permute.xlu0 31
    %2244 = vperm.xlu0 %2243, %v1629
    %v2245 = vpop.permute.xlu0 %2244
    %v2247 = vmul.f32 %v2230, %v2245
    %v2248 = vmul.f32 %v2234, %v2245
    %v2249 = vmul.f32 %v2238, %v2245
    %v2250 = vmul.f32 %v2242, %v2245
    %v2251 = vadd.f32 %v2223, %v2247
    %v2252 = vadd.f32 %v2224, %v2248
    %v2253 = vadd.f32 %v2225, %v2249
    %v2254 = vadd.f32 %v2226, %v2250
    %2255 = vrot.lane.b32.xlu0 %v1625, 127
    %v2256 = vpop.permute.xlu0 %2255
    %2257 = vrot.lane.b32.xlu0 %v1626, 127
    %v2258 = vpop.permute.xlu0 %2257
    %2259 = vrot.lane.b32.xlu0 %v1627, 127
    %v2260 = vpop.permute.xlu0 %2259
    %2261 = vrot.lane.b32.xlu0 %v1628, 127
    %v2262 = vpop.permute.xlu0 %2261
    %v2263 = vsel %vm877, %v2260, %v2262
    %v2264 = vsel %vm877, %v2258, %v2260
    %v2265 = vsel %vm877, %v2256, %v2258
    %v2266 = vsel %vm877, %v2262, %v2256
    %v2267 = vsel %vm899, %v2265, 0.0
    %v2268 = vsel %vm900, %v2264, 0.0
    %v2269 = vsel %vm901, %v2263, 0.0
    %v2270 = vsel %vm902, %v2266, 0.0
    %v2271 = vlaneseq
    %v2272 = vshrl.u32 %v2271, 7
    %v2273 = vsub.s32 0, %v2272
    %v2274 = vrot.slane %v2267, %v2273
    %v2275 = vlaneseq
    %v2276 = vshrl.u32 %v2275, 7
    %v2277 = vsub.s32 0, %v2276
    %v2278 = vrot.slane %v2268, %v2277
    %v2279 = vlaneseq
    %v2280 = vshrl.u32 %v2279, 7
    %v2281 = vsub.s32 0, %v2280
    %v2282 = vrot.slane %v2269, %v2281
    %v2283 = vlaneseq
    %v2284 = vshrl.u32 %v2283, 7
    %v2285 = vsub.s32 0, %v2284
    %v2286 = vrot.slane %v2270, %v2285
    %2287 = vset.pattern.permute.xlu0 5
    %2288 = vperm.xlu0 %2287, %v1629
    %v2289 = vpop.permute.xlu0 %2288
    %v2291 = vmul.f32 %v2274, %v2289
    %v2292 = vmul.f32 %v2278, %v2289
    %v2293 = vmul.f32 %v2282, %v2289
    %v2294 = vmul.f32 %v2286, %v2289
    %v2295 = vadd.f32 %v2251, %v2291
    %v2296 = vadd.f32 %v2252, %v2292
    %v2297 = vadd.f32 %v2253, %v2293
    %v2298 = vadd.f32 %v2254, %v2294
    %v2299 = vlaneseq
    %v2300 = vshrl.u32 %v2299, 7
    %v2301 = vsub.s32 1, %v2300
    %v2302 = vrot.slane %v2267, %v2301
    %v2303 = vlaneseq
    %v2304 = vshrl.u32 %v2303, 7
    %v2305 = vsub.s32 1, %v2304
    %v2306 = vrot.slane %v2268, %v2305
    %v2307 = vlaneseq
    %v2308 = vshrl.u32 %v2307, 7
    %v2309 = vsub.s32 1, %v2308
    %v2310 = vrot.slane %v2269, %v2309
    %v2311 = vlaneseq
    %v2312 = vshrl.u32 %v2311, 7
    %v2313 = vsub.s32 1, %v2312
    %v2314 = vrot.slane %v2270, %v2313
    %2315 = vset.pattern.permute.xlu0 14
    %2316 = vperm.xlu0 %2315, %v1629
    %v2317 = vpop.permute.xlu0 %2316
    %v2319 = vmul.f32 %v2302, %v2317
    %v2320 = vmul.f32 %v2306, %v2317
    %v2321 = vmul.f32 %v2310, %v2317
    %v2322 = vmul.f32 %v2314, %v2317
    %v2323 = vadd.f32 %v2295, %v2319
    %v2324 = vadd.f32 %v2296, %v2320
    %v2325 = vadd.f32 %v2297, %v2321
    %v2326 = vadd.f32 %v2298, %v2322
    %v2327 = vlaneseq
    %v2328 = vshrl.u32 %v2327, 7
    %v2329 = vsub.s32 2, %v2328
    %v2330 = vrot.slane %v2267, %v2329
    %v2331 = vlaneseq
    %v2332 = vshrl.u32 %v2331, 7
    %v2333 = vsub.s32 2, %v2332
    %v2334 = vrot.slane %v2268, %v2333
    %v2335 = vlaneseq
    %v2336 = vshrl.u32 %v2335, 7
    %v2337 = vsub.s32 2, %v2336
    %v2338 = vrot.slane %v2269, %v2337
    %v2339 = vlaneseq
    %v2340 = vshrl.u32 %v2339, 7
    %v2341 = vsub.s32 2, %v2340
    %v2342 = vrot.slane %v2270, %v2341
    %2343 = vset.pattern.permute.xlu0 23
    %2344 = vperm.xlu0 %2343, %v1629
    %v2345 = vpop.permute.xlu0 %2344
    %v2347 = vmul.f32 %v2330, %v2345
    %v2348 = vmul.f32 %v2334, %v2345
    %v2349 = vmul.f32 %v2338, %v2345
    %v2350 = vmul.f32 %v2342, %v2345
    %v2351 = vadd.f32 %v2323, %v2347
    %v2352 = vadd.f32 %v2324, %v2348
    %v2353 = vadd.f32 %v2325, %v2349
    %v2354 = vadd.f32 %v2326, %v2350
    %v2355 = vlaneseq
    %v2356 = vshrl.u32 %v2355, 7
    %v2357 = vsub.s32 3, %v2356
    %v2358 = vrot.slane %v2267, %v2357
    %v2359 = vlaneseq
    %v2360 = vshrl.u32 %v2359, 7
    %v2361 = vsub.s32 3, %v2360
    %v2362 = vrot.slane %v2268, %v2361
    %v2363 = vlaneseq
    %v2364 = vshrl.u32 %v2363, 7
    %v2365 = vsub.s32 3, %v2364
    %v2366 = vrot.slane %v2269, %v2365
    %v2367 = vlaneseq
    %v2368 = vshrl.u32 %v2367, 7
    %v2369 = vsub.s32 3, %v2368
    %v2370 = vrot.slane %v2270, %v2369
    %2371 = vset.pattern.permute.xlu0 32
    %2372 = vperm.xlu0 %2371, %v1629
    %v2373 = vpop.permute.xlu0 %2372
    %v2375 = vmul.f32 %v2358, %v2373
    %v2376 = vmul.f32 %v2362, %v2373
    %v2377 = vmul.f32 %v2366, %v2373
    %v2378 = vmul.f32 %v2370, %v2373
    %v2379 = vadd.f32 %v2351, %v2375
    %v2380 = vadd.f32 %v2352, %v2376
    %v2381 = vadd.f32 %v2353, %v2377
    %v2382 = vadd.f32 %v2354, %v2378
    %2383 = vrot.lane.b32.xlu0 %v1625, 113
    %v2384 = vpop.permute.xlu0 %2383
    %2385 = vrot.lane.b32.xlu0 %v1626, 113
    %v2386 = vpop.permute.xlu0 %2385
    %2387 = vrot.lane.b32.xlu0 %v1627, 113
    %v2388 = vpop.permute.xlu0 %2387
    %2389 = vrot.lane.b32.xlu0 %v1628, 113
    %v2390 = vpop.permute.xlu0 %2389
    %v2391 = vsel %vm1027, %v2388, %v2390
    %v2392 = vsel %vm1027, %v2386, %v2388
    %v2393 = vsel %vm1027, %v2384, %v2386
    %v2394 = vsel %vm1027, %v2390, %v2384
    %v2395 = vsel %vm1049, %v2393, 0.0
    %v2396 = vsel %vm1050, %v2392, 0.0
    %v2397 = vsel %vm1051, %v2391, 0.0
    %v2398 = vsel %vm1052, %v2394, 0.0
    %v2399 = vlaneseq
    %v2400 = vshrl.u32 %v2399, 7
    %v2401 = vsub.s32 0, %v2400
    %v2402 = vrot.slane %v2395, %v2401
    %v2403 = vlaneseq
    %v2404 = vshrl.u32 %v2403, 7
    %v2405 = vsub.s32 0, %v2404
    %v2406 = vrot.slane %v2396, %v2405
    %v2407 = vlaneseq
    %v2408 = vshrl.u32 %v2407, 7
    %v2409 = vsub.s32 0, %v2408
    %v2410 = vrot.slane %v2397, %v2409
    %v2411 = vlaneseq
    %v2412 = vshrl.u32 %v2411, 7
    %v2413 = vsub.s32 0, %v2412
    %v2414 = vrot.slane %v2398, %v2413
    %2415 = vset.pattern.permute.xlu0 6
    %2416 = vperm.xlu0 %2415, %v1629
    %v2417 = vpop.permute.xlu0 %2416
    %v2419 = vmul.f32 %v2402, %v2417
    %v2420 = vmul.f32 %v2406, %v2417
    %v2421 = vmul.f32 %v2410, %v2417
    %v2422 = vmul.f32 %v2414, %v2417
    %v2423 = vadd.f32 %v2379, %v2419
    %v2424 = vadd.f32 %v2380, %v2420
    %v2425 = vadd.f32 %v2381, %v2421
    %v2426 = vadd.f32 %v2382, %v2422
    %v2427 = vlaneseq
    %v2428 = vshrl.u32 %v2427, 7
    %v2429 = vsub.s32 1, %v2428
    %v2430 = vrot.slane %v2395, %v2429
    %v2431 = vlaneseq
    %v2432 = vshrl.u32 %v2431, 7
    %v2433 = vsub.s32 1, %v2432
    %v2434 = vrot.slane %v2396, %v2433
    %v2435 = vlaneseq
    %v2436 = vshrl.u32 %v2435, 7
    %v2437 = vsub.s32 1, %v2436
    %v2438 = vrot.slane %v2397, %v2437
    %v2439 = vlaneseq
    %v2440 = vshrl.u32 %v2439, 7
    %v2441 = vsub.s32 1, %v2440
    %v2442 = vrot.slane %v2398, %v2441
    %2443 = vset.pattern.permute.xlu0 15
    %2444 = vperm.xlu0 %2443, %v1629
    %v2445 = vpop.permute.xlu0 %2444
    %v2447 = vmul.f32 %v2430, %v2445
    %v2448 = vmul.f32 %v2434, %v2445
    %v2449 = vmul.f32 %v2438, %v2445
    %v2450 = vmul.f32 %v2442, %v2445
    %v2451 = vadd.f32 %v2423, %v2447
    %v2452 = vadd.f32 %v2424, %v2448
    %v2453 = vadd.f32 %v2425, %v2449
    %v2454 = vadd.f32 %v2426, %v2450
    %v2455 = vlaneseq
    %v2456 = vshrl.u32 %v2455, 7
    %v2457 = vsub.s32 2, %v2456
    %v2458 = vrot.slane %v2395, %v2457
    %v2459 = vlaneseq
    %v2460 = vshrl.u32 %v2459, 7
    %v2461 = vsub.s32 2, %v2460
    %v2462 = vrot.slane %v2396, %v2461
    %v2463 = vlaneseq
    %v2464 = vshrl.u32 %v2463, 7
    %v2465 = vsub.s32 2, %v2464
    %v2466 = vrot.slane %v2397, %v2465
    %v2467 = vlaneseq
    %v2468 = vshrl.u32 %v2467, 7
    %v2469 = vsub.s32 2, %v2468
    %v2470 = vrot.slane %v2398, %v2469
    %2471 = vset.pattern.permute.xlu0 24
    %2472 = vperm.xlu0 %2471, %v1629
    %v2473 = vpop.permute.xlu0 %2472
    %v2475 = vmul.f32 %v2458, %v2473
    %v2476 = vmul.f32 %v2462, %v2473
    %v2477 = vmul.f32 %v2466, %v2473
    %v2478 = vmul.f32 %v2470, %v2473
    %v2479 = vadd.f32 %v2451, %v2475
    %v2480 = vadd.f32 %v2452, %v2476
    %v2481 = vadd.f32 %v2453, %v2477
    %v2482 = vadd.f32 %v2454, %v2478
    %v2483 = vlaneseq
    %v2484 = vshrl.u32 %v2483, 7
    %v2485 = vsub.s32 3, %v2484
    %v2486 = vrot.slane %v2395, %v2485
    %v2487 = vlaneseq
    %v2488 = vshrl.u32 %v2487, 7
    %v2489 = vsub.s32 3, %v2488
    %v2490 = vrot.slane %v2396, %v2489
    %v2491 = vlaneseq
    %v2492 = vshrl.u32 %v2491, 7
    %v2493 = vsub.s32 3, %v2492
    %v2494 = vrot.slane %v2397, %v2493
    %v2495 = vlaneseq
    %v2496 = vshrl.u32 %v2495, 7
    %v2497 = vsub.s32 3, %v2496
    %v2498 = vrot.slane %v2398, %v2497
    %2499 = vset.pattern.permute.xlu0 33
    %2500 = vperm.xlu0 %2499, %v1629
    %v2501 = vpop.permute.xlu0 %2500
    %v2503 = vmul.f32 %v2486, %v2501
    %v2504 = vmul.f32 %v2490, %v2501
    %v2505 = vmul.f32 %v2494, %v2501
    %v2506 = vmul.f32 %v2498, %v2501
    %v2507 = vadd.f32 %v2479, %v2503
    %v2508 = vadd.f32 %v2480, %v2504
    %v2509 = vadd.f32 %v2481, %v2505
    %v2510 = vadd.f32 %v2482, %v2506
    %2511 = vrot.lane.b32.xlu0 %v1625, 112
    %v2512 = vpop.permute.xlu0 %2511
    %2513 = vrot.lane.b32.xlu0 %v1626, 112
    %v2514 = vpop.permute.xlu0 %2513
    %2515 = vrot.lane.b32.xlu0 %v1627, 112
    %v2516 = vpop.permute.xlu0 %2515
    %2517 = vrot.lane.b32.xlu0 %v1628, 112
    %v2518 = vpop.permute.xlu0 %2517
    %v2519 = vsel %vm1177, %v2516, %v2518
    %v2520 = vsel %vm1177, %v2514, %v2516
    %v2521 = vsel %vm1177, %v2512, %v2514
    %v2522 = vsel %vm1177, %v2518, %v2512
    %v2523 = vsel %vm1199, %v2521, 0.0
    %v2524 = vsel %vm1200, %v2520, 0.0
    %v2525 = vsel %vm1201, %v2519, 0.0
    %v2526 = vsel %vm1202, %v2522, 0.0
    %v2527 = vlaneseq
    %v2528 = vshrl.u32 %v2527, 7
    %v2529 = vsub.s32 0, %v2528
    %v2530 = vrot.slane %v2523, %v2529
    %v2531 = vlaneseq
    %v2532 = vshrl.u32 %v2531, 7
    %v2533 = vsub.s32 0, %v2532
    %v2534 = vrot.slane %v2524, %v2533
    %v2535 = vlaneseq
    %v2536 = vshrl.u32 %v2535, 7
    %v2537 = vsub.s32 0, %v2536
    %v2538 = vrot.slane %v2525, %v2537
    %v2539 = vlaneseq
    %v2540 = vshrl.u32 %v2539, 7
    %v2541 = vsub.s32 0, %v2540
    %v2542 = vrot.slane %v2526, %v2541
    %2543 = vset.pattern.permute.xlu0 7
    %2544 = vperm.xlu0 %2543, %v1629
    %v2545 = vpop.permute.xlu0 %2544
    %v2547 = vmul.f32 %v2530, %v2545
    %v2548 = vmul.f32 %v2534, %v2545
    %v2549 = vmul.f32 %v2538, %v2545
    %v2550 = vmul.f32 %v2542, %v2545
    %v2551 = vadd.f32 %v2507, %v2547
    %v2552 = vadd.f32 %v2508, %v2548
    %v2553 = vadd.f32 %v2509, %v2549
    %v2554 = vadd.f32 %v2510, %v2550
    %v2555 = vlaneseq
    %v2556 = vshrl.u32 %v2555, 7
    %v2557 = vsub.s32 1, %v2556
    %v2558 = vrot.slane %v2523, %v2557
    %v2559 = vlaneseq
    %v2560 = vshrl.u32 %v2559, 7
    %v2561 = vsub.s32 1, %v2560
    %v2562 = vrot.slane %v2524, %v2561
    %v2563 = vlaneseq
    %v2564 = vshrl.u32 %v2563, 7
    %v2565 = vsub.s32 1, %v2564
    %v2566 = vrot.slane %v2525, %v2565
    %v2567 = vlaneseq
    %v2568 = vshrl.u32 %v2567, 7
    %v2569 = vsub.s32 1, %v2568
    %v2570 = vrot.slane %v2526, %v2569
    %2571 = vset.pattern.permute.xlu0 16
    %2572 = vperm.xlu0 %2571, %v1629
    %v2573 = vpop.permute.xlu0 %2572
    %v2575 = vmul.f32 %v2558, %v2573
    %v2576 = vmul.f32 %v2562, %v2573
    %v2577 = vmul.f32 %v2566, %v2573
    %v2578 = vmul.f32 %v2570, %v2573
    %v2579 = vadd.f32 %v2551, %v2575
    %v2580 = vadd.f32 %v2552, %v2576
    %v2581 = vadd.f32 %v2553, %v2577
    %v2582 = vadd.f32 %v2554, %v2578
    %v2583 = vlaneseq
    %v2584 = vshrl.u32 %v2583, 7
    %v2585 = vsub.s32 2, %v2584
    %v2586 = vrot.slane %v2523, %v2585
    %v2587 = vlaneseq
    %v2588 = vshrl.u32 %v2587, 7
    %v2589 = vsub.s32 2, %v2588
    %v2590 = vrot.slane %v2524, %v2589
    %v2591 = vlaneseq
    %v2592 = vshrl.u32 %v2591, 7
    %v2593 = vsub.s32 2, %v2592
    %v2594 = vrot.slane %v2525, %v2593
    %v2595 = vlaneseq
    %v2596 = vshrl.u32 %v2595, 7
    %v2597 = vsub.s32 2, %v2596
    %v2598 = vrot.slane %v2526, %v2597
    %2599 = vset.pattern.permute.xlu0 25
    %2600 = vperm.xlu0 %2599, %v1629
    %v2601 = vpop.permute.xlu0 %2600
    %v2603 = vmul.f32 %v2586, %v2601
    %v2604 = vmul.f32 %v2590, %v2601
    %v2605 = vmul.f32 %v2594, %v2601
    %v2606 = vmul.f32 %v2598, %v2601
    %v2607 = vadd.f32 %v2579, %v2603
    %v2608 = vadd.f32 %v2580, %v2604
    %v2609 = vadd.f32 %v2581, %v2605
    %v2610 = vadd.f32 %v2582, %v2606
    %v2611 = vlaneseq
    %v2612 = vshrl.u32 %v2611, 7
    %v2613 = vsub.s32 3, %v2612
    %v2614 = vrot.slane %v2523, %v2613
    %v2615 = vlaneseq
    %v2616 = vshrl.u32 %v2615, 7
    %v2617 = vsub.s32 3, %v2616
    %v2618 = vrot.slane %v2524, %v2617
    %v2619 = vlaneseq
    %v2620 = vshrl.u32 %v2619, 7
    %v2621 = vsub.s32 3, %v2620
    %v2622 = vrot.slane %v2525, %v2621
    %v2623 = vlaneseq
    %v2624 = vshrl.u32 %v2623, 7
    %v2625 = vsub.s32 3, %v2624
    %v2626 = vrot.slane %v2526, %v2625
    %2627 = vset.pattern.permute.xlu0 34
    %2628 = vperm.xlu0 %2627, %v1629
    %v2629 = vpop.permute.xlu0 %2628
    %v2631 = vmul.f32 %v2614, %v2629
    %v2632 = vmul.f32 %v2618, %v2629
    %v2633 = vmul.f32 %v2622, %v2629
    %v2634 = vmul.f32 %v2626, %v2629
    %v2635 = vadd.f32 %v2607, %v2631
    %v2636 = vadd.f32 %v2608, %v2632
    %v2637 = vadd.f32 %v2609, %v2633
    %v2638 = vadd.f32 %v2610, %v2634
    %2639 = vrot.lane.b32.xlu0 %v1625, 111
    %v2640 = vpop.permute.xlu0 %2639
    %2641 = vrot.lane.b32.xlu0 %v1626, 111
    %v2642 = vpop.permute.xlu0 %2641
    %2643 = vrot.lane.b32.xlu0 %v1627, 111
    %v2644 = vpop.permute.xlu0 %2643
    %2645 = vrot.lane.b32.xlu0 %v1628, 111
    %v2646 = vpop.permute.xlu0 %2645
    %v2647 = vsel %vm1327, %v2644, %v2646
    %v2648 = vsel %vm1327, %v2642, %v2644
    %v2649 = vsel %vm1327, %v2640, %v2642
    %v2650 = vsel %vm1327, %v2646, %v2640
    %v2651 = vsel %vm1349, %v2649, 0.0
    %v2652 = vsel %vm1350, %v2648, 0.0
    %v2653 = vsel %vm1351, %v2647, 0.0
    %v2654 = vsel %vm1352, %v2650, 0.0
    %v2655 = vlaneseq
    %v2656 = vshrl.u32 %v2655, 7
    %v2657 = vsub.s32 0, %v2656
    %v2658 = vrot.slane %v2651, %v2657
    %v2659 = vlaneseq
    %v2660 = vshrl.u32 %v2659, 7
    %v2661 = vsub.s32 0, %v2660
    %v2662 = vrot.slane %v2652, %v2661
    %v2663 = vlaneseq
    %v2664 = vshrl.u32 %v2663, 7
    %v2665 = vsub.s32 0, %v2664
    %v2666 = vrot.slane %v2653, %v2665
    %v2667 = vlaneseq
    %v2668 = vshrl.u32 %v2667, 7
    %v2669 = vsub.s32 0, %v2668
    %v2670 = vrot.slane %v2654, %v2669
    %2671 = vset.pattern.permute.xlu0 8
    %2672 = vperm.xlu0 %2671, %v1629
    %v2673 = vpop.permute.xlu0 %2672
    %v2675 = vmul.f32 %v2658, %v2673
    %v2676 = vmul.f32 %v2662, %v2673
    %v2677 = vmul.f32 %v2666, %v2673
    %v2678 = vmul.f32 %v2670, %v2673
    %v2679 = vadd.f32 %v2635, %v2675
    %v2680 = vadd.f32 %v2636, %v2676
    %v2681 = vadd.f32 %v2637, %v2677
    %v2682 = vadd.f32 %v2638, %v2678
    %v2683 = vlaneseq
    %v2684 = vshrl.u32 %v2683, 7
    %v2685 = vsub.s32 1, %v2684
    %v2686 = vrot.slane %v2651, %v2685
    %v2687 = vlaneseq
    %v2688 = vshrl.u32 %v2687, 7
    %v2689 = vsub.s32 1, %v2688
    %v2690 = vrot.slane %v2652, %v2689
    %v2691 = vlaneseq
    %v2692 = vshrl.u32 %v2691, 7
    %v2693 = vsub.s32 1, %v2692
    %v2694 = vrot.slane %v2653, %v2693
    %v2695 = vlaneseq
    %v2696 = vshrl.u32 %v2695, 7
    %v2697 = vsub.s32 1, %v2696
    %v2698 = vrot.slane %v2654, %v2697
    %2699 = vset.pattern.permute.xlu0 17
    %2700 = vperm.xlu0 %2699, %v1629
    %v2701 = vpop.permute.xlu0 %2700
    %v2703 = vmul.f32 %v2686, %v2701
    %v2704 = vmul.f32 %v2690, %v2701
    %v2705 = vmul.f32 %v2694, %v2701
    %v2706 = vmul.f32 %v2698, %v2701
    %v2707 = vadd.f32 %v2679, %v2703
    %v2708 = vadd.f32 %v2680, %v2704
    %v2709 = vadd.f32 %v2681, %v2705
    %v2710 = vadd.f32 %v2682, %v2706
    %v2711 = vlaneseq
    %v2712 = vshrl.u32 %v2711, 7
    %v2713 = vsub.s32 2, %v2712
    %v2714 = vrot.slane %v2651, %v2713
    %v2715 = vlaneseq
    %v2716 = vshrl.u32 %v2715, 7
    %v2717 = vsub.s32 2, %v2716
    %v2718 = vrot.slane %v2652, %v2717
    %v2719 = vlaneseq
    %v2720 = vshrl.u32 %v2719, 7
    %v2721 = vsub.s32 2, %v2720
    %v2722 = vrot.slane %v2653, %v2721
    %v2723 = vlaneseq
    %v2724 = vshrl.u32 %v2723, 7
    %v2725 = vsub.s32 2, %v2724
    %v2726 = vrot.slane %v2654, %v2725
    %2727 = vset.pattern.permute.xlu0 26
    %2728 = vperm.xlu0 %2727, %v1629
    %v2729 = vpop.permute.xlu0 %2728
    %v2731 = vmul.f32 %v2714, %v2729
    %v2732 = vmul.f32 %v2718, %v2729
    %v2733 = vmul.f32 %v2722, %v2729
    %v2734 = vmul.f32 %v2726, %v2729
    %v2735 = vadd.f32 %v2707, %v2731
    %v2736 = vadd.f32 %v2708, %v2732
    %v2737 = vadd.f32 %v2709, %v2733
    %v2738 = vadd.f32 %v2710, %v2734
    %v2739 = vlaneseq
    %v2740 = vshrl.u32 %v2739, 7
    %v2741 = vsub.s32 3, %v2740
    %v2742 = vrot.slane %v2651, %v2741
    %v2743 = vlaneseq
    %v2744 = vshrl.u32 %v2743, 7
    %v2745 = vsub.s32 3, %v2744
    %v2746 = vrot.slane %v2652, %v2745
    %v2747 = vlaneseq
    %v2748 = vshrl.u32 %v2747, 7
    %v2749 = vsub.s32 3, %v2748
    %v2750 = vrot.slane %v2653, %v2749
    %v2751 = vlaneseq
    %v2752 = vshrl.u32 %v2751, 7
    %v2753 = vsub.s32 3, %v2752
    %v2754 = vrot.slane %v2654, %v2753
    %2755 = vset.pattern.permute.xlu0 35
    %2756 = vperm.xlu0 %2755, %v1629
    %v2757 = vpop.permute.xlu0 %2756
    %v2759 = vmul.f32 %v2742, %v2757
    %v2760 = vmul.f32 %v2746, %v2757
    %v2761 = vmul.f32 %v2750, %v2757
    %v2762 = vmul.f32 %v2754, %v2757
    %v2763 = vadd.f32 %v2735, %v2759
    %v2764 = vadd.f32 %v2736, %v2760
    %v2765 = vadd.f32 %v2737, %v2761
    %v2766 = vadd.f32 %v2738, %v2762
    %v2767 = vld [vmem:[%s6] sm:$0xf]
    %v2768 = vld [vmem:[%s7] sm:$0xf]
    %v2769 = vsel %vm1471, %v2763, 0.0
    %v2770 = vsel %vm1471, %v2764, 0.0
    %v2771 = vadd.f32 %v2769, %v2770
    %v2772 = vsel %vm1471, %v2765, 0.0
    %v2773 = vadd.f32 %v2771, %v2772
    %v2774 = vsel %vm1471, %v2766, 0.0
    %v2775 = vadd.f32 %v2773, %v2774
    %2776 = vadd.xlane.f32.xlu0 %v2775
    %v2777 = vpop.xlane.xlu0 %2776
    %v2778 = vmul.f32 %v2763, %v2763
    %v2779 = vmul.f32 %v2764, %v2764
    %v2780 = vmul.f32 %v2765, %v2765
    %v2781 = vmul.f32 %v2766, %v2766
    %v2782 = vsel %vm1471, %v2778, 0.0
    %v2783 = vsel %vm1471, %v2779, 0.0
    %v2784 = vadd.f32 %v2782, %v2783
    %v2785 = vsel %vm1471, %v2780, 0.0
    %v2786 = vadd.f32 %v2784, %v2785
    %v2787 = vsel %vm1471, %v2781, 0.0
    %v2788 = vadd.f32 %v2786, %v2787
    %2789 = vadd.xlane.f32.xlu0 %v2788
    %v2790 = vpop.xlane.xlu0 %2789
    %v2791 = vmul.f32 %v2777, 0.001953125
    %v2792 = vmul.f32 %v2790, 0.001953125
    %v2793 = vmul.f32 %v2791, %v2791
    %v2794 = vsub.f32 %v2792, %v2793
    %v2795 = vadd.f32 %v2794, 1e-05
    %v2796 = vrsqrt.pop %v2795
    %v2797 = vmul.f32 %v2767, %v2796
    %v2798 = vmul.f32 %v2791, %v2797
    %v2799 = vsub.f32 %v2768, %v2798
    %2801 = vset.pattern.permute.xlu0 0
    %2802 = vperm.xlu0 %2801, %v2797
    %v2803 = vpop.permute.xlu0 %2802
    %v2805 = vmul.f32 %v2763, %v2803
    %v2806 = vmul.f32 %v2764, %v2803
    %v2807 = vmul.f32 %v2765, %v2803
    %v2808 = vmul.f32 %v2766, %v2803
    %2810 = vset.pattern.permute.xlu0 0
    %2811 = vperm.xlu0 %2810, %v2799
    %v2812 = vpop.permute.xlu0 %2811
    %v2814 = vadd.f32 %v2805, %v2812
    %v2815 = vadd.f32 %v2806, %v2812
    %v2816 = vadd.f32 %v2807, %v2812
    %v2817 = vadd.f32 %v2808, %v2812
    %v2818 = vmul.f32 %v2814, 0.5
    %v2819 = vmul.f32 %v2815, 0.5
    %v2820 = vmul.f32 %v2816, 0.5
    %v2821 = vmul.f32 %v2817, 0.5
    %v2822 = vmul.f32 %v2814, 0.70710677
    %v2823 = vmul.f32 %v2815, 0.70710677
    %v2824 = vmul.f32 %v2816, 0.70710677
    %v2825 = vmul.f32 %v2817, 0.70710677
    %vm2826 = vcmp.ge.f32.partialorder %v2822, 0.0
    %vm2827 = vcmp.ge.f32.partialorder %v2823, 0.0
    %vm2828 = vcmp.ge.f32.partialorder %v2824, 0.0
    %vm2829 = vcmp.ge.f32.partialorder %v2825, 0.0
    %v2830 = vsel %vm2826, 1.0, -1.0
    %v2831 = vsel %vm2827, 1.0, -1.0
    %v2832 = vsel %vm2828, 1.0, -1.0
    %v2833 = vsel %vm2829, 1.0, -1.0
    %v2834 = vand.u32 2147483647, %v2822
    %v2835 = vand.u32 2147483647, %v2823
    %v2836 = vand.u32 2147483647, %v2824
    %v2837 = vand.u32 2147483647, %v2825
    %v2838 = vmul.f32 %v2834, 0.3275911
    %v2839 = vmul.f32 %v2835, 0.3275911
    %v2840 = vmul.f32 %v2836, 0.3275911
    %v2841 = vmul.f32 %v2837, 0.3275911
    %v2842 = vadd.f32 %v2838, 1.0
    %v2843 = vadd.f32 %v2839, 1.0
    %v2844 = vadd.f32 %v2840, 1.0
    %v2845 = vadd.f32 %v2841, 1.0
    %v2846 = vrcp.pop %v2842
    %v2847 = vmul.f32 1.0, %v2846
    %v2848 = vrcp.pop %v2843
    %v2849 = vmul.f32 1.0, %v2848
    %v2850 = vrcp.pop %v2844
    %v2851 = vmul.f32 1.0, %v2850
    %v2852 = vrcp.pop %v2845
    %v2853 = vmul.f32 1.0, %v2852
    %v2854 = vmul.f32 %v2847, 1.0614054
    %v2855 = vmul.f32 %v2849, 1.0614054
    %v2856 = vmul.f32 %v2851, 1.0614054
    %v2857 = vmul.f32 %v2853, 1.0614054
    %v2858 = vadd.f32 %v2854, -1.4531521
    %v2859 = vadd.f32 %v2855, -1.4531521
    %v2860 = vadd.f32 %v2856, -1.4531521
    %v2861 = vadd.f32 %v2857, -1.4531521
    %v2862 = vmul.f32 %v2847, %v2858
    %v2863 = vmul.f32 %v2849, %v2859
    %v2864 = vmul.f32 %v2851, %v2860
    %v2865 = vmul.f32 %v2853, %v2861
    %v2866 = vadd.f32 %v2862, 1.4214138
    %v2867 = vadd.f32 %v2863, 1.4214138
    %v2868 = vadd.f32 %v2864, 1.4214138
    %v2869 = vadd.f32 %v2865, 1.4214138
    %v2870 = vmul.f32 %v2847, %v2866
    %v2871 = vmul.f32 %v2849, %v2867
    %v2872 = vmul.f32 %v2851, %v2868
    %v2873 = vmul.f32 %v2853, %v2869
    %v2874 = vadd.f32 %v2870, -0.28449672
    %v2875 = vadd.f32 %v2871, -0.28449672
    %v2876 = vadd.f32 %v2872, -0.28449672
    %v2877 = vadd.f32 %v2873, -0.28449672
    %v2878 = vmul.f32 %v2847, %v2874
    %v2879 = vmul.f32 %v2849, %v2875
    %v2880 = vmul.f32 %v2851, %v2876
    %v2881 = vmul.f32 %v2853, %v2877
    %v2882 = vadd.f32 %v2878, 0.2548296
    %v2883 = vadd.f32 %v2879, 0.2548296
    %v2884 = vadd.f32 %v2880, 0.2548296
    %v2885 = vadd.f32 %v2881, 0.2548296
    %v2886 = vmul.f32 %v2847, %v2882
    %v2887 = vmul.f32 %v2849, %v2883
    %v2888 = vmul.f32 %v2851, %v2884
    %v2889 = vmul.f32 %v2853, %v2885
    %v2890 = vsub.f32 0.0, %v2834
    %v2891 = vsub.f32 0.0, %v2835
    %v2892 = vsub.f32 0.0, %v2836
    %v2893 = vsub.f32 0.0, %v2837
    %v2894 = vmul.f32 %v2890, %v2834
    %v2895 = vmul.f32 %v2891, %v2835
    %v2896 = vmul.f32 %v2892, %v2836
    %v2897 = vmul.f32 %v2893, %v2837
    %v2898 = vmul.f32 %v2894, 1.442695
    %v2899 = vpow.pop %v2898
    %v2900 = vmul.f32 %v2895, 1.442695
    %v2901 = vpow.pop %v2900
    %v2902 = vmul.f32 %v2896, 1.442695
    %v2903 = vpow.pop %v2902
    %v2904 = vmul.f32 %v2897, 1.442695
    %v2905 = vpow.pop %v2904
    %v2906 = vmul.f32 %v2886, %v2899
    %v2907 = vmul.f32 %v2887, %v2901
    %v2908 = vmul.f32 %v2888, %v2903
    %v2909 = vmul.f32 %v2889, %v2905
    %v2910 = vsub.f32 1.0, %v2906
    %v2911 = vsub.f32 1.0, %v2907
    %v2912 = vsub.f32 1.0, %v2908
    %v2913 = vsub.f32 1.0, %v2909
    %v2914 = vmul.f32 %v2830, %v2910
    %v2915 = vmul.f32 %v2831, %v2911
    %v2916 = vmul.f32 %v2832, %v2912
    %v2917 = vmul.f32 %v2833, %v2913
    %v2918 = vadd.f32 %v2914, 1.0
    %v2919 = vadd.f32 %v2915, 1.0
    %v2920 = vadd.f32 %v2916, 1.0
    %v2921 = vadd.f32 %v2917, 1.0
    %v2922 = vmul.f32 %v2818, %v2918
    %v2923 = vmul.f32 %v2819, %v2919
    %v2924 = vmul.f32 %v2820, %v2920
    %v2925 = vmul.f32 %v2821, %v2921
    %v2926 = vadd.f32 %v2922, %v42
    %v2927 = vadd.f32 %v2923, %v70
    %v2928 = vadd.f32 %v2924, %v43
    %v2929 = vadd.f32 %v2925, %v71
    %v2930 = vld [vmem:[%s8] sm:$0xf]
    %v2931 = vld [vmem:[%s9] sm:$0xf]
    %v2932 = vsel %vm1471, %v2926, 0.0
    %v2933 = vsel %vm1471, %v2927, 0.0
    %v2934 = vadd.f32 %v2932, %v2933
    %v2935 = vsel %vm1471, %v2928, 0.0
    %v2936 = vadd.f32 %v2934, %v2935
    %v2937 = vsel %vm1471, %v2929, 0.0
    %v2938 = vadd.f32 %v2936, %v2937
    %2939 = vadd.xlane.f32.xlu0 %v2938
    %v2940 = vpop.xlane.xlu0 %2939
    %v2941 = vmul.f32 %v2926, %v2926
    %v2942 = vmul.f32 %v2927, %v2927
    %v2943 = vmul.f32 %v2928, %v2928
    %v2944 = vmul.f32 %v2929, %v2929
    %v2945 = vsel %vm1471, %v2941, 0.0
    %v2946 = vsel %vm1471, %v2942, 0.0
    %v2947 = vadd.f32 %v2945, %v2946
    %v2948 = vsel %vm1471, %v2943, 0.0
    %v2949 = vadd.f32 %v2947, %v2948
    %v2950 = vsel %vm1471, %v2944, 0.0
    %v2951 = vadd.f32 %v2949, %v2950
    %2952 = vadd.xlane.f32.xlu0 %v2951
    %v2953 = vpop.xlane.xlu0 %2952
    %v2954 = vmul.f32 %v2940, 0.001953125
    %v2955 = vmul.f32 %v2953, 0.001953125
    %v2956 = vmul.f32 %v2954, %v2954
    %v2957 = vsub.f32 %v2955, %v2956
    %v2958 = vadd.f32 %v2957, 1e-05
    %v2959 = vrsqrt.pop %v2958
    %v2960 = vmul.f32 %v2930, %v2959
    %v2961 = vmul.f32 %v2954, %v2960
    %v2962 = vsub.f32 %v2931, %v2961
    %2964 = vset.pattern.permute.xlu0 0
    %2965 = vperm.xlu0 %2964, %v2960
    %v2966 = vpop.permute.xlu0 %2965
    %v2968 = vmul.f32 %v2926, %v2966
    %v2969 = vmul.f32 %v2927, %v2966
    %v2970 = vmul.f32 %v2928, %v2966
    %v2971 = vmul.f32 %v2929, %v2966
    %2973 = vset.pattern.permute.xlu0 0
    %2974 = vperm.xlu0 %2973, %v2962
    %v2975 = vpop.permute.xlu0 %2974
    %v2977 = vadd.f32 %v2968, %v2975
    %v2978 = vadd.f32 %v2969, %v2975
    %v2979 = vadd.f32 %v2970, %v2975
    %v2980 = vadd.f32 %v2971, %v2975
    %v2985 = vcombine.low %v880, %v879
    %v2986 = vcombine.low %v878, %v881
    %v2989 = vmax.f32 %v42, %v2985
    %v2990 = vmax.f32 %v43, %v2986
    %v2993 = vcombine.high %v2989, %v2989
    %v2994 = vcombine.high %v2990, %v2990
    %2997 = vrot.lane.b32.xlu0 %v2989, 112
    %v2998 = vpop.permute.xlu0 %2997
    %2999 = vrot.lane.b32.xlu0 %v2993, 112
    %v3000 = vpop.permute.xlu0 %2999
    %3001 = vrot.lane.b32.xlu0 %v2990, 112
    %v3002 = vpop.permute.xlu0 %3001
    %3003 = vrot.lane.b32.xlu0 %v2994, 112
    %v3004 = vpop.permute.xlu0 %3003
    %v3005 = vsel %vm1177, %v3002, %v3004
    %v3006 = vsel %vm1177, %v3000, %v3002
    %v3007 = vsel %vm1177, %v2998, %v3000
    %v3008 = vsel %vm1177, %v3004, %v2998
    %v3013 = vcombine.low %v3007, %v3006
    %v3014 = vcombine.low %v3005, %v3008
    %v3017 = vmax.f32 %v2989, %v3013
    %v3018 = vmax.f32 %v2990, %v3014
    %3019 = vrot.lane.b32.xlu0 %v2977, 127
    %v3020 = vpop.permute.xlu0 %3019
    %3021 = vrot.lane.b32.xlu0 %v2978, 127
    %v3022 = vpop.permute.xlu0 %3021
    %3023 = vrot.lane.b32.xlu0 %v2979, 127
    %v3024 = vpop.permute.xlu0 %3023
    %3025 = vrot.lane.b32.xlu0 %v2980, 127
    %v3026 = vpop.permute.xlu0 %3025
    %v3027 = vsel %vm877, %v3024, %v3026
    %v3028 = vsel %vm877, %v3022, %v3024
    %v3029 = vsel %vm877, %v3020, %v3022
    %v3030 = vsel %vm877, %v3026, %v3020
    %v3031 = vmax.f32 %v2977, %v3029
    %v3032 = vmax.f32 %v2978, %v3028
    %v3033 = vmax.f32 %v2979, %v3027
    %v3034 = vmax.f32 %v2980, %v3030
    %3035 = vrot.lane.b32.xlu0 %v3031, 112
    %v3036 = vpop.permute.xlu0 %3035
    %3037 = vrot.lane.b32.xlu0 %v3032, 112
    %v3038 = vpop.permute.xlu0 %3037
    %3039 = vrot.lane.b32.xlu0 %v3033, 112
    %v3040 = vpop.permute.xlu0 %3039
    %3041 = vrot.lane.b32.xlu0 %v3034, 112
    %v3042 = vpop.permute.xlu0 %3041
    %v3043 = vsel %vm1177, %v3040, %v3042
    %v3044 = vsel %vm1177, %v3038, %v3040
    %v3045 = vsel %vm1177, %v3036, %v3038
    %v3046 = vsel %vm1177, %v3042, %v3036
    %v3047 = vmax.f32 %v3031, %v3045
    %v3048 = vmax.f32 %v3032, %v3044
    %v3049 = vmax.f32 %v3033, %v3043
    %v3050 = vmax.f32 %v3034, %v3046
    %v3055 = vcombine.low %v3047, %v3048
    %v3056 = vcombine.low %v3049, %v3050
    %v3059 = vadd.f32 %v3017, %v3055
    %v3060 = vadd.f32 %v3018, %v3056
    %v3061 = vand.u32 %v44, 1
    %vm3062 = vcmp.eq.s32.totalorder %v3061, 0
    %v3063 = vand.u32 %v46, 1
    %vm3064 = vcmp.eq.s32.totalorder %v3063, 0
    %vm3065 = vmand %vm3062, %vm3064
    %v3066 = vld [vmem:[%s10] sm:$0xf]
    %v3067 = vld [vmem:[%s11] sm:$0xf]
    %v3068 = vsel %vm3065, 1, 0
    %v3069 = vlaneseq
    %v3070 = vshrl.u32 %v3069, 7
    %v3071 = vsub.s32 0, %v3070
    %v3072 = vrot.slane %v3068, %v3071
    %v3073 = vlaneseq
    %v3074 = vshrl.u32 %v3073, 7
    %v3075 = vsub.s32 1, %v3074
    %v3076 = vrot.slane %v3068, %v3075
    %v3077 = vlaneseq
    %v3078 = vshrl.u32 %v3077, 7
    %v3079 = vsub.s32 2, %v3078
    %v3080 = vrot.slane %v3068, %v3079
    %v3081 = vlaneseq
    %v3082 = vshrl.u32 %v3081, 7
    %v3083 = vsub.s32 3, %v3082
    %v3084 = vrot.slane %v3068, %v3083
    %vm3085 = vcmp.eq.s32.totalorder %v3072, 1
    %vm3086 = vcmp.eq.s32.totalorder %v3076, 1
    %vm3087 = vcmp.eq.s32.totalorder %v3080, 1
    %vm3088 = vcmp.eq.s32.totalorder %v3084, 1
    %v3091 = vcombine.high %v3059, %v3059
    %v3092 = vcombine.high %v3060, %v3060
    %v3095 = vsel %vm3085, %v3059, 0.0
    %v3096 = vsel %vm3086, %v3091, 0.0
    %v3097 = vsel %vm3087, %v3060, 0.0
    %v3098 = vsel %vm3088, %v3092, 0.0
    %v3099 = vsel %vm1471, %v3095, 0.0
    %v3100 = vsel %vm1471, %v3096, 0.0
    %v3101 = vadd.f32 %v3099, %v3100
    %v3102 = vsel %vm1471, %v3097, 0.0
    %v3103 = vadd.f32 %v3101, %v3102
    %v3104 = vsel %vm1471, %v3098, 0.0
    %v3105 = vadd.f32 %v3103, %v3104
    %3106 = vadd.xlane.f32.xlu0 %v3105
    %v3107 = vpop.xlane.xlu0 %3106
    %v3108 = vmul.f32 %v3095, %v3095
    %v3109 = vmul.f32 %v3096, %v3096
    %v3110 = vmul.f32 %v3097, %v3097
    %v3111 = vmul.f32 %v3098, %v3098
    %v3112 = vsel %vm1471, %v3108, 0.0
    %v3113 = vsel %vm1471, %v3109, 0.0
    %v3114 = vadd.f32 %v3112, %v3113
    %v3115 = vsel %vm1471, %v3110, 0.0
    %v3116 = vadd.f32 %v3114, %v3115
    %v3117 = vsel %vm1471, %v3111, 0.0
    %v3118 = vadd.f32 %v3116, %v3117
    %3119 = vadd.xlane.f32.xlu0 %v3118
    %v3120 = vpop.xlane.xlu0 %3119
    %v3121 = vmul.f32 %v3107, 0.0078125
    %v3122 = vmul.f32 %v3120, 0.0078125
    %v3123 = vmul.f32 %v3121, %v3121
    %v3124 = vsub.f32 %v3122, %v3123
    %v3125 = vadd.f32 %v3124, 1e-05
    %v3126 = vrsqrt.pop %v3125
    %v3127 = vmul.f32 %v3066, %v3126
    %v3128 = vmul.f32 %v3121, %v3127
    %v3129 = vsub.f32 %v3067, %v3128
    %3131 = vset.pattern.permute.xlu0 0
    %3132 = vperm.xlu0 %3131, %v3127
    %v3133 = vpop.permute.xlu0 %3132
    %v3135 = vunpack.c.l.s4 839922192
    %v3136 = vunpack.c.0.s8 %v3135
    %v3137 = vlaneseq
    %v3138 = vshrl.u32 %v3137, 7
    %v3139 = vsub.s32 %v3136, %v3138
    %v3140 = vrot.slane %v3133, %v3139
    %v3142 = vmul.f32 %v3059, %v3140
    %v3143 = vmul.f32 %v3060, %v3140
    %3145 = vset.pattern.permute.xlu0 0
    %3146 = vperm.xlu0 %3145, %v3129
    %v3147 = vpop.permute.xlu0 %3146
    %v3149 = vunpack.c.l.s4 839922192
    %v3150 = vunpack.c.0.s8 %v3149
    %v3151 = vlaneseq
    %v3152 = vshrl.u32 %v3151, 7
    %v3153 = vsub.s32 %v3150, %v3152
    %v3154 = vrot.slane %v3147, %v3153
    %v3156 = vadd.f32 %v3142, %v3154
    %v3157 = vadd.f32 %v3143, %v3154
    %3158 = vst [vmem:[#allocation2] sm:$0xff] %v3156
    %3159 = vst [vmem:[#allocation2 + $0x8] sm:$0xff] %v3157
    // Predicated region
    $region50: #{tpu_custom_call.1} parent=1 // pred_check
      _
    $region51: #{tpu_custom_call.1} parent=1 // pred_check_branch
      %3161 = sbr.rel (0) target = $region53
    $region52: #{tpu_custom_call.1} parent=1 // pred_region
      %s3163 = ssub.s32 256, 256
      %3164 = vsyncadd [#allocation3], %s3163
      %s3166 = sshll.u32 [#allocation2], 4
      %s3167 = int_to_ptr.vmem [resolvable:$true] %s3166
      %3169 = dma.vmem_to_hbm [thread:$0]  %s3167, 256, %s12, [#allocation3]
    $region53: #{tpu_custom_call.1} parent=1 // pred_fallthru
      _
    // Predicated region
    $region54: #{tpu_custom_call.1} parent=1 // pred_check
      _
    $region55: #{tpu_custom_call.1} parent=1 // pred_check_branch
      %3171 = sbr.rel (0) target = $region57
    $region56: #{tpu_custom_call.1} parent=1 // pred_region
      %3172 = dma.done [#allocation3], 256
    $region57: #{tpu_custom_call.1} parent=1 // pred_fallthru
      _
    %3173 = vsyncpa [#allocation3], 1

</llo_original>
